<compile_context>
chip_gen: v6e
topology: v6e:2x2x1
jax: 0.10.0
libtpu: 0.0.40
codegen_flags: <defaults>
</compile_context>

<pallas_src>
import numpy as np
import jax
import jax.numpy as jnp
from jax.experimental import pallas as pl
from jax.experimental.pallas import tpu as pltpu


def _make_kernel(L, H, V, T):
    """Decode kernel for one batch block. Ref order: inputs..., outputs...

    Inputs : enc, w_in_t, b_in, then per layer (w_ih_r, w_hh_r, b_r) with gate
             columns pre-reordered to [i, f, o, g], then w_out_t, b_out.
    Outputs: probs (B, T*V), logits (B, T*V)  -- lane-dense slabs.
    """
    n_in = 5 + 3 * L

    def kernel(*refs):
        enc_ref, w_in_ref, b_in_ref = refs[0], refs[1], refs[2]
        layer_refs = refs[3:3 + 3 * L]
        w_out_ref, b_out_ref = refs[3 + 3 * L], refs[4 + 3 * L]
        probs_ref, logits_ref = refs[n_in], refs[n_in + 1]

        B = enc_ref.shape[0]

        # ---- input_fc -> per-layer (h0, c0); all state stays in vregs -------
        hc = jnp.dot(enc_ref[...], w_in_ref[...],
                     preferred_element_type=jnp.float32) + b_in_ref[...]
        h = []
        c = []
        for l in range(L):
            off = 2 * H * l
            h.append(hc[:, off:off + H])
            c.append(hc[:, off + H:off + 2 * H])

        # x0 = one-hot(token 0)
        col = jax.lax.broadcasted_iota(jnp.int32, (B, V), 1)
        x = jnp.where(col == 0, 1.0, 0.0).astype(jnp.float32)

        # ---- fully-unrolled autoregressive loop over T timesteps ------------
        # TODO(synk): convert to lax.fori_loop(unroll=2-4) with ref-carried
        # h/c once T grows beyond ~16-32 to cap vreg pressure / compile time.
        for t in range(T):
            layer_in = x
            for l in range(L):
                w_ih_ref = layer_refs[3 * l]      # (in_dim, 4H), cols [i,f,o,g]
                w_hh_ref = layer_refs[3 * l + 1]  # (H, 4H),      cols [i,f,o,g]
                b_ref = layer_refs[3 * l + 2]     # (1, 4H) = b_ih + b_hh

                # Two in-vreg dots (K = V or H <= 128 -> single MXU pass
                # per dot on every chip generation).
                gates = (jnp.dot(layer_in, w_ih_ref[...],
                                 preferred_element_type=jnp.float32)
                         + jnp.dot(h[l], w_hh_ref[...],
                                   preferred_element_type=jnp.float32)
                         + b_ref[...])

                # Gate columns are [i, f, o, g]: one sigmoid pass over 0:3H,
                # one tanh pass over 3H:4H (EUP issued once each per cell).
                sig = jax.nn.sigmoid(gates[:, 0:3 * H])
                g_g = jnp.tanh(gates[:, 3 * H:4 * H])
                i_g = sig[:, 0:H]
                f_g = sig[:, H:2 * H]
                o_g = sig[:, 2 * H:3 * H]

                c_new = f_g * c[l] + i_g * g_g
                h_new = o_g * jnp.tanh(c_new)
                c[l] = c_new
                h[l] = h_new
                layer_in = h_new

            # ---- output_fc + softmax, write step slice, soft feedback -------
            logits = jnp.dot(layer_in, w_out_ref[...],
                             preferred_element_type=jnp.float32) + b_out_ref[...]
            m = jnp.max(logits, axis=-1, keepdims=True)
            e = jnp.exp(logits - m)
            # Exact division keeps the strict 1e-4 check; pl.reciprocal(...,
            # approx=True) is a free swap if tolerances are ever relaxed.
            probs = e / jnp.sum(e, axis=-1, keepdims=True)

            logits_ref[:, t * V:(t + 1) * V] = logits   # lane-dense (B, T*V)
            probs_ref[:, t * V:(t + 1) * V] = probs
            x = probs                                   # feedback stays in vregs

    return kernel


def _reorder_gates(w, H):
    """PyTorch LSTM gate order [i, f, g, o] -> [i, f, o, g] along the last axis,
    so the kernel applies sigmoid to lanes 0:3H and tanh to lanes 3H:4H."""
    return jnp.concatenate(
        [w[..., 0:2 * H], w[..., 3 * H:4 * H], w[..., 2 * H:3 * H]], axis=-1)


def lstm_decoder_forward(encoding, params, *, length):
    B, E = encoding.shape
    H = params["lstm_size"]
    L = params["lstm_layers"]
    V = params["vocab_size"]
    T = length

    # Batch block = f32 sublane count -> dense vregs; also the per-core unit
    # for megacore batch sharding on v7x once B_pad >= 16.
    BB = 8
    B_pad = ((B + BB - 1) // BB) * BB
    enc = jnp.pad(encoding, ((0, B_pad - B), (0, 0))) if B_pad != B else encoding

    inputs = [enc, params["w_in_t"], params["b_in"]]
    in_specs = [
        pl.BlockSpec((BB, E), lambda i: (i, 0)),                       # encoding
        pl.BlockSpec(params["w_in_t"].shape, lambda i: (0, 0)),        # weights:
        pl.BlockSpec(params["b_in"].shape, lambda i: (0, 0)),          # constant block
    ]
    for l in range(L):
        w_ih_r = _reorder_gates(params["w_ih_t"][l], H)
        w_hh_r = _reorder_gates(params["w_hh_t"][l], H)
        b_r = _reorder_gates(params["b_lstm"][l], H)
        inputs += [w_ih_r, w_hh_r, b_r]
        in_specs += [pl.BlockSpec(w_ih_r.shape, lambda i: (0, 0)),
                     pl.BlockSpec(w_hh_r.shape, lambda i: (0, 0)),
                     pl.BlockSpec(b_r.shape, lambda i: (0, 0))]
    inputs += [params["w_out_t"], params["b_out"]]
    in_specs += [pl.BlockSpec(params["w_out_t"].shape, lambda i: (0, 0)),
                 pl.BlockSpec(params["b_out"].shape, lambda i: (0, 0))]

    out_specs = (pl.BlockSpec((BB, T * V), lambda i: (i, 0)),
                 pl.BlockSpec((BB, T * V), lambda i: (i, 0)))

    # Everything (weights + per-block outputs) stays VMEM-resident for the
    # whole decode of a batch block; outputs hit HBM exactly once per block.
    # At scale: bf16 weights + T-block output streaming + vmem_limit_bytes
    # to stay inside v7x's 64 MiB VMEM.
    probs_flat, logits_flat = pl.pallas_call(
        _make_kernel(L, H, V, T),
        out_shape=(jax.ShapeDtypeStruct((B_pad, T * V), jnp.float32),
                   jax.ShapeDtypeStruct((B_pad, T * V), jnp.float32)),
        grid=(B_pad // BB,),
        in_specs=in_specs,
        out_specs=out_specs,
        compiler_params=pltpu.CompilerParams(
            dimension_semantics=("parallel",)),
    )(*inputs)

    # Row-major (B, T*V) -> (B, T, V) is a free reshape (no transpose pass).
    decoded = probs_flat.reshape(B_pad, T, V)[:B]
    decoded_logits = logits_flat.reshape(B_pad, T, V)[:B]
    return decoded, decoded_logits


def init_params(key, *, vocab_size, lstm_size, lstm_layers, encoding_size):
    """Deterministic PyTorch-style uniform init. Weights stored pre-transposed,
    gate columns in PyTorch order [i, f, g, o] (kernel wrapper reorders)."""
    H, L, V, E = lstm_size, lstm_layers, vocab_size, encoding_size
    keys = jax.random.split(key, 4 + 4 * L)

    def u(k, shape, bound):
        return jax.random.uniform(k, shape, jnp.float32, -bound, bound)

    ki = 0
    k_in = 1.0 / (E ** 0.5)
    w_in_t = u(keys[ki], (E, 2 * H * L), k_in); ki += 1          # input_fc.weight.T
    b_in = u(keys[ki], (1, 2 * H * L), k_in); ki += 1            # input_fc.bias

    k_h = 1.0 / (H ** 0.5)
    w_ih_t, w_hh_t, b_lstm = [], [], []
    for l in range(L):
        in_dim = V if l == 0 else H
        w_ih_t.append(u(keys[ki], (in_dim, 4 * H), k_h)); ki += 1
        w_hh_t.append(u(keys[ki], (H, 4 * H), k_h)); ki += 1
        # PyTorch keeps bias_ih and bias_hh; the cell only ever uses their sum.
        b_lstm.append(u(keys[ki], (1, 4 * H), k_h)
                      + u(keys[ki + 1], (1, 4 * H), k_h)); ki += 2

    w_out_t = u(keys[ki], (H, V), k_h); ki += 1                  # output_fc.weight.T
    b_out = u(keys[ki], (1, V), k_h); ki += 1                    # output_fc.bias

    return dict(vocab_size=V, lstm_size=H, lstm_layers=L, encoding_size=E,
                w_in_t=w_in_t, b_in=b_in, w_ih_t=w_ih_t, w_hh_t=w_hh_t,
                b_lstm=b_lstm, w_out_t=w_out_t, b_out=b_out)


def reference_forward(encoding, params, *, length):
    """Pure-JAX replica of the PyTorch forward, for correctness checking."""
    H, L, V = params["lstm_size"], params["lstm_layers"], params["vocab_size"]
    B = encoding.shape[0]
    hp = jax.lax.Precision.HIGHEST
    hc = jnp.dot(encoding, params["w_in_t"], precision=hp) + params["b_in"]
    hc = hc.reshape(B, L, 2 * H).transpose(1, 0, 2)
    h = [hc[l, :, :H] for l in range(L)]
    c = [hc[l, :, H:] for l in range(L)]
    x = jnp.zeros((B, V), jnp.float32).at[:, 0].set(1.0)
    probs_l, logits_l = [], []
    for _ in range(length):
        layer_in = x
        for l in range(L):
            gates = (jnp.dot(layer_in, params["w_ih_t"][l], precision=hp)
                     + jnp.dot(h[l], params["w_hh_t"][l], precision=hp)
                     + params["b_lstm"][l])
            i_g = jax.nn.sigmoid(gates[:, 0:H])
            f_g = jax.nn.sigmoid(gates[:, H:2 * H])
            g_g = jnp.tanh(gates[:, 2 * H:3 * H])
            o_g = jax.nn.sigmoid(gates[:, 3 * H:4 * H])
            c[l] = f_g * c[l] + i_g * g_g
            h[l] = o_g * jnp.tanh(c[l])
            layer_in = h[l]
        logits = jnp.dot(layer_in, params["w_out_t"], precision=hp) + params["b_out"]
        probs = jax.nn.softmax(logits, axis=-1)
        logits_l.append(logits)
        probs_l.append(probs)
        x = probs
    return jnp.stack(probs_l, axis=1), jnp.stack(logits_l, axis=1)  # (B, T, V)


if __name__ == "__main__":
    B, E, H, L, V, T = 2, 8, 32, 2, 16, 8   # batch, encoding, hidden, layers, vocab, length

    key = jax.random.PRNGKey(0)
    k_enc, k_par = jax.random.split(key)
    params = init_params(k_par, vocab_size=V, lstm_size=H,
                         lstm_layers=L, encoding_size=E)
    encoding = jax.random.normal(k_enc, (B, E), jnp.float32)

    decoded, decoded_logits = lstm_decoder_forward(encoding, params, length=T)
    jax.block_until_ready((decoded, decoded_logits))

    assert decoded.shape == (B, T, V) and decoded_logits.shape == (B, T, V)

    ref_d, ref_dl = reference_forward(encoding, params, length=T)
    np.testing.assert_allclose(np.asarray(decoded), np.asarray(ref_d),
                               rtol=1e-3, atol=1e-4)
    np.testing.assert_allclose(np.asarray(decoded_logits), np.asarray(ref_dl),
                               rtol=1e-3, atol=1e-4)

    print("KERNEL_OK")
</pallas_src>

<mosaic_0001>
module attributes {stable_mosaic.version = 11 : i64} {
  func.func @kernel(%arg0: i32, %arg1: memref<8x8xf32, #tpu.memory_space<vmem>>, %arg2: memref<8x128xf32, #tpu.memory_space<vmem>>, %arg3: memref<1x128xf32, #tpu.memory_space<vmem>>, %arg4: memref<16x128xf32, #tpu.memory_space<vmem>>, %arg5: memref<32x128xf32, #tpu.memory_space<vmem>>, %arg6: memref<1x128xf32, #tpu.memory_space<vmem>>, %arg7: memref<32x128xf32, #tpu.memory_space<vmem>>, %arg8: memref<32x128xf32, #tpu.memory_space<vmem>>, %arg9: memref<1x128xf32, #tpu.memory_space<vmem>>, %arg10: memref<32x16xf32, #tpu.memory_space<vmem>>, %arg11: memref<1x16xf32, #tpu.memory_space<vmem>>, %arg12: memref<8x128xf32, #tpu.memory_space<vmem>>, %arg13: memref<8x128xf32, #tpu.memory_space<vmem>>) attributes {dimension_semantics = [#tpu.dimension_semantics<parallel>], iteration_bounds = array<i64: 1>, scalar_prefetch = 0 : i64, scratch_operands = 0 : i64, tpu.core_type = #tpu.core_type<tc>, window_params = [{transform_indices = @transform_0, window_bounds = array<i64: 8, 8>}, {pipeline_mode = #tpu.pipeline_mode<synchronous>, transform_indices = @transform_1, window_bounds = array<i64: 8, 128>}, {pipeline_mode = #tpu.pipeline_mode<synchronous>, transform_indices = @transform_2, window_bounds = array<i64: 1, 128>}, {pipeline_mode = #tpu.pipeline_mode<synchronous>, transform_indices = @transform_3, window_bounds = array<i64: 16, 128>}, {pipeline_mode = #tpu.pipeline_mode<synchronous>, transform_indices = @transform_4, window_bounds = array<i64: 32, 128>}, {pipeline_mode = #tpu.pipeline_mode<synchronous>, transform_indices = @transform_5, window_bounds = array<i64: 1, 128>}, {pipeline_mode = #tpu.pipeline_mode<synchronous>, transform_indices = @transform_6, window_bounds = array<i64: 32, 128>}, {pipeline_mode = #tpu.pipeline_mode<synchronous>, transform_indices = @transform_7, window_bounds = array<i64: 32, 128>}, {pipeline_mode = #tpu.pipeline_mode<synchronous>, transform_indices = @transform_8, window_bounds = array<i64: 1, 128>}, {pipeline_mode = #tpu.pipeline_mode<synchronous>, transform_indices = @transform_9, window_bounds = array<i64: 32, 16>}, {pipeline_mode = #tpu.pipeline_mode<synchronous>, transform_indices = @transform_10, window_bounds = array<i64: 1, 16>}, {transform_indices = @transform_11, window_bounds = array<i64: 8, 128>}, {transform_indices = @transform_12, window_bounds = array<i64: 8, 128>}]} {
    %c0 = arith.constant 0 : index
    %c0_0 = arith.constant 0 : index
    %0 = vector.load %arg1[%c0, %c0_0] : memref<8x8xf32, #tpu.memory_space<vmem>>, vector<8x8xf32>
    %c0_1 = arith.constant 0 : index
    %c0_2 = arith.constant 0 : index
    %1 = vector.load %arg2[%c0_1, %c0_2] : memref<8x128xf32, #tpu.memory_space<vmem>>, vector<8x128xf32>
    %cst = arith.constant dense<0.000000e+00> : vector<8x128xf32>
    %2 = tpu.matmul %0, %1, %cst {dimension_numbers = #tpu.dot_dimension_numbers<[1], [0], [0], [1], [0, 0, 1, 1], [], []>} : vector<8x8xf32>, vector<8x128xf32>, vector<8x128xf32> -> vector<8x128xf32>
    %c0_3 = arith.constant 0 : index
    %c0_4 = arith.constant 0 : index
    %3 = vector.load %arg3[%c0_3, %c0_4] : memref<1x128xf32, #tpu.memory_space<vmem>>, vector<1x128xf32>
    %4 = vector.broadcast %3 : vector<1x128xf32> to vector<8x128xf32>
    %5 = arith.addf %2, %4 : vector<8x128xf32>
    %6 = vector.extract_strided_slice %5 {offsets = [0, 0], sizes = [8, 32], strides = [1, 1]} : vector<8x128xf32> to vector<8x32xf32>
    %7 = vector.extract_strided_slice %5 {offsets = [0, 32], sizes = [8, 32], strides = [1, 1]} : vector<8x128xf32> to vector<8x32xf32>
    %8 = vector.extract_strided_slice %5 {offsets = [0, 64], sizes = [8, 32], strides = [1, 1]} : vector<8x128xf32> to vector<8x32xf32>
    %9 = vector.extract_strided_slice %5 {offsets = [0, 96], sizes = [8, 32], strides = [1, 1]} : vector<8x128xf32> to vector<8x32xf32>
    %10 = tpu.iota {dimensions = array<i32: 1>} : vector<8x16xi32>
    %c0_i32 = arith.constant 0 : i32
    %11 = vector.broadcast %c0_i32 : i32 to vector<8x16xi32>
    %12 = arith.cmpi eq, %10, %11 : vector<8x16xi32>
    %cst_5 = arith.constant 1.000000e+00 : f32
    %cst_6 = arith.constant 0.000000e+00 : f32
    %13 = vector.broadcast %cst_5 : f32 to vector<8x16xf32>
    %14 = vector.broadcast %cst_6 : f32 to vector<8x16xf32>
    %15 = arith.select %12, %13, %14 : vector<8x16xi1>, vector<8x16xf32>
    %c0_7 = arith.constant 0 : index
    %c0_8 = arith.constant 0 : index
    %16 = vector.load %arg4[%c0_7, %c0_8] : memref<16x128xf32, #tpu.memory_space<vmem>>, vector<16x128xf32>
    %cst_9 = arith.constant dense<0.000000e+00> : vector<8x128xf32>
    %17 = tpu.matmul %15, %16, %cst_9 {dimension_numbers = #tpu.dot_dimension_numbers<[1], [0], [0], [1], [0, 0, 1, 1], [], []>} : vector<8x16xf32>, vector<16x128xf32>, vector<8x128xf32> -> vector<8x128xf32>
    %c0_10 = arith.constant 0 : index
    %c0_11 = arith.constant 0 : index
    %18 = vector.load %arg5[%c0_10, %c0_11] : memref<32x128xf32, #tpu.memory_space<vmem>>, vector<32x128xf32>
    %cst_12 = arith.constant dense<0.000000e+00> : vector<8x128xf32>
    %19 = tpu.matmul %6, %18, %cst_12 {dimension_numbers = #tpu.dot_dimension_numbers<[1], [0], [0], [1], [0, 0, 1, 1], [], []>} : vector<8x32xf32>, vector<32x128xf32>, vector<8x128xf32> -> vector<8x128xf32>
    %20 = arith.addf %17, %19 : vector<8x128xf32>
    %c0_13 = arith.constant 0 : index
    %c0_14 = arith.constant 0 : index
    %21 = vector.load %arg6[%c0_13, %c0_14] : memref<1x128xf32, #tpu.memory_space<vmem>>, vector<1x128xf32>
    %22 = vector.broadcast %21 : vector<1x128xf32> to vector<8x128xf32>
    %23 = arith.addf %20, %22 : vector<8x128xf32>
    %24 = vector.extract_strided_slice %23 {offsets = [0, 0], sizes = [8, 96], strides = [1, 1]} : vector<8x128xf32> to vector<8x96xf32>
    %25 = arith.negf %24 : vector<8x96xf32>
    %26 = math.exp %25 : vector<8x96xf32>
    %cst_15 = arith.constant 1.000000e+00 : f32
    %27 = vector.broadcast %cst_15 : f32 to vector<8x96xf32>
    %28 = arith.addf %27, %26 : vector<8x96xf32>
    %29 = arith.divf %27, %28 : vector<8x96xf32>
    %30 = vector.extract_strided_slice %23 {offsets = [0, 96], sizes = [8, 32], strides = [1, 1]} : vector<8x128xf32> to vector<8x32xf32>
    %31 = math.tanh %30 : vector<8x32xf32>
    %32 = vector.extract_strided_slice %29 {offsets = [0, 0], sizes = [8, 32], strides = [1, 1]} : vector<8x96xf32> to vector<8x32xf32>
    %33 = vector.extract_strided_slice %29 {offsets = [0, 32], sizes = [8, 32], strides = [1, 1]} : vector<8x96xf32> to vector<8x32xf32>
    %34 = vector.extract_strided_slice %29 {offsets = [0, 64], sizes = [8, 32], strides = [1, 1]} : vector<8x96xf32> to vector<8x32xf32>
    %35 = arith.mulf %33, %7 : vector<8x32xf32>
    %36 = arith.mulf %32, %31 : vector<8x32xf32>
    %37 = arith.addf %35, %36 : vector<8x32xf32>
    %38 = math.tanh %37 : vector<8x32xf32>
    %39 = arith.mulf %34, %38 : vector<8x32xf32>
    %c0_16 = arith.constant 0 : index
    %c0_17 = arith.constant 0 : index
    %40 = vector.load %arg7[%c0_16, %c0_17] : memref<32x128xf32, #tpu.memory_space<vmem>>, vector<32x128xf32>
    %cst_18 = arith.constant dense<0.000000e+00> : vector<8x128xf32>
    %41 = tpu.matmul %39, %40, %cst_18 {dimension_numbers = #tpu.dot_dimension_numbers<[1], [0], [0], [1], [0, 0, 1, 1], [], []>} : vector<8x32xf32>, vector<32x128xf32>, vector<8x128xf32> -> vector<8x128xf32>
    %c0_19 = arith.constant 0 : index
    %c0_20 = arith.constant 0 : index
    %42 = vector.load %arg8[%c0_19, %c0_20] : memref<32x128xf32, #tpu.memory_space<vmem>>, vector<32x128xf32>
    %cst_21 = arith.constant dense<0.000000e+00> : vector<8x128xf32>
    %43 = tpu.matmul %8, %42, %cst_21 {dimension_numbers = #tpu.dot_dimension_numbers<[1], [0], [0], [1], [0, 0, 1, 1], [], []>} : vector<8x32xf32>, vector<32x128xf32>, vector<8x128xf32> -> vector<8x128xf32>
    %44 = arith.addf %41, %43 : vector<8x128xf32>
    %c0_22 = arith.constant 0 : index
    %c0_23 = arith.constant 0 : index
    %45 = vector.load %arg9[%c0_22, %c0_23] : memref<1x128xf32, #tpu.memory_space<vmem>>, vector<1x128xf32>
    %46 = vector.broadcast %45 : vector<1x128xf32> to vector<8x128xf32>
    %47 = arith.addf %44, %46 : vector<8x128xf32>
    %48 = vector.extract_strided_slice %47 {offsets = [0, 0], sizes = [8, 96], strides = [1, 1]} : vector<8x128xf32> to vector<8x96xf32>
    %49 = arith.negf %48 : vector<8x96xf32>
    %50 = math.exp %49 : vector<8x96xf32>
    %cst_24 = arith.constant 1.000000e+00 : f32
    %51 = vector.broadcast %cst_24 : f32 to vector<8x96xf32>
    %52 = arith.addf %51, %50 : vector<8x96xf32>
    %53 = arith.divf %51, %52 : vector<8x96xf32>
    %54 = vector.extract_strided_slice %47 {offsets = [0, 96], sizes = [8, 32], strides = [1, 1]} : vector<8x128xf32> to vector<8x32xf32>
    %55 = math.tanh %54 : vector<8x32xf32>
    %56 = vector.extract_strided_slice %53 {offsets = [0, 0], sizes = [8, 32], strides = [1, 1]} : vector<8x96xf32> to vector<8x32xf32>
    %57 = vector.extract_strided_slice %53 {offsets = [0, 32], sizes = [8, 32], strides = [1, 1]} : vector<8x96xf32> to vector<8x32xf32>
    %58 = vector.extract_strided_slice %53 {offsets = [0, 64], sizes = [8, 32], strides = [1, 1]} : vector<8x96xf32> to vector<8x32xf32>
    %59 = arith.mulf %57, %9 : vector<8x32xf32>
    %60 = arith.mulf %56, %55 : vector<8x32xf32>
    %61 = arith.addf %59, %60 : vector<8x32xf32>
    %62 = math.tanh %61 : vector<8x32xf32>
    %63 = arith.mulf %58, %62 : vector<8x32xf32>
    %c0_25 = arith.constant 0 : index
    %c0_26 = arith.constant 0 : index
    %64 = vector.load %arg10[%c0_25, %c0_26] : memref<32x16xf32, #tpu.memory_space<vmem>>, vector<32x16xf32>
    %cst_27 = arith.constant dense<0.000000e+00> : vector<8x16xf32>
    %65 = tpu.matmul %63, %64, %cst_27 {dimension_numbers = #tpu.dot_dimension_numbers<[1], [0], [0], [1], [0, 0, 1, 1], [], []>} : vector<8x32xf32>, vector<32x16xf32>, vector<8x16xf32> -> vector<8x16xf32>
    %c0_28 = arith.constant 0 : index
    %c0_29 = arith.constant 0 : index
    %66 = vector.load %arg11[%c0_28, %c0_29] : memref<1x16xf32, #tpu.memory_space<vmem>>, vector<1x16xf32>
    %67 = vector.broadcast %66 : vector<1x16xf32> to vector<8x16xf32>
    %68 = arith.addf %65, %67 : vector<8x16xf32>
    %cst_30 = arith.constant dense<0xFF800000> : vector<8xf32>
    %69 = vector.multi_reduction <maximumf>, %68, %cst_30 [1] : vector<8x16xf32> to vector<8xf32>
    %70 = vector.shape_cast %69 : vector<8xf32> to vector<8x1xf32>
    %71 = vector.broadcast %70 : vector<8x1xf32> to vector<8x16xf32>
    %72 = arith.subf %68, %71 : vector<8x16xf32>
    %73 = math.exp %72 : vector<8x16xf32>
    %cst_31 = arith.constant dense<0.000000e+00> : vector<8xf32>
    %74 = vector.multi_reduction <add>, %73, %cst_31 [1] : vector<8x16xf32> to vector<8xf32>
    %75 = vector.shape_cast %74 : vector<8xf32> to vector<8x1xf32>
    %76 = vector.broadcast %75 : vector<8x1xf32> to vector<8x16xf32>
    %77 = arith.divf %73, %76 : vector<8x16xf32>
    %c0_32 = arith.constant 0 : index
    %c0_33 = arith.constant 0 : index
    %78 = vector.load %arg13[%c0_32, %c0_33] : memref<8x128xf32, #tpu.memory_space<vmem>>, vector<8x16xf32>
    tpu.vector_store %arg13[%c0_32, %c0_33], %68 {strides = array<i32>} : memref<8x128xf32, #tpu.memory_space<vmem>>, vector<8x16xf32>,
    %c0_34 = arith.constant 0 : index
    %c0_35 = arith.constant 0 : index
    %79 = vector.load %arg12[%c0_34, %c0_35] : memref<8x128xf32, #tpu.memory_space<vmem>>, vector<8x16xf32>
    tpu.vector_store %arg12[%c0_34, %c0_35], %77 {strides = array<i32>} : memref<8x128xf32, #tpu.memory_space<vmem>>, vector<8x16xf32>,
    %c0_36 = arith.constant 0 : index
    %c0_37 = arith.constant 0 : index
    %80 = vector.load %arg4[%c0_36, %c0_37] : memref<16x128xf32, #tpu.memory_space<vmem>>, vector<16x128xf32>
    %cst_38 = arith.constant dense<0.000000e+00> : vector<8x128xf32>
    %81 = tpu.matmul %77, %80, %cst_38 {dimension_numbers = #tpu.dot_dimension_numbers<[1], [0], [0], [1], [0, 0, 1, 1], [], []>} : vector<8x16xf32>, vector<16x128xf32>, vector<8x128xf32> -> vector<8x128xf32>
    %c0_39 = arith.constant 0 : index
    %c0_40 = arith.constant 0 : index
    %82 = vector.load %arg5[%c0_39, %c0_40] : memref<32x128xf32, #tpu.memory_space<vmem>>, vector<32x128xf32>
    %cst_41 = arith.constant dense<0.000000e+00> : vector<8x128xf32>
    %83 = tpu.matmul %39, %82, %cst_41 {dimension_numbers = #tpu.dot_dimension_numbers<[1], [0], [0], [1], [0, 0, 1, 1], [], []>} : vector<8x32xf32>, vector<32x128xf32>, vector<8x128xf32> -> vector<8x128xf32>
    %84 = arith.addf %81, %83 : vector<8x128xf32>
    %c0_42 = arith.constant 0 : index
    %c0_43 = arith.constant 0 : index
    %85 = vector.load %arg6[%c0_42, %c0_43] : memref<1x128xf32, #tpu.memory_space<vmem>>, vector<1x128xf32>
    %86 = vector.broadcast %85 : vector<1x128xf32> to vector<8x128xf32>
    %87 = arith.addf %84, %86 : vector<8x128xf32>
    %88 = vector.extract_strided_slice %87 {offsets = [0, 0], sizes = [8, 96], strides = [1, 1]} : vector<8x128xf32> to vector<8x96xf32>
    %89 = arith.negf %88 : vector<8x96xf32>
    %90 = math.exp %89 : vector<8x96xf32>
    %cst_44 = arith.constant 1.000000e+00 : f32
    %91 = vector.broadcast %cst_44 : f32 to vector<8x96xf32>
    %92 = arith.addf %91, %90 : vector<8x96xf32>
    %93 = arith.divf %91, %92 : vector<8x96xf32>
    %94 = vector.extract_strided_slice %87 {offsets = [0, 96], sizes = [8, 32], strides = [1, 1]} : vector<8x128xf32> to vector<8x32xf32>
    %95 = math.tanh %94 : vector<8x32xf32>
    %96 = vector.extract_strided_slice %93 {offsets = [0, 0], sizes = [8, 32], strides = [1, 1]} : vector<8x96xf32> to vector<8x32xf32>
    %97 = vector.extract_strided_slice %93 {offsets = [0, 32], sizes = [8, 32], strides = [1, 1]} : vector<8x96xf32> to vector<8x32xf32>
    %98 = vector.extract_strided_slice %93 {offsets = [0, 64], sizes = [8, 32], strides = [1, 1]} : vector<8x96xf32> to vector<8x32xf32>
    %99 = arith.mulf %97, %37 : vector<8x32xf32>
    %100 = arith.mulf %96, %95 : vector<8x32xf32>
    %101 = arith.addf %99, %100 : vector<8x32xf32>
    %102 = math.tanh %101 : vector<8x32xf32>
    %103 = arith.mulf %98, %102 : vector<8x32xf32>
    %c0_45 = arith.constant 0 : index
    %c0_46 = arith.constant 0 : index
    %104 = vector.load %arg7[%c0_45, %c0_46] : memref<32x128xf32, #tpu.memory_space<vmem>>, vector<32x128xf32>
    %cst_47 = arith.constant dense<0.000000e+00> : vector<8x128xf32>
    %105 = tpu.matmul %103, %104, %cst_47 {dimension_numbers = #tpu.dot_dimension_numbers<[1], [0], [0], [1], [0, 0, 1, 1], [], []>} : vector<8x32xf32>, vector<32x128xf32>, vector<8x128xf32> -> vector<8x128xf32>
    %c0_48 = arith.constant 0 : index
    %c0_49 = arith.constant 0 : index
    %106 = vector.load %arg8[%c0_48, %c0_49] : memref<32x128xf32, #tpu.memory_space<vmem>>, vector<32x128xf32>
    %cst_50 = arith.constant dense<0.000000e+00> : vector<8x128xf32>
    %107 = tpu.matmul %63, %106, %cst_50 {dimension_numbers = #tpu.dot_dimension_numbers<[1], [0], [0], [1], [0, 0, 1, 1], [], []>} : vector<8x32xf32>, vector<32x128xf32>, vector<8x128xf32> -> vector<8x128xf32>
    %108 = arith.addf %105, %107 : vector<8x128xf32>
    %c0_51 = arith.constant 0 : index
    %c0_52 = arith.constant 0 : index
    %109 = vector.load %arg9[%c0_51, %c0_52] : memref<1x128xf32, #tpu.memory_space<vmem>>, vector<1x128xf32>
    %110 = vector.broadcast %109 : vector<1x128xf32> to vector<8x128xf32>
    %111 = arith.addf %108, %110 : vector<8x128xf32>
    %112 = vector.extract_strided_slice %111 {offsets = [0, 0], sizes = [8, 96], strides = [1, 1]} : vector<8x128xf32> to vector<8x96xf32>
    %113 = arith.negf %112 : vector<8x96xf32>
    %114 = math.exp %113 : vector<8x96xf32>
    %cst_53 = arith.constant 1.000000e+00 : f32
    %115 = vector.broadcast %cst_53 : f32 to vector<8x96xf32>
    %116 = arith.addf %115, %114 : vector<8x96xf32>
    %117 = arith.divf %115, %116 : vector<8x96xf32>
    %118 = vector.extract_strided_slice %111 {offsets = [0, 96], sizes = [8, 32], strides = [1, 1]} : vector<8x128xf32> to vector<8x32xf32>
    %119 = math.tanh %118 : vector<8x32xf32>
    %120 = vector.extract_strided_slice %117 {offsets = [0, 0], sizes = [8, 32], strides = [1, 1]} : vector<8x96xf32> to vector<8x32xf32>
    %121 = vector.extract_strided_slice %117 {offsets = [0, 32], sizes = [8, 32], strides = [1, 1]} : vector<8x96xf32> to vector<8x32xf32>
    %122 = vector.extract_strided_slice %117 {offsets = [0, 64], sizes = [8, 32], strides = [1, 1]} : vector<8x96xf32> to vector<8x32xf32>
    %123 = arith.mulf %121, %61 : vector<8x32xf32>
    %124 = arith.mulf %120, %119 : vector<8x32xf32>
    %125 = arith.addf %123, %124 : vector<8x32xf32>
    %126 = math.tanh %125 : vector<8x32xf32>
    %127 = arith.mulf %122, %126 : vector<8x32xf32>
    %c0_54 = arith.constant 0 : index
    %c0_55 = arith.constant 0 : index
    %128 = vector.load %arg10[%c0_54, %c0_55] : memref<32x16xf32, #tpu.memory_space<vmem>>, vector<32x16xf32>
    %cst_56 = arith.constant dense<0.000000e+00> : vector<8x16xf32>
    %129 = tpu.matmul %127, %128, %cst_56 {dimension_numbers = #tpu.dot_dimension_numbers<[1], [0], [0], [1], [0, 0, 1, 1], [], []>} : vector<8x32xf32>, vector<32x16xf32>, vector<8x16xf32> -> vector<8x16xf32>
    %c0_57 = arith.constant 0 : index
    %c0_58 = arith.constant 0 : index
    %130 = vector.load %arg11[%c0_57, %c0_58] : memref<1x16xf32, #tpu.memory_space<vmem>>, vector<1x16xf32>
    %131 = vector.broadcast %130 : vector<1x16xf32> to vector<8x16xf32>
    %132 = arith.addf %129, %131 : vector<8x16xf32>
    %cst_59 = arith.constant dense<0xFF800000> : vector<8xf32>
    %133 = vector.multi_reduction <maximumf>, %132, %cst_59 [1] : vector<8x16xf32> to vector<8xf32>
    %134 = vector.shape_cast %133 : vector<8xf32> to vector<8x1xf32>
    %135 = vector.broadcast %134 : vector<8x1xf32> to vector<8x16xf32>
    %136 = arith.subf %132, %135 : vector<8x16xf32>
    %137 = math.exp %136 : vector<8x16xf32>
    %cst_60 = arith.constant dense<0.000000e+00> : vector<8xf32>
    %138 = vector.multi_reduction <add>, %137, %cst_60 [1] : vector<8x16xf32> to vector<8xf32>
    %139 = vector.shape_cast %138 : vector<8xf32> to vector<8x1xf32>
    %140 = vector.broadcast %139 : vector<8x1xf32> to vector<8x16xf32>
    %141 = arith.divf %137, %140 : vector<8x16xf32>
    %c0_61 = arith.constant 0 : index
    %c16 = arith.constant 16 : index
    %142 = vector.load %arg13[%c0_61, %c16] : memref<8x128xf32, #tpu.memory_space<vmem>>, vector<8x16xf32>
    tpu.vector_store %arg13[%c0_61, %c16], %132 {strides = array<i32>} : memref<8x128xf32, #tpu.memory_space<vmem>>, vector<8x16xf32>,
    %c0_62 = arith.constant 0 : index
    %c16_63 = arith.constant 16 : index
    %143 = vector.load %arg12[%c0_62, %c16_63] : memref<8x128xf32, #tpu.memory_space<vmem>>, vector<8x16xf32>
    tpu.vector_store %arg12[%c0_62, %c16_63], %141 {strides = array<i32>} : memref<8x128xf32, #tpu.memory_space<vmem>>, vector<8x16xf32>,
    %c0_64 = arith.constant 0 : index
    %c0_65 = arith.constant 0 : index
    %144 = vector.load %arg4[%c0_64, %c0_65] : memref<16x128xf32, #tpu.memory_space<vmem>>, vector<16x128xf32>
    %cst_66 = arith.constant dense<0.000000e+00> : vector<8x128xf32>
    %145 = tpu.matmul %141, %144, %cst_66 {dimension_numbers = #tpu.dot_dimension_numbers<[1], [0], [0], [1], [0, 0, 1, 1], [], []>} : vector<8x16xf32>, vector<16x128xf32>, vector<8x128xf32> -> vector<8x128xf32>
    %c0_67 = arith.constant 0 : index
    %c0_68 = arith.constant 0 : index
    %146 = vector.load %arg5[%c0_67, %c0_68] : memref<32x128xf32, #tpu.memory_space<vmem>>, vector<32x128xf32>
    %cst_69 = arith.constant dense<0.000000e+00> : vector<8x128xf32>
    %147 = tpu.matmul %103, %146, %cst_69 {dimension_numbers = #tpu.dot_dimension_numbers<[1], [0], [0], [1], [0, 0, 1, 1], [], []>} : vector<8x32xf32>, vector<32x128xf32>, vector<8x128xf32> -> vector<8x128xf32>
    %148 = arith.addf %145, %147 : vector<8x128xf32>
    %c0_70 = arith.constant 0 : index
    %c0_71 = arith.constant 0 : index
    %149 = vector.load %arg6[%c0_70, %c0_71] : memref<1x128xf32, #tpu.memory_space<vmem>>, vector<1x128xf32>
    %150 = vector.broadcast %149 : vector<1x128xf32> to vector<8x128xf32>
    %151 = arith.addf %148, %150 : vector<8x128xf32>
    %152 = vector.extract_strided_slice %151 {offsets = [0, 0], sizes = [8, 96], strides = [1, 1]} : vector<8x128xf32> to vector<8x96xf32>
    %153 = arith.negf %152 : vector<8x96xf32>
    %154 = math.exp %153 : vector<8x96xf32>
    %cst_72 = arith.constant 1.000000e+00 : f32
    %155 = vector.broadcast %cst_72 : f32 to vector<8x96xf32>
    %156 = arith.addf %155, %154 : vector<8x96xf32>
    %157 = arith.divf %155, %156 : vector<8x96xf32>
    %158 = vector.extract_strided_slice %151 {offsets = [0, 96], sizes = [8, 32], strides = [1, 1]} : vector<8x128xf32> to vector<8x32xf32>
    %159 = math.tanh %158 : vector<8x32xf32>
    %160 = vector.extract_strided_slice %157 {offsets = [0, 0], sizes = [8, 32], strides = [1, 1]} : vector<8x96xf32> to vector<8x32xf32>
    %161 = vector.extract_strided_slice %157 {offsets = [0, 32], sizes = [8, 32], strides = [1, 1]} : vector<8x96xf32> to vector<8x32xf32>
    %162 = vector.extract_strided_slice %157 {offsets = [0, 64], sizes = [8, 32], strides = [1, 1]} : vector<8x96xf32> to vector<8x32xf32>
    %163 = arith.mulf %161, %101 : vector<8x32xf32>
    %164 = arith.mulf %160, %159 : vector<8x32xf32>
    %165 = arith.addf %163, %164 : vector<8x32xf32>
    %166 = math.tanh %165 : vector<8x32xf32>
    %167 = arith.mulf %162, %166 : vector<8x32xf32>
    %c0_73 = arith.constant 0 : index
    %c0_74 = arith.constant 0 : index
    %168 = vector.load %arg7[%c0_73, %c0_74] : memref<32x128xf32, #tpu.memory_space<vmem>>, vector<32x128xf32>
    %cst_75 = arith.constant dense<0.000000e+00> : vector<8x128xf32>
    %169 = tpu.matmul %167, %168, %cst_75 {dimension_numbers = #tpu.dot_dimension_numbers<[1], [0], [0], [1], [0, 0, 1, 1], [], []>} : vector<8x32xf32>, vector<32x128xf32>, vector<8x128xf32> -> vector<8x128xf32>
    %c0_76 = arith.constant 0 : index
    %c0_77 = arith.constant 0 : index
    %170 = vector.load %arg8[%c0_76, %c0_77] : memref<32x128xf32, #tpu.memory_space<vmem>>, vector<32x128xf32>
    %cst_78 = arith.constant dense<0.000000e+00> : vector<8x128xf32>
    %171 = tpu.matmul %127, %170, %cst_78 {dimension_numbers = #tpu.dot_dimension_numbers<[1], [0], [0], [1], [0, 0, 1, 1], [], []>} : vector<8x32xf32>, vector<32x128xf32>, vector<8x128xf32> -> vector<8x128xf32>
    %172 = arith.addf %169, %171 : vector<8x128xf32>
    %c0_79 = arith.constant 0 : index
    %c0_80 = arith.constant 0 : index
    %173 = vector.load %arg9[%c0_79, %c0_80] : memref<1x128xf32, #tpu.memory_space<vmem>>, vector<1x128xf32>
    %174 = vector.broadcast %173 : vector<1x128xf32> to vector<8x128xf32>
    %175 = arith.addf %172, %174 : vector<8x128xf32>
    %176 = vector.extract_strided_slice %175 {offsets = [0, 0], sizes = [8, 96], strides = [1, 1]} : vector<8x128xf32> to vector<8x96xf32>
    %177 = arith.negf %176 : vector<8x96xf32>
    %178 = math.exp %177 : vector<8x96xf32>
    %cst_81 = arith.constant 1.000000e+00 : f32
    %179 = vector.broadcast %cst_81 : f32 to vector<8x96xf32>
    %180 = arith.addf %179, %178 : vector<8x96xf32>
    %181 = arith.divf %179, %180 : vector<8x96xf32>
    %182 = vector.extract_strided_slice %175 {offsets = [0, 96], sizes = [8, 32], strides = [1, 1]} : vector<8x128xf32> to vector<8x32xf32>
    %183 = math.tanh %182 : vector<8x32xf32>
    %184 = vector.extract_strided_slice %181 {offsets = [0, 0], sizes = [8, 32], strides = [1, 1]} : vector<8x96xf32> to vector<8x32xf32>
    %185 = vector.extract_strided_slice %181 {offsets = [0, 32], sizes = [8, 32], strides = [1, 1]} : vector<8x96xf32> to vector<8x32xf32>
    %186 = vector.extract_strided_slice %181 {offsets = [0, 64], sizes = [8, 32], strides = [1, 1]} : vector<8x96xf32> to vector<8x32xf32>
    %187 = arith.mulf %185, %125 : vector<8x32xf32>
    %188 = arith.mulf %184, %183 : vector<8x32xf32>
    %189 = arith.addf %187, %188 : vector<8x32xf32>
    %190 = math.tanh %189 : vector<8x32xf32>
    %191 = arith.mulf %186, %190 : vector<8x32xf32>
    %c0_82 = arith.constant 0 : index
    %c0_83 = arith.constant 0 : index
    %192 = vector.load %arg10[%c0_82, %c0_83] : memref<32x16xf32, #tpu.memory_space<vmem>>, vector<32x16xf32>
    %cst_84 = arith.constant dense<0.000000e+00> : vector<8x16xf32>
    %193 = tpu.matmul %191, %192, %cst_84 {dimension_numbers = #tpu.dot_dimension_numbers<[1], [0], [0], [1], [0, 0, 1, 1], [], []>} : vector<8x32xf32>, vector<32x16xf32>, vector<8x16xf32> -> vector<8x16xf32>
    %c0_85 = arith.constant 0 : index
    %c0_86 = arith.constant 0 : index
    %194 = vector.load %arg11[%c0_85, %c0_86] : memref<1x16xf32, #tpu.memory_space<vmem>>, vector<1x16xf32>
    %195 = vector.broadcast %194 : vector<1x16xf32> to vector<8x16xf32>
    %196 = arith.addf %193, %195 : vector<8x16xf32>
    %cst_87 = arith.constant dense<0xFF800000> : vector<8xf32>
    %197 = vector.multi_reduction <maximumf>, %196, %cst_87 [1] : vector<8x16xf32> to vector<8xf32>
    %198 = vector.shape_cast %197 : vector<8xf32> to vector<8x1xf32>
    %199 = vector.broadcast %198 : vector<8x1xf32> to vector<8x16xf32>
    %200 = arith.subf %196, %199 : vector<8x16xf32>
    %201 = math.exp %200 : vector<8x16xf32>
    %cst_88 = arith.constant dense<0.000000e+00> : vector<8xf32>
    %202 = vector.multi_reduction <add>, %201, %cst_88 [1] : vector<8x16xf32> to vector<8xf32>
    %203 = vector.shape_cast %202 : vector<8xf32> to vector<8x1xf32>
    %204 = vector.broadcast %203 : vector<8x1xf32> to vector<8x16xf32>
    %205 = arith.divf %201, %204 : vector<8x16xf32>
    %c0_89 = arith.constant 0 : index
    %c32 = arith.constant 32 : index
    %206 = vector.load %arg13[%c0_89, %c32] : memref<8x128xf32, #tpu.memory_space<vmem>>, vector<8x16xf32>
    tpu.vector_store %arg13[%c0_89, %c32], %196 {strides = array<i32>} : memref<8x128xf32, #tpu.memory_space<vmem>>, vector<8x16xf32>,
    %c0_90 = arith.constant 0 : index
    %c32_91 = arith.constant 32 : index
    %207 = vector.load %arg12[%c0_90, %c32_91] : memref<8x128xf32, #tpu.memory_space<vmem>>, vector<8x16xf32>
    tpu.vector_store %arg12[%c0_90, %c32_91], %205 {strides = array<i32>} : memref<8x128xf32, #tpu.memory_space<vmem>>, vector<8x16xf32>,
    %c0_92 = arith.constant 0 : index
    %c0_93 = arith.constant 0 : index
    %208 = vector.load %arg4[%c0_92, %c0_93] : memref<16x128xf32, #tpu.memory_space<vmem>>, vector<16x128xf32>
    %cst_94 = arith.constant dense<0.000000e+00> : vector<8x128xf32>
    %209 = tpu.matmul %205, %208, %cst_94 {dimension_numbers = #tpu.dot_dimension_numbers<[1], [0], [0], [1], [0, 0, 1, 1], [], []>} : vector<8x16xf32>, vector<16x128xf32>, vector<8x128xf32> -> vector<8x128xf32>
    %c0_95 = arith.constant 0 : index
    %c0_96 = arith.constant 0 : index
    %210 = vector.load %arg5[%c0_95, %c0_96] : memref<32x128xf32, #tpu.memory_space<vmem>>, vector<32x128xf32>
    %cst_97 = arith.constant dense<0.000000e+00> : vector<8x128xf32>
    %211 = tpu.matmul %167, %210, %cst_97 {dimension_numbers = #tpu.dot_dimension_numbers<[1], [0], [0], [1], [0, 0, 1, 1], [], []>} : vector<8x32xf32>, vector<32x128xf32>, vector<8x128xf32> -> vector<8x128xf32>
    %212 = arith.addf %209, %211 : vector<8x128xf32>
    %c0_98 = arith.constant 0 : index
    %c0_99 = arith.constant 0 : index
    %213 = vector.load %arg6[%c0_98, %c0_99] : memref<1x128xf32, #tpu.memory_space<vmem>>, vector<1x128xf32>
    %214 = vector.broadcast %213 : vector<1x128xf32> to vector<8x128xf32>
    %215 = arith.addf %212, %214 : vector<8x128xf32>
    %216 = vector.extract_strided_slice %215 {offsets = [0, 0], sizes = [8, 96], strides = [1, 1]} : vector<8x128xf32> to vector<8x96xf32>
    %217 = arith.negf %216 : vector<8x96xf32>
    %218 = math.exp %217 : vector<8x96xf32>
    %cst_100 = arith.constant 1.000000e+00 : f32
    %219 = vector.broadcast %cst_100 : f32 to vector<8x96xf32>
    %220 = arith.addf %219, %218 : vector<8x96xf32>
    %221 = arith.divf %219, %220 : vector<8x96xf32>
    %222 = vector.extract_strided_slice %215 {offsets = [0, 96], sizes = [8, 32], strides = [1, 1]} : vector<8x128xf32> to vector<8x32xf32>
    %223 = math.tanh %222 : vector<8x32xf32>
    %224 = vector.extract_strided_slice %221 {offsets = [0, 0], sizes = [8, 32], strides = [1, 1]} : vector<8x96xf32> to vector<8x32xf32>
    %225 = vector.extract_strided_slice %221 {offsets = [0, 32], sizes = [8, 32], strides = [1, 1]} : vector<8x96xf32> to vector<8x32xf32>
    %226 = vector.extract_strided_slice %221 {offsets = [0, 64], sizes = [8, 32], strides = [1, 1]} : vector<8x96xf32> to vector<8x32xf32>
    %227 = arith.mulf %225, %165 : vector<8x32xf32>
    %228 = arith.mulf %224, %223 : vector<8x32xf32>
    %229 = arith.addf %227, %228 : vector<8x32xf32>
    %230 = math.tanh %229 : vector<8x32xf32>
    %231 = arith.mulf %226, %230 : vector<8x32xf32>
    %c0_101 = arith.constant 0 : index
    %c0_102 = arith.constant 0 : index
    %232 = vector.load %arg7[%c0_101, %c0_102] : memref<32x128xf32, #tpu.memory_space<vmem>>, vector<32x128xf32>
    %cst_103 = arith.constant dense<0.000000e+00> : vector<8x128xf32>
    %233 = tpu.matmul %231, %232, %cst_103 {dimension_numbers = #tpu.dot_dimension_numbers<[1], [0], [0], [1], [0, 0, 1, 1], [], []>} : vector<8x32xf32>, vector<32x128xf32>, vector<8x128xf32> -> vector<8x128xf32>
    %c0_104 = arith.constant 0 : index
    %c0_105 = arith.constant 0 : index
    %234 = vector.load %arg8[%c0_104, %c0_105] : memref<32x128xf32, #tpu.memory_space<vmem>>, vector<32x128xf32>
    %cst_106 = arith.constant dense<0.000000e+00> : vector<8x128xf32>
    %235 = tpu.matmul %191, %234, %cst_106 {dimension_numbers = #tpu.dot_dimension_numbers<[1], [0], [0], [1], [0, 0, 1, 1], [], []>} : vector<8x32xf32>, vector<32x128xf32>, vector<8x128xf32> -> vector<8x128xf32>
    %236 = arith.addf %233, %235 : vector<8x128xf32>
    %c0_107 = arith.constant 0 : index
    %c0_108 = arith.constant 0 : index
    %237 = vector.load %arg9[%c0_107, %c0_108] : memref<1x128xf32, #tpu.memory_space<vmem>>, vector<1x128xf32>
    %238 = vector.broadcast %237 : vector<1x128xf32> to vector<8x128xf32>
    %239 = arith.addf %236, %238 : vector<8x128xf32>
    %240 = vector.extract_strided_slice %239 {offsets = [0, 0], sizes = [8, 96], strides = [1, 1]} : vector<8x128xf32> to vector<8x96xf32>
    %241 = arith.negf %240 : vector<8x96xf32>
    %242 = math.exp %241 : vector<8x96xf32>
    %cst_109 = arith.constant 1.000000e+00 : f32
    %243 = vector.broadcast %cst_109 : f32 to vector<8x96xf32>
    %244 = arith.addf %243, %242 : vector<8x96xf32>
    %245 = arith.divf %243, %244 : vector<8x96xf32>
    %246 = vector.extract_strided_slice %239 {offsets = [0, 96], sizes = [8, 32], strides = [1, 1]} : vector<8x128xf32> to vector<8x32xf32>
    %247 = math.tanh %246 : vector<8x32xf32>
    %248 = vector.extract_strided_slice %245 {offsets = [0, 0], sizes = [8, 32], strides = [1, 1]} : vector<8x96xf32> to vector<8x32xf32>
    %249 = vector.extract_strided_slice %245 {offsets = [0, 32], sizes = [8, 32], strides = [1, 1]} : vector<8x96xf32> to vector<8x32xf32>
    %250 = vector.extract_strided_slice %245 {offsets = [0, 64], sizes = [8, 32], strides = [1, 1]} : vector<8x96xf32> to vector<8x32xf32>
    %251 = arith.mulf %249, %189 : vector<8x32xf32>
    %252 = arith.mulf %248, %247 : vector<8x32xf32>
    %253 = arith.addf %251, %252 : vector<8x32xf32>
    %254 = math.tanh %253 : vector<8x32xf32>
    %255 = arith.mulf %250, %254 : vector<8x32xf32>
    %c0_110 = arith.constant 0 : index
    %c0_111 = arith.constant 0 : index
    %256 = vector.load %arg10[%c0_110, %c0_111] : memref<32x16xf32, #tpu.memory_space<vmem>>, vector<32x16xf32>
    %cst_112 = arith.constant dense<0.000000e+00> : vector<8x16xf32>
    %257 = tpu.matmul %255, %256, %cst_112 {dimension_numbers = #tpu.dot_dimension_numbers<[1], [0], [0], [1], [0, 0, 1, 1], [], []>} : vector<8x32xf32>, vector<32x16xf32>, vector<8x16xf32> -> vector<8x16xf32>
    %c0_113 = arith.constant 0 : index
    %c0_114 = arith.constant 0 : index
    %258 = vector.load %arg11[%c0_113, %c0_114] : memref<1x16xf32, #tpu.memory_space<vmem>>, vector<1x16xf32>
    %259 = vector.broadcast %258 : vector<1x16xf32> to vector<8x16xf32>
    %260 = arith.addf %257, %259 : vector<8x16xf32>
    %cst_115 = arith.constant dense<0xFF800000> : vector<8xf32>
    %261 = vector.multi_reduction <maximumf>, %260, %cst_115 [1] : vector<8x16xf32> to vector<8xf32>
    %262 = vector.shape_cast %261 : vector<8xf32> to vector<8x1xf32>
    %263 = vector.broadcast %262 : vector<8x1xf32> to vector<8x16xf32>
    %264 = arith.subf %260, %263 : vector<8x16xf32>
    %265 = math.exp %264 : vector<8x16xf32>
    %cst_116 = arith.constant dense<0.000000e+00> : vector<8xf32>
    %266 = vector.multi_reduction <add>, %265, %cst_116 [1] : vector<8x16xf32> to vector<8xf32>
    %267 = vector.shape_cast %266 : vector<8xf32> to vector<8x1xf32>
    %268 = vector.broadcast %267 : vector<8x1xf32> to vector<8x16xf32>
    %269 = arith.divf %265, %268 : vector<8x16xf32>
    %c0_117 = arith.constant 0 : index
    %c48 = arith.constant 48 : index
    %270 = vector.load %arg13[%c0_117, %c48] : memref<8x128xf32, #tpu.memory_space<vmem>>, vector<8x16xf32>
    tpu.vector_store %arg13[%c0_117, %c48], %260 {strides = array<i32>} : memref<8x128xf32, #tpu.memory_space<vmem>>, vector<8x16xf32>,
    %c0_118 = arith.constant 0 : index
    %c48_119 = arith.constant 48 : index
    %271 = vector.load %arg12[%c0_118, %c48_119] : memref<8x128xf32, #tpu.memory_space<vmem>>, vector<8x16xf32>
    tpu.vector_store %arg12[%c0_118, %c48_119], %269 {strides = array<i32>} : memref<8x128xf32, #tpu.memory_space<vmem>>, vector<8x16xf32>,
    %c0_120 = arith.constant 0 : index
    %c0_121 = arith.constant 0 : index
    %272 = vector.load %arg4[%c0_120, %c0_121] : memref<16x128xf32, #tpu.memory_space<vmem>>, vector<16x128xf32>
    %cst_122 = arith.constant dense<0.000000e+00> : vector<8x128xf32>
    %273 = tpu.matmul %269, %272, %cst_122 {dimension_numbers = #tpu.dot_dimension_numbers<[1], [0], [0], [1], [0, 0, 1, 1], [], []>} : vector<8x16xf32>, vector<16x128xf32>, vector<8x128xf32> -> vector<8x128xf32>
    %c0_123 = arith.constant 0 : index
    %c0_124 = arith.constant 0 : index
    %274 = vector.load %arg5[%c0_123, %c0_124] : memref<32x128xf32, #tpu.memory_space<vmem>>, vector<32x128xf32>
    %cst_125 = arith.constant dense<0.000000e+00> : vector<8x128xf32>
    %275 = tpu.matmul %231, %274, %cst_125 {dimension_numbers = #tpu.dot_dimension_numbers<[1], [0], [0], [1], [0, 0, 1, 1], [], []>} : vector<8x32xf32>, vector<32x128xf32>, vector<8x128xf32> -> vector<8x128xf32>
    %276 = arith.addf %273, %275 : vector<8x128xf32>
    %c0_126 = arith.constant 0 : index
    %c0_127 = arith.constant 0 : index
    %277 = vector.load %arg6[%c0_126, %c0_127] : memref<1x128xf32, #tpu.memory_space<vmem>>, vector<1x128xf32>
    %278 = vector.broadcast %277 : vector<1x128xf32> to vector<8x128xf32>
    %279 = arith.addf %276, %278 : vector<8x128xf32>
    %280 = vector.extract_strided_slice %279 {offsets = [0, 0], sizes = [8, 96], strides = [1, 1]} : vector<8x128xf32> to vector<8x96xf32>
    %281 = arith.negf %280 : vector<8x96xf32>
    %282 = math.exp %281 : vector<8x96xf32>
    %cst_128 = arith.constant 1.000000e+00 : f32
    %283 = vector.broadcast %cst_128 : f32 to vector<8x96xf32>
    %284 = arith.addf %283, %282 : vector<8x96xf32>
    %285 = arith.divf %283, %284 : vector<8x96xf32>
    %286 = vector.extract_strided_slice %279 {offsets = [0, 96], sizes = [8, 32], strides = [1, 1]} : vector<8x128xf32> to vector<8x32xf32>
    %287 = math.tanh %286 : vector<8x32xf32>
    %288 = vector.extract_strided_slice %285 {offsets = [0, 0], sizes = [8, 32], strides = [1, 1]} : vector<8x96xf32> to vector<8x32xf32>
    %289 = vector.extract_strided_slice %285 {offsets = [0, 32], sizes = [8, 32], strides = [1, 1]} : vector<8x96xf32> to vector<8x32xf32>
    %290 = vector.extract_strided_slice %285 {offsets = [0, 64], sizes = [8, 32], strides = [1, 1]} : vector<8x96xf32> to vector<8x32xf32>
    %291 = arith.mulf %289, %229 : vector<8x32xf32>
    %292 = arith.mulf %288, %287 : vector<8x32xf32>
    %293 = arith.addf %291, %292 : vector<8x32xf32>
    %294 = math.tanh %293 : vector<8x32xf32>
    %295 = arith.mulf %290, %294 : vector<8x32xf32>
    %c0_129 = arith.constant 0 : index
    %c0_130 = arith.constant 0 : index
    %296 = vector.load %arg7[%c0_129, %c0_130] : memref<32x128xf32, #tpu.memory_space<vmem>>, vector<32x128xf32>
    %cst_131 = arith.constant dense<0.000000e+00> : vector<8x128xf32>
    %297 = tpu.matmul %295, %296, %cst_131 {dimension_numbers = #tpu.dot_dimension_numbers<[1], [0], [0], [1], [0, 0, 1, 1], [], []>} : vector<8x32xf32>, vector<32x128xf32>, vector<8x128xf32> -> vector<8x128xf32>
    %c0_132 = arith.constant 0 : index
    %c0_133 = arith.constant 0 : index
    %298 = vector.load %arg8[%c0_132, %c0_133] : memref<32x128xf32, #tpu.memory_space<vmem>>, vector<32x128xf32>
    %cst_134 = arith.constant dense<0.000000e+00> : vector<8x128xf32>
    %299 = tpu.matmul %255, %298, %cst_134 {dimension_numbers = #tpu.dot_dimension_numbers<[1], [0], [0], [1], [0, 0, 1, 1], [], []>} : vector<8x32xf32>, vector<32x128xf32>, vector<8x128xf32> -> vector<8x128xf32>
    %300 = arith.addf %297, %299 : vector<8x128xf32>
    %c0_135 = arith.constant 0 : index
    %c0_136 = arith.constant 0 : index
    %301 = vector.load %arg9[%c0_135, %c0_136] : memref<1x128xf32, #tpu.memory_space<vmem>>, vector<1x128xf32>
    %302 = vector.broadcast %301 : vector<1x128xf32> to vector<8x128xf32>
    %303 = arith.addf %300, %302 : vector<8x128xf32>
    %304 = vector.extract_strided_slice %303 {offsets = [0, 0], sizes = [8, 96], strides = [1, 1]} : vector<8x128xf32> to vector<8x96xf32>
    %305 = arith.negf %304 : vector<8x96xf32>
    %306 = math.exp %305 : vector<8x96xf32>
    %cst_137 = arith.constant 1.000000e+00 : f32
    %307 = vector.broadcast %cst_137 : f32 to vector<8x96xf32>
    %308 = arith.addf %307, %306 : vector<8x96xf32>
    %309 = arith.divf %307, %308 : vector<8x96xf32>
    %310 = vector.extract_strided_slice %303 {offsets = [0, 96], sizes = [8, 32], strides = [1, 1]} : vector<8x128xf32> to vector<8x32xf32>
    %311 = math.tanh %310 : vector<8x32xf32>
    %312 = vector.extract_strided_slice %309 {offsets = [0, 0], sizes = [8, 32], strides = [1, 1]} : vector<8x96xf32> to vector<8x32xf32>
    %313 = vector.extract_strided_slice %309 {offsets = [0, 32], sizes = [8, 32], strides = [1, 1]} : vector<8x96xf32> to vector<8x32xf32>
    %314 = vector.extract_strided_slice %309 {offsets = [0, 64], sizes = [8, 32], strides = [1, 1]} : vector<8x96xf32> to vector<8x32xf32>
    %315 = arith.mulf %313, %253 : vector<8x32xf32>
    %316 = arith.mulf %312, %311 : vector<8x32xf32>
    %317 = arith.addf %315, %316 : vector<8x32xf32>
    %318 = math.tanh %317 : vector<8x32xf32>
    %319 = arith.mulf %314, %318 : vector<8x32xf32>
    %c0_138 = arith.constant 0 : index
    %c0_139 = arith.constant 0 : index
    %320 = vector.load %arg10[%c0_138, %c0_139] : memref<32x16xf32, #tpu.memory_space<vmem>>, vector<32x16xf32>
    %cst_140 = arith.constant dense<0.000000e+00> : vector<8x16xf32>
    %321 = tpu.matmul %319, %320, %cst_140 {dimension_numbers = #tpu.dot_dimension_numbers<[1], [0], [0], [1], [0, 0, 1, 1], [], []>} : vector<8x32xf32>, vector<32x16xf32>, vector<8x16xf32> -> vector<8x16xf32>
    %c0_141 = arith.constant 0 : index
    %c0_142 = arith.constant 0 : index
    %322 = vector.load %arg11[%c0_141, %c0_142] : memref<1x16xf32, #tpu.memory_space<vmem>>, vector<1x16xf32>
    %323 = vector.broadcast %322 : vector<1x16xf32> to vector<8x16xf32>
    %324 = arith.addf %321, %323 : vector<8x16xf32>
    %cst_143 = arith.constant dense<0xFF800000> : vector<8xf32>
    %325 = vector.multi_reduction <maximumf>, %324, %cst_143 [1] : vector<8x16xf32> to vector<8xf32>
    %326 = vector.shape_cast %325 : vector<8xf32> to vector<8x1xf32>
    %327 = vector.broadcast %326 : vector<8x1xf32> to vector<8x16xf32>
    %328 = arith.subf %324, %327 : vector<8x16xf32>
    %329 = math.exp %328 : vector<8x16xf32>
    %cst_144 = arith.constant dense<0.000000e+00> : vector<8xf32>
    %330 = vector.multi_reduction <add>, %329, %cst_144 [1] : vector<8x16xf32> to vector<8xf32>
    %331 = vector.shape_cast %330 : vector<8xf32> to vector<8x1xf32>
    %332 = vector.broadcast %331 : vector<8x1xf32> to vector<8x16xf32>
    %333 = arith.divf %329, %332 : vector<8x16xf32>
    %c0_145 = arith.constant 0 : index
    %c64 = arith.constant 64 : index
    %334 = vector.load %arg13[%c0_145, %c64] : memref<8x128xf32, #tpu.memory_space<vmem>>, vector<8x16xf32>
    tpu.vector_store %arg13[%c0_145, %c64], %324 {strides = array<i32>} : memref<8x128xf32, #tpu.memory_space<vmem>>, vector<8x16xf32>,
    %c0_146 = arith.constant 0 : index
    %c64_147 = arith.constant 64 : index
    %335 = vector.load %arg12[%c0_146, %c64_147] : memref<8x128xf32, #tpu.memory_space<vmem>>, vector<8x16xf32>
    tpu.vector_store %arg12[%c0_146, %c64_147], %333 {strides = array<i32>} : memref<8x128xf32, #tpu.memory_space<vmem>>, vector<8x16xf32>,
    %c0_148 = arith.constant 0 : index
    %c0_149 = arith.constant 0 : index
    %336 = vector.load %arg4[%c0_148, %c0_149] : memref<16x128xf32, #tpu.memory_space<vmem>>, vector<16x128xf32>
    %cst_150 = arith.constant dense<0.000000e+00> : vector<8x128xf32>
    %337 = tpu.matmul %333, %336, %cst_150 {dimension_numbers = #tpu.dot_dimension_numbers<[1], [0], [0], [1], [0, 0, 1, 1], [], []>} : vector<8x16xf32>, vector<16x128xf32>, vector<8x128xf32> -> vector<8x128xf32>
    %c0_151 = arith.constant 0 : index
    %c0_152 = arith.constant 0 : index
    %338 = vector.load %arg5[%c0_151, %c0_152] : memref<32x128xf32, #tpu.memory_space<vmem>>, vector<32x128xf32>
    %cst_153 = arith.constant dense<0.000000e+00> : vector<8x128xf32>
    %339 = tpu.matmul %295, %338, %cst_153 {dimension_numbers = #tpu.dot_dimension_numbers<[1], [0], [0], [1], [0, 0, 1, 1], [], []>} : vector<8x32xf32>, vector<32x128xf32>, vector<8x128xf32> -> vector<8x128xf32>
    %340 = arith.addf %337, %339 : vector<8x128xf32>
    %c0_154 = arith.constant 0 : index
    %c0_155 = arith.constant 0 : index
    %341 = vector.load %arg6[%c0_154, %c0_155] : memref<1x128xf32, #tpu.memory_space<vmem>>, vector<1x128xf32>
    %342 = vector.broadcast %341 : vector<1x128xf32> to vector<8x128xf32>
    %343 = arith.addf %340, %342 : vector<8x128xf32>
    %344 = vector.extract_strided_slice %343 {offsets = [0, 0], sizes = [8, 96], strides = [1, 1]} : vector<8x128xf32> to vector<8x96xf32>
    %345 = arith.negf %344 : vector<8x96xf32>
    %346 = math.exp %345 : vector<8x96xf32>
    %cst_156 = arith.constant 1.000000e+00 : f32
    %347 = vector.broadcast %cst_156 : f32 to vector<8x96xf32>
    %348 = arith.addf %347, %346 : vector<8x96xf32>
    %349 = arith.divf %347, %348 : vector<8x96xf32>
    %350 = vector.extract_strided_slice %343 {offsets = [0, 96], sizes = [8, 32], strides = [1, 1]} : vector<8x128xf32> to vector<8x32xf32>
    %351 = math.tanh %350 : vector<8x32xf32>
    %352 = vector.extract_strided_slice %349 {offsets = [0, 0], sizes = [8, 32], strides = [1, 1]} : vector<8x96xf32> to vector<8x32xf32>
    %353 = vector.extract_strided_slice %349 {offsets = [0, 32], sizes = [8, 32], strides = [1, 1]} : vector<8x96xf32> to vector<8x32xf32>
    %354 = vector.extract_strided_slice %349 {offsets = [0, 64], sizes = [8, 32], strides = [1, 1]} : vector<8x96xf32> to vector<8x32xf32>
    %355 = arith.mulf %353, %293 : vector<8x32xf32>
    %356 = arith.mulf %352, %351 : vector<8x32xf32>
    %357 = arith.addf %355, %356 : vector<8x32xf32>
    %358 = math.tanh %357 : vector<8x32xf32>
    %359 = arith.mulf %354, %358 : vector<8x32xf32>
    %c0_157 = arith.constant 0 : index
    %c0_158 = arith.constant 0 : index
    %360 = vector.load %arg7[%c0_157, %c0_158] : memref<32x128xf32, #tpu.memory_space<vmem>>, vector<32x128xf32>
    %cst_159 = arith.constant dense<0.000000e+00> : vector<8x128xf32>
    %361 = tpu.matmul %359, %360, %cst_159 {dimension_numbers = #tpu.dot_dimension_numbers<[1], [0], [0], [1], [0, 0, 1, 1], [], []>} : vector<8x32xf32>, vector<32x128xf32>, vector<8x128xf32> -> vector<8x128xf32>
    %c0_160 = arith.constant 0 : index
    %c0_161 = arith.constant 0 : index
    %362 = vector.load %arg8[%c0_160, %c0_161] : memref<32x128xf32, #tpu.memory_space<vmem>>, vector<32x128xf32>
    %cst_162 = arith.constant dense<0.000000e+00> : vector<8x128xf32>
    %363 = tpu.matmul %319, %362, %cst_162 {dimension_numbers = #tpu.dot_dimension_numbers<[1], [0], [0], [1], [0, 0, 1, 1], [], []>} : vector<8x32xf32>, vector<32x128xf32>, vector<8x128xf32> -> vector<8x128xf32>
    %364 = arith.addf %361, %363 : vector<8x128xf32>
    %c0_163 = arith.constant 0 : index
    %c0_164 = arith.constant 0 : index
    %365 = vector.load %arg9[%c0_163, %c0_164] : memref<1x128xf32, #tpu.memory_space<vmem>>, vector<1x128xf32>
    %366 = vector.broadcast %365 : vector<1x128xf32> to vector<8x128xf32>
    %367 = arith.addf %364, %366 : vector<8x128xf32>
    %368 = vector.extract_strided_slice %367 {offsets = [0, 0], sizes = [8, 96], strides = [1, 1]} : vector<8x128xf32> to vector<8x96xf32>
    %369 = arith.negf %368 : vector<8x96xf32>
    %370 = math.exp %369 : vector<8x96xf32>
    %cst_165 = arith.constant 1.000000e+00 : f32
    %371 = vector.broadcast %cst_165 : f32 to vector<8x96xf32>
    %372 = arith.addf %371, %370 : vector<8x96xf32>
    %373 = arith.divf %371, %372 : vector<8x96xf32>
    %374 = vector.extract_strided_slice %367 {offsets = [0, 96], sizes = [8, 32], strides = [1, 1]} : vector<8x128xf32> to vector<8x32xf32>
    %375 = math.tanh %374 : vector<8x32xf32>
    %376 = vector.extract_strided_slice %373 {offsets = [0, 0], sizes = [8, 32], strides = [1, 1]} : vector<8x96xf32> to vector<8x32xf32>
    %377 = vector.extract_strided_slice %373 {offsets = [0, 32], sizes = [8, 32], strides = [1, 1]} : vector<8x96xf32> to vector<8x32xf32>
    %378 = vector.extract_strided_slice %373 {offsets = [0, 64], sizes = [8, 32], strides = [1, 1]} : vector<8x96xf32> to vector<8x32xf32>
    %379 = arith.mulf %377, %317 : vector<8x32xf32>
    %380 = arith.mulf %376, %375 : vector<8x32xf32>
    %381 = arith.addf %379, %380 : vector<8x32xf32>
    %382 = math.tanh %381 : vector<8x32xf32>
    %383 = arith.mulf %378, %382 : vector<8x32xf32>
    %c0_166 = arith.constant 0 : index
    %c0_167 = arith.constant 0 : index
    %384 = vector.load %arg10[%c0_166, %c0_167] : memref<32x16xf32, #tpu.memory_space<vmem>>, vector<32x16xf32>
    %cst_168 = arith.constant dense<0.000000e+00> : vector<8x16xf32>
    %385 = tpu.matmul %383, %384, %cst_168 {dimension_numbers = #tpu.dot_dimension_numbers<[1], [0], [0], [1], [0, 0, 1, 1], [], []>} : vector<8x32xf32>, vector<32x16xf32>, vector<8x16xf32> -> vector<8x16xf32>
    %c0_169 = arith.constant 0 : index
    %c0_170 = arith.constant 0 : index
    %386 = vector.load %arg11[%c0_169, %c0_170] : memref<1x16xf32, #tpu.memory_space<vmem>>, vector<1x16xf32>
    %387 = vector.broadcast %386 : vector<1x16xf32> to vector<8x16xf32>
    %388 = arith.addf %385, %387 : vector<8x16xf32>
    %cst_171 = arith.constant dense<0xFF800000> : vector<8xf32>
    %389 = vector.multi_reduction <maximumf>, %388, %cst_171 [1] : vector<8x16xf32> to vector<8xf32>
    %390 = vector.shape_cast %389 : vector<8xf32> to vector<8x1xf32>
    %391 = vector.broadcast %390 : vector<8x1xf32> to vector<8x16xf32>
    %392 = arith.subf %388, %391 : vector<8x16xf32>
    %393 = math.exp %392 : vector<8x16xf32>
    %cst_172 = arith.constant dense<0.000000e+00> : vector<8xf32>
    %394 = vector.multi_reduction <add>, %393, %cst_172 [1] : vector<8x16xf32> to vector<8xf32>
    %395 = vector.shape_cast %394 : vector<8xf32> to vector<8x1xf32>
    %396 = vector.broadcast %395 : vector<8x1xf32> to vector<8x16xf32>
    %397 = arith.divf %393, %396 : vector<8x16xf32>
    %c0_173 = arith.constant 0 : index
    %c80 = arith.constant 80 : index
    %398 = vector.load %arg13[%c0_173, %c80] : memref<8x128xf32, #tpu.memory_space<vmem>>, vector<8x16xf32>
    tpu.vector_store %arg13[%c0_173, %c80], %388 {strides = array<i32>} : memref<8x128xf32, #tpu.memory_space<vmem>>, vector<8x16xf32>,
    %c0_174 = arith.constant 0 : index
    %c80_175 = arith.constant 80 : index
    %399 = vector.load %arg12[%c0_174, %c80_175] : memref<8x128xf32, #tpu.memory_space<vmem>>, vector<8x16xf32>
    tpu.vector_store %arg12[%c0_174, %c80_175], %397 {strides = array<i32>} : memref<8x128xf32, #tpu.memory_space<vmem>>, vector<8x16xf32>,
    %c0_176 = arith.constant 0 : index
    %c0_177 = arith.constant 0 : index
    %400 = vector.load %arg4[%c0_176, %c0_177] : memref<16x128xf32, #tpu.memory_space<vmem>>, vector<16x128xf32>
    %cst_178 = arith.constant dense<0.000000e+00> : vector<8x128xf32>
    %401 = tpu.matmul %397, %400, %cst_178 {dimension_numbers = #tpu.dot_dimension_numbers<[1], [0], [0], [1], [0, 0, 1, 1], [], []>} : vector<8x16xf32>, vector<16x128xf32>, vector<8x128xf32> -> vector<8x128xf32>
    %c0_179 = arith.constant 0 : index
    %c0_180 = arith.constant 0 : index
    %402 = vector.load %arg5[%c0_179, %c0_180] : memref<32x128xf32, #tpu.memory_space<vmem>>, vector<32x128xf32>
    %cst_181 = arith.constant dense<0.000000e+00> : vector<8x128xf32>
    %403 = tpu.matmul %359, %402, %cst_181 {dimension_numbers = #tpu.dot_dimension_numbers<[1], [0], [0], [1], [0, 0, 1, 1], [], []>} : vector<8x32xf32>, vector<32x128xf32>, vector<8x128xf32> -> vector<8x128xf32>
    %404 = arith.addf %401, %403 : vector<8x128xf32>
    %c0_182 = arith.constant 0 : index
    %c0_183 = arith.constant 0 : index
    %405 = vector.load %arg6[%c0_182, %c0_183] : memref<1x128xf32, #tpu.memory_space<vmem>>, vector<1x128xf32>
    %406 = vector.broadcast %405 : vector<1x128xf32> to vector<8x128xf32>
    %407 = arith.addf %404, %406 : vector<8x128xf32>
    %408 = vector.extract_strided_slice %407 {offsets = [0, 0], sizes = [8, 96], strides = [1, 1]} : vector<8x128xf32> to vector<8x96xf32>
    %409 = arith.negf %408 : vector<8x96xf32>
    %410 = math.exp %409 : vector<8x96xf32>
    %cst_184 = arith.constant 1.000000e+00 : f32
    %411 = vector.broadcast %cst_184 : f32 to vector<8x96xf32>
    %412 = arith.addf %411, %410 : vector<8x96xf32>
    %413 = arith.divf %411, %412 : vector<8x96xf32>
    %414 = vector.extract_strided_slice %407 {offsets = [0, 96], sizes = [8, 32], strides = [1, 1]} : vector<8x128xf32> to vector<8x32xf32>
    %415 = math.tanh %414 : vector<8x32xf32>
    %416 = vector.extract_strided_slice %413 {offsets = [0, 0], sizes = [8, 32], strides = [1, 1]} : vector<8x96xf32> to vector<8x32xf32>
    %417 = vector.extract_strided_slice %413 {offsets = [0, 32], sizes = [8, 32], strides = [1, 1]} : vector<8x96xf32> to vector<8x32xf32>
    %418 = vector.extract_strided_slice %413 {offsets = [0, 64], sizes = [8, 32], strides = [1, 1]} : vector<8x96xf32> to vector<8x32xf32>
    %419 = arith.mulf %417, %357 : vector<8x32xf32>
    %420 = arith.mulf %416, %415 : vector<8x32xf32>
    %421 = arith.addf %419, %420 : vector<8x32xf32>
    %422 = math.tanh %421 : vector<8x32xf32>
    %423 = arith.mulf %418, %422 : vector<8x32xf32>
    %c0_185 = arith.constant 0 : index
    %c0_186 = arith.constant 0 : index
    %424 = vector.load %arg7[%c0_185, %c0_186] : memref<32x128xf32, #tpu.memory_space<vmem>>, vector<32x128xf32>
    %cst_187 = arith.constant dense<0.000000e+00> : vector<8x128xf32>
    %425 = tpu.matmul %423, %424, %cst_187 {dimension_numbers = #tpu.dot_dimension_numbers<[1], [0], [0], [1], [0, 0, 1, 1], [], []>} : vector<8x32xf32>, vector<32x128xf32>, vector<8x128xf32> -> vector<8x128xf32>
    %c0_188 = arith.constant 0 : index
    %c0_189 = arith.constant 0 : index
    %426 = vector.load %arg8[%c0_188, %c0_189] : memref<32x128xf32, #tpu.memory_space<vmem>>, vector<32x128xf32>
    %cst_190 = arith.constant dense<0.000000e+00> : vector<8x128xf32>
    %427 = tpu.matmul %383, %426, %cst_190 {dimension_numbers = #tpu.dot_dimension_numbers<[1], [0], [0], [1], [0, 0, 1, 1], [], []>} : vector<8x32xf32>, vector<32x128xf32>, vector<8x128xf32> -> vector<8x128xf32>
    %428 = arith.addf %425, %427 : vector<8x128xf32>
    %c0_191 = arith.constant 0 : index
    %c0_192 = arith.constant 0 : index
    %429 = vector.load %arg9[%c0_191, %c0_192] : memref<1x128xf32, #tpu.memory_space<vmem>>, vector<1x128xf32>
    %430 = vector.broadcast %429 : vector<1x128xf32> to vector<8x128xf32>
    %431 = arith.addf %428, %430 : vector<8x128xf32>
    %432 = vector.extract_strided_slice %431 {offsets = [0, 0], sizes = [8, 96], strides = [1, 1]} : vector<8x128xf32> to vector<8x96xf32>
    %433 = arith.negf %432 : vector<8x96xf32>
    %434 = math.exp %433 : vector<8x96xf32>
    %cst_193 = arith.constant 1.000000e+00 : f32
    %435 = vector.broadcast %cst_193 : f32 to vector<8x96xf32>
    %436 = arith.addf %435, %434 : vector<8x96xf32>
    %437 = arith.divf %435, %436 : vector<8x96xf32>
    %438 = vector.extract_strided_slice %431 {offsets = [0, 96], sizes = [8, 32], strides = [1, 1]} : vector<8x128xf32> to vector<8x32xf32>
    %439 = math.tanh %438 : vector<8x32xf32>
    %440 = vector.extract_strided_slice %437 {offsets = [0, 0], sizes = [8, 32], strides = [1, 1]} : vector<8x96xf32> to vector<8x32xf32>
    %441 = vector.extract_strided_slice %437 {offsets = [0, 32], sizes = [8, 32], strides = [1, 1]} : vector<8x96xf32> to vector<8x32xf32>
    %442 = vector.extract_strided_slice %437 {offsets = [0, 64], sizes = [8, 32], strides = [1, 1]} : vector<8x96xf32> to vector<8x32xf32>
    %443 = arith.mulf %441, %381 : vector<8x32xf32>
    %444 = arith.mulf %440, %439 : vector<8x32xf32>
    %445 = arith.addf %443, %444 : vector<8x32xf32>
    %446 = math.tanh %445 : vector<8x32xf32>
    %447 = arith.mulf %442, %446 : vector<8x32xf32>
    %c0_194 = arith.constant 0 : index
    %c0_195 = arith.constant 0 : index
    %448 = vector.load %arg10[%c0_194, %c0_195] : memref<32x16xf32, #tpu.memory_space<vmem>>, vector<32x16xf32>
    %cst_196 = arith.constant dense<0.000000e+00> : vector<8x16xf32>
    %449 = tpu.matmul %447, %448, %cst_196 {dimension_numbers = #tpu.dot_dimension_numbers<[1], [0], [0], [1], [0, 0, 1, 1], [], []>} : vector<8x32xf32>, vector<32x16xf32>, vector<8x16xf32> -> vector<8x16xf32>
    %c0_197 = arith.constant 0 : index
    %c0_198 = arith.constant 0 : index
    %450 = vector.load %arg11[%c0_197, %c0_198] : memref<1x16xf32, #tpu.memory_space<vmem>>, vector<1x16xf32>
    %451 = vector.broadcast %450 : vector<1x16xf32> to vector<8x16xf32>
    %452 = arith.addf %449, %451 : vector<8x16xf32>
    %cst_199 = arith.constant dense<0xFF800000> : vector<8xf32>
    %453 = vector.multi_reduction <maximumf>, %452, %cst_199 [1] : vector<8x16xf32> to vector<8xf32>
    %454 = vector.shape_cast %453 : vector<8xf32> to vector<8x1xf32>
    %455 = vector.broadcast %454 : vector<8x1xf32> to vector<8x16xf32>
    %456 = arith.subf %452, %455 : vector<8x16xf32>
    %457 = math.exp %456 : vector<8x16xf32>
    %cst_200 = arith.constant dense<0.000000e+00> : vector<8xf32>
    %458 = vector.multi_reduction <add>, %457, %cst_200 [1] : vector<8x16xf32> to vector<8xf32>
    %459 = vector.shape_cast %458 : vector<8xf32> to vector<8x1xf32>
    %460 = vector.broadcast %459 : vector<8x1xf32> to vector<8x16xf32>
    %461 = arith.divf %457, %460 : vector<8x16xf32>
    %c0_201 = arith.constant 0 : index
    %c96 = arith.constant 96 : index
    %462 = vector.load %arg13[%c0_201, %c96] : memref<8x128xf32, #tpu.memory_space<vmem>>, vector<8x16xf32>
    tpu.vector_store %arg13[%c0_201, %c96], %452 {strides = array<i32>} : memref<8x128xf32, #tpu.memory_space<vmem>>, vector<8x16xf32>,
    %c0_202 = arith.constant 0 : index
    %c96_203 = arith.constant 96 : index
    %463 = vector.load %arg12[%c0_202, %c96_203] : memref<8x128xf32, #tpu.memory_space<vmem>>, vector<8x16xf32>
    tpu.vector_store %arg12[%c0_202, %c96_203], %461 {strides = array<i32>} : memref<8x128xf32, #tpu.memory_space<vmem>>, vector<8x16xf32>,
    %c0_204 = arith.constant 0 : index
    %c0_205 = arith.constant 0 : index
    %464 = vector.load %arg4[%c0_204, %c0_205] : memref<16x128xf32, #tpu.memory_space<vmem>>, vector<16x128xf32>
    %cst_206 = arith.constant dense<0.000000e+00> : vector<8x128xf32>
    %465 = tpu.matmul %461, %464, %cst_206 {dimension_numbers = #tpu.dot_dimension_numbers<[1], [0], [0], [1], [0, 0, 1, 1], [], []>} : vector<8x16xf32>, vector<16x128xf32>, vector<8x128xf32> -> vector<8x128xf32>
    %c0_207 = arith.constant 0 : index
    %c0_208 = arith.constant 0 : index
    %466 = vector.load %arg5[%c0_207, %c0_208] : memref<32x128xf32, #tpu.memory_space<vmem>>, vector<32x128xf32>
    %cst_209 = arith.constant dense<0.000000e+00> : vector<8x128xf32>
    %467 = tpu.matmul %423, %466, %cst_209 {dimension_numbers = #tpu.dot_dimension_numbers<[1], [0], [0], [1], [0, 0, 1, 1], [], []>} : vector<8x32xf32>, vector<32x128xf32>, vector<8x128xf32> -> vector<8x128xf32>
    %468 = arith.addf %465, %467 : vector<8x128xf32>
    %c0_210 = arith.constant 0 : index
    %c0_211 = arith.constant 0 : index
    %469 = vector.load %arg6[%c0_210, %c0_211] : memref<1x128xf32, #tpu.memory_space<vmem>>, vector<1x128xf32>
    %470 = vector.broadcast %469 : vector<1x128xf32> to vector<8x128xf32>
    %471 = arith.addf %468, %470 : vector<8x128xf32>
    %472 = vector.extract_strided_slice %471 {offsets = [0, 0], sizes = [8, 96], strides = [1, 1]} : vector<8x128xf32> to vector<8x96xf32>
    %473 = arith.negf %472 : vector<8x96xf32>
    %474 = math.exp %473 : vector<8x96xf32>
    %cst_212 = arith.constant 1.000000e+00 : f32
    %475 = vector.broadcast %cst_212 : f32 to vector<8x96xf32>
    %476 = arith.addf %475, %474 : vector<8x96xf32>
    %477 = arith.divf %475, %476 : vector<8x96xf32>
    %478 = vector.extract_strided_slice %471 {offsets = [0, 96], sizes = [8, 32], strides = [1, 1]} : vector<8x128xf32> to vector<8x32xf32>
    %479 = math.tanh %478 : vector<8x32xf32>
    %480 = vector.extract_strided_slice %477 {offsets = [0, 0], sizes = [8, 32], strides = [1, 1]} : vector<8x96xf32> to vector<8x32xf32>
    %481 = vector.extract_strided_slice %477 {offsets = [0, 32], sizes = [8, 32], strides = [1, 1]} : vector<8x96xf32> to vector<8x32xf32>
    %482 = vector.extract_strided_slice %477 {offsets = [0, 64], sizes = [8, 32], strides = [1, 1]} : vector<8x96xf32> to vector<8x32xf32>
    %483 = arith.mulf %481, %421 : vector<8x32xf32>
    %484 = arith.mulf %480, %479 : vector<8x32xf32>
    %485 = arith.addf %483, %484 : vector<8x32xf32>
    %486 = math.tanh %485 : vector<8x32xf32>
    %487 = arith.mulf %482, %486 : vector<8x32xf32>
    %c0_213 = arith.constant 0 : index
    %c0_214 = arith.constant 0 : index
    %488 = vector.load %arg7[%c0_213, %c0_214] : memref<32x128xf32, #tpu.memory_space<vmem>>, vector<32x128xf32>
    %cst_215 = arith.constant dense<0.000000e+00> : vector<8x128xf32>
    %489 = tpu.matmul %487, %488, %cst_215 {dimension_numbers = #tpu.dot_dimension_numbers<[1], [0], [0], [1], [0, 0, 1, 1], [], []>} : vector<8x32xf32>, vector<32x128xf32>, vector<8x128xf32> -> vector<8x128xf32>
    %c0_216 = arith.constant 0 : index
    %c0_217 = arith.constant 0 : index
    %490 = vector.load %arg8[%c0_216, %c0_217] : memref<32x128xf32, #tpu.memory_space<vmem>>, vector<32x128xf32>
    %cst_218 = arith.constant dense<0.000000e+00> : vector<8x128xf32>
    %491 = tpu.matmul %447, %490, %cst_218 {dimension_numbers = #tpu.dot_dimension_numbers<[1], [0], [0], [1], [0, 0, 1, 1], [], []>} : vector<8x32xf32>, vector<32x128xf32>, vector<8x128xf32> -> vector<8x128xf32>
    %492 = arith.addf %489, %491 : vector<8x128xf32>
    %c0_219 = arith.constant 0 : index
    %c0_220 = arith.constant 0 : index
    %493 = vector.load %arg9[%c0_219, %c0_220] : memref<1x128xf32, #tpu.memory_space<vmem>>, vector<1x128xf32>
    %494 = vector.broadcast %493 : vector<1x128xf32> to vector<8x128xf32>
    %495 = arith.addf %492, %494 : vector<8x128xf32>
    %496 = vector.extract_strided_slice %495 {offsets = [0, 0], sizes = [8, 96], strides = [1, 1]} : vector<8x128xf32> to vector<8x96xf32>
    %497 = arith.negf %496 : vector<8x96xf32>
    %498 = math.exp %497 : vector<8x96xf32>
    %cst_221 = arith.constant 1.000000e+00 : f32
    %499 = vector.broadcast %cst_221 : f32 to vector<8x96xf32>
    %500 = arith.addf %499, %498 : vector<8x96xf32>
    %501 = arith.divf %499, %500 : vector<8x96xf32>
    %502 = vector.extract_strided_slice %495 {offsets = [0, 96], sizes = [8, 32], strides = [1, 1]} : vector<8x128xf32> to vector<8x32xf32>
    %503 = math.tanh %502 : vector<8x32xf32>
    %504 = vector.extract_strided_slice %501 {offsets = [0, 0], sizes = [8, 32], strides = [1, 1]} : vector<8x96xf32> to vector<8x32xf32>
    %505 = vector.extract_strided_slice %501 {offsets = [0, 32], sizes = [8, 32], strides = [1, 1]} : vector<8x96xf32> to vector<8x32xf32>
    %506 = vector.extract_strided_slice %501 {offsets = [0, 64], sizes = [8, 32], strides = [1, 1]} : vector<8x96xf32> to vector<8x32xf32>
    %507 = arith.mulf %505, %445 : vector<8x32xf32>
    %508 = arith.mulf %504, %503 : vector<8x32xf32>
    %509 = arith.addf %507, %508 : vector<8x32xf32>
    %510 = math.tanh %509 : vector<8x32xf32>
    %511 = arith.mulf %506, %510 : vector<8x32xf32>
    %c0_222 = arith.constant 0 : index
    %c0_223 = arith.constant 0 : index
    %512 = vector.load %arg10[%c0_222, %c0_223] : memref<32x16xf32, #tpu.memory_space<vmem>>, vector<32x16xf32>
    %cst_224 = arith.constant dense<0.000000e+00> : vector<8x16xf32>
    %513 = tpu.matmul %511, %512, %cst_224 {dimension_numbers = #tpu.dot_dimension_numbers<[1], [0], [0], [1], [0, 0, 1, 1], [], []>} : vector<8x32xf32>, vector<32x16xf32>, vector<8x16xf32> -> vector<8x16xf32>
    %c0_225 = arith.constant 0 : index
    %c0_226 = arith.constant 0 : index
    %514 = vector.load %arg11[%c0_225, %c0_226] : memref<1x16xf32, #tpu.memory_space<vmem>>, vector<1x16xf32>
    %515 = vector.broadcast %514 : vector<1x16xf32> to vector<8x16xf32>
    %516 = arith.addf %513, %515 : vector<8x16xf32>
    %cst_227 = arith.constant dense<0xFF800000> : vector<8xf32>
    %517 = vector.multi_reduction <maximumf>, %516, %cst_227 [1] : vector<8x16xf32> to vector<8xf32>
    %518 = vector.shape_cast %517 : vector<8xf32> to vector<8x1xf32>
    %519 = vector.broadcast %518 : vector<8x1xf32> to vector<8x16xf32>
    %520 = arith.subf %516, %519 : vector<8x16xf32>
    %521 = math.exp %520 : vector<8x16xf32>
    %cst_228 = arith.constant dense<0.000000e+00> : vector<8xf32>
    %522 = vector.multi_reduction <add>, %521, %cst_228 [1] : vector<8x16xf32> to vector<8xf32>
    %523 = vector.shape_cast %522 : vector<8xf32> to vector<8x1xf32>
    %524 = vector.broadcast %523 : vector<8x1xf32> to vector<8x16xf32>
    %525 = arith.divf %521, %524 : vector<8x16xf32>
    %c0_229 = arith.constant 0 : index
    %c112 = arith.constant 112 : index
    %526 = vector.load %arg13[%c0_229, %c112] : memref<8x128xf32, #tpu.memory_space<vmem>>, vector<8x16xf32>
    tpu.vector_store %arg13[%c0_229, %c112], %516 {strides = array<i32>} : memref<8x128xf32, #tpu.memory_space<vmem>>, vector<8x16xf32>,
    %c0_230 = arith.constant 0 : index
    %c112_231 = arith.constant 112 : index
    %527 = vector.load %arg12[%c0_230, %c112_231] : memref<8x128xf32, #tpu.memory_space<vmem>>, vector<8x16xf32>
    tpu.vector_store %arg12[%c0_230, %c112_231], %525 {strides = array<i32>} : memref<8x128xf32, #tpu.memory_space<vmem>>, vector<8x16xf32>,
    return
  }
  func.func @transform_0(%arg0: i32) -> (i32, i32) {
    %c0_i32 = arith.constant 0 : i32
    %c0_i32_0 = arith.constant 0 : i32
    return %arg0, %c0_i32 : i32, i32
  }
  func.func @transform_1(%arg0: i32) -> (i32, i32) {
    %c0_i32 = arith.constant 0 : i32
    %c0_i32_0 = arith.constant 0 : i32
    %c0_i32_1 = arith.constant 0 : i32
    return %c0_i32, %c0_i32_0 : i32, i32
  }
  func.func @transform_2(%arg0: i32) -> (i32, i32) {
    %c0_i32 = arith.constant 0 : i32
    %c0_i32_0 = arith.constant 0 : i32
    %c0_i32_1 = arith.constant 0 : i32
    return %c0_i32, %c0_i32_0 : i32, i32
  }
  func.func @transform_3(%arg0: i32) -> (i32, i32) {
    %c0_i32 = arith.constant 0 : i32
    %c0_i32_0 = arith.constant 0 : i32
    %c0_i32_1 = arith.constant 0 : i32
    return %c0_i32, %c0_i32_0 : i32, i32
  }
  func.func @transform_4(%arg0: i32) -> (i32, i32) {
    %c0_i32 = arith.constant 0 : i32
    %c0_i32_0 = arith.constant 0 : i32
    %c0_i32_1 = arith.constant 0 : i32
    return %c0_i32, %c0_i32_0 : i32, i32
  }
  func.func @transform_5(%arg0: i32) -> (i32, i32) {
    %c0_i32 = arith.constant 0 : i32
    %c0_i32_0 = arith.constant 0 : i32
    %c0_i32_1 = arith.constant 0 : i32
    return %c0_i32, %c0_i32_0 : i32, i32
  }
  func.func @transform_6(%arg0: i32) -> (i32, i32) {
    %c0_i32 = arith.constant 0 : i32
    %c0_i32_0 = arith.constant 0 : i32
    %c0_i32_1 = arith.constant 0 : i32
    return %c0_i32, %c0_i32_0 : i32, i32
  }
  func.func @transform_7(%arg0: i32) -> (i32, i32) {
    %c0_i32 = arith.constant 0 : i32
    %c0_i32_0 = arith.constant 0 : i32
    %c0_i32_1 = arith.constant 0 : i32
    return %c0_i32, %c0_i32_0 : i32, i32
  }
  func.func @transform_8(%arg0: i32) -> (i32, i32) {
    %c0_i32 = arith.constant 0 : i32
    %c0_i32_0 = arith.constant 0 : i32
    %c0_i32_1 = arith.constant 0 : i32
    return %c0_i32, %c0_i32_0 : i32, i32
  }
  func.func @transform_9(%arg0: i32) -> (i32, i32) {
    %c0_i32 = arith.constant 0 : i32
    %c0_i32_0 = arith.constant 0 : i32
    %c0_i32_1 = arith.constant 0 : i32
    return %c0_i32, %c0_i32_0 : i32, i32
  }
  func.func @transform_10(%arg0: i32) -> (i32, i32) {
    %c0_i32 = arith.constant 0 : i32
    %c0_i32_0 = arith.constant 0 : i32
    %c0_i32_1 = arith.constant 0 : i32
    return %c0_i32, %c0_i32_0 : i32, i32
  }
  func.func @transform_11(%arg0: i32) -> (i32, i32) {
    %c0_i32 = arith.constant 0 : i32
    %c0_i32_0 = arith.constant 0 : i32
    return %arg0, %c0_i32 : i32, i32
  }
  func.func @transform_12(%arg0: i32) -> (i32, i32) {
    %c0_i32 = arith.constant 0 : i32
    %c0_i32_0 = arith.constant 0 : i32
    return %arg0, %c0_i32 : i32, i32
  }
}

</mosaic_0001>

<llo_original>
// kernel: tpu_custom_call.1
$region0: #{tpu_custom_call.1}
  #allocation0 [shape = 'u32[]', space=smem, size = 0x4, offset = 0x4, fixed_abs, tag = 'smem constant byte address 0x4 - core index']
  #allocation1 [shape = 'u32[144,128]{1,0:T(1,128)}', space=vmem, size = 0x12000, scoped, tag = 'internal scratch']
  %s0 = inlined_call_operand.hbm [shape: f32[8,8], index: 0, kind: input, shape index: {}]
  %s1 = inlined_call_operand.hbm [shape: f32[8,128], index: 1, kind: input, shape index: {}]
  %s2 = inlined_call_operand.hbm [shape: f32[1,128], index: 2, kind: input, shape index: {}]
  %s3 = inlined_call_operand.vmem [shape: f32[16,128], index: 3, kind: input, shape index: {}]
  %s4 = inlined_call_operand.vmem [shape: f32[32,128], index: 4, kind: input, shape index: {}]
  %s5 = inlined_call_operand.hbm [shape: f32[1,128], index: 5, kind: input, shape index: {}]
  %s6 = inlined_call_operand.hbm [shape: f32[32,128], index: 6, kind: input, shape index: {}]
  %s7 = inlined_call_operand.hbm [shape: f32[32,128], index: 7, kind: input, shape index: {}]
  %s8 = inlined_call_operand.hbm [shape: f32[1,128], index: 8, kind: input, shape index: {}]
  %s9 = inlined_call_operand.vmem [shape: f32[32,16], index: 9, kind: input, shape index: {}]
  %s10 = inlined_call_operand.vmem [shape: f32[1,16], index: 10, kind: input, shape index: {}]
  %s11 = inlined_call_operand.hbm [shape: f32[8,128], index: 11, kind: output, shape index: {0}]
  %s12 = inlined_call_operand.hbm [shape: f32[8,128], index: 12, kind: output, shape index: {1}]
  %13 = xla_tuple %s11, %s12
  %s14 = sld [smem:[#allocation0]]
  $region90: #{tpu_custom_call.1} parent=0
    _
  %s16 = ssub.s32 1, %s14
  %s17 = scalar_select 0, %s16, %s14
  $region1: #{tpu_custom_call.1} parent=0
    #allocation2 [shape = 'u8[4096]{0}', space=vmem, size = 0x1000, scoped, tag = 'input window, operand 0, single buffered']
    #allocation3 [shape = 's32[1]{0}', space=sflag, size = 0x4, scoped, tag = 'scoped memory for tpu_custom_call.1']
    #allocation4 [shape = 's32[1]{0}', space=sflag, size = 0x4, scoped, tag = 'scoped memory for tpu_custom_call.1']
    #allocation5 [shape = 'u8[4096]{0}', space=vmem, size = 0x1000, scoped, tag = 'input window, operand 1, single buffered']
    #allocation6 [shape = 's32[1]{0}', space=sflag, size = 0x4, scoped, tag = 'scoped memory for tpu_custom_call.1']
    #allocation7 [shape = 'u8[512]{0}', space=vmem, size = 0x400, scoped, tag = 'input window, operand 2, single buffered']
    #allocation8 [shape = 'u8[512]{0}', space=vmem, size = 0x400, scoped, tag = 'input window, operand 5, single buffered']
    #allocation9 [shape = 's32[1]{0}', space=sflag, size = 0x4, scoped, tag = 'scoped memory for tpu_custom_call.1']
    #allocation10 [shape = 'u8[16384]{0}', space=vmem, size = 0x4000, scoped, tag = 'input window, operand 6, single buffered']
    #allocation11 [shape = 'u8[16384]{0}', space=vmem, size = 0x4000, scoped, tag = 'input window, operand 7, single buffered']
    #allocation12 [shape = 's32[1]{0}', space=sflag, size = 0x4, scoped, tag = 'scoped memory for tpu_custom_call.1']
    #allocation13 [shape = 'u8[512]{0}', space=vmem, size = 0x400, scoped, tag = 'input window, operand 8, single buffered']
    #allocation14 [shape = 'u8[4096]{0}', space=vmem, size = 0x1000, scoped, tag = 'output window, operand 0, single buffered']
    #allocation15 [shape = 'u8[4096]{0}', space=vmem, size = 0x1000, scoped, tag = 'output window, operand 1, single buffered']
    #allocation16 [shape = 's32[1]{0}', space=sflag, size = 0x4, scoped, tag = 'scoped memory for tpu_custom_call.1']
    %18 = vsyncpa [#allocation3], 0
    %19 = vsyncpa [#allocation6], 0
    %20 = vsyncpa [#allocation9], 0
    %21 = vsyncpa [#allocation12], 0
    %22 = vsyncpa [#allocation4], 0
    %23 = vsyncpa [#allocation16], 0
    // Predicated region
    $region2: #{tpu_custom_call.1} parent=1 // pred_check
      _
    $region3: #{tpu_custom_call.1} parent=1 // pred_check_branch
      %25 = sbr.rel (0) target = $region5
    $region4: #{tpu_custom_call.1} parent=1 // pred_region
      %s27 = ssub.s32 128, 128
      %28 = vsyncadd [#allocation3], %s27
      %s30 = sshll.u32 [#allocation2], 4
      %s31 = int_to_ptr.vmem [resolvable:$true] %s30
      %33 = dma.hbm_to_vmem [thread:$0]  %s0, 128, %s31, [#allocation3]
    $region5: #{tpu_custom_call.1} parent=1 // pred_fallthru
      _
    // Predicated region
    $region6: #{tpu_custom_call.1} parent=1 // pred_check
      _
    $region7: #{tpu_custom_call.1} parent=1 // pred_check_branch
      %35 = sbr.rel (0) target = $region9
    $region8: #{tpu_custom_call.1} parent=1 // pred_region
      %s37 = ssub.s32 128, 128
      %38 = vsyncadd [#allocation6], %s37
      %s40 = sshll.u32 [#allocation5], 4
      %s41 = int_to_ptr.vmem [resolvable:$true] %s40
      %43 = dma.hbm_to_vmem [thread:$0]  %s1, 128, %s41, [#allocation6]
    $region9: #{tpu_custom_call.1} parent=1 // pred_fallthru
      _
    // Predicated region
    $region10: #{tpu_custom_call.1} parent=1 // pred_check
      _
    $region11: #{tpu_custom_call.1} parent=1 // pred_check_branch
      %45 = sbr.rel (0) target = $region13
    $region12: #{tpu_custom_call.1} parent=1 // pred_region
      %s47 = ssub.s32 16, 16
      %48 = vsyncadd [#allocation6], %s47
      %s50 = sshll.u32 [#allocation7], 4
      %s51 = int_to_ptr.vmem [resolvable:$true] %s50
      %53 = dma.hbm_to_vmem [thread:$0]  %s2, 16, %s51, [#allocation6]
    $region13: #{tpu_custom_call.1} parent=1 // pred_fallthru
      _
    // Predicated region
    $region14: #{tpu_custom_call.1} parent=1 // pred_check
      _
    $region15: #{tpu_custom_call.1} parent=1 // pred_check_branch
      %55 = sbr.rel (0) target = $region17
    $region16: #{tpu_custom_call.1} parent=1 // pred_region
      _
    $region17: #{tpu_custom_call.1} parent=1 // pred_fallthru
      _
    // Predicated region
    $region18: #{tpu_custom_call.1} parent=1 // pred_check
      _
    $region19: #{tpu_custom_call.1} parent=1 // pred_check_branch
      %57 = sbr.rel (0) target = $region21
    $region20: #{tpu_custom_call.1} parent=1 // pred_region
      _
    $region21: #{tpu_custom_call.1} parent=1 // pred_fallthru
      _
    // Predicated region
    $region22: #{tpu_custom_call.1} parent=1 // pred_check
      _
    $region23: #{tpu_custom_call.1} parent=1 // pred_check_branch
      %59 = sbr.rel (0) target = $region25
    $region24: #{tpu_custom_call.1} parent=1 // pred_region
      %s61 = ssub.s32 16, 16
      %62 = vsyncadd [#allocation9], %s61
      %s64 = sshll.u32 [#allocation8], 4
      %s65 = int_to_ptr.vmem [resolvable:$true] %s64
      %67 = dma.hbm_to_vmem [thread:$0]  %s5, 16, %s65, [#allocation9]
    $region25: #{tpu_custom_call.1} parent=1 // pred_fallthru
      _
    // Predicated region
    $region26: #{tpu_custom_call.1} parent=1 // pred_check
      _
    $region27: #{tpu_custom_call.1} parent=1 // pred_check_branch
      %69 = sbr.rel (0) target = $region29
    $region28: #{tpu_custom_call.1} parent=1 // pred_region
      %s71 = ssub.s32 512, 512
      %72 = vsyncadd [#allocation9], %s71
      %s73 = sshll.u32 [#allocation10], 4
      %s74 = int_to_ptr.vmem [resolvable:$true] %s73
      %79 = dma.hbm_to_vmem [thread:$0]  %s6, 512, %s74, [#allocation9], 128, 128, 8
    $region29: #{tpu_custom_call.1} parent=1 // pred_fallthru
      _
    // Predicated region
    $region30: #{tpu_custom_call.1} parent=1 // pred_check
      _
    $region31: #{tpu_custom_call.1} parent=1 // pred_check_branch
      %81 = sbr.rel (0) target = $region33
    $region32: #{tpu_custom_call.1} parent=1 // pred_region
      %s83 = ssub.s32 512, 512
      %84 = vsyncadd [#allocation12], %s83
      %s85 = sshll.u32 [#allocation11], 4
      %s86 = int_to_ptr.vmem [resolvable:$true] %s85
      %91 = dma.hbm_to_vmem [thread:$0]  %s7, 512, %s86, [#allocation12], 128, 128, 8
    $region33: #{tpu_custom_call.1} parent=1 // pred_fallthru
      _
    // Predicated region
    $region34: #{tpu_custom_call.1} parent=1 // pred_check
      _
    $region35: #{tpu_custom_call.1} parent=1 // pred_check_branch
      %93 = sbr.rel (0) target = $region37
    $region36: #{tpu_custom_call.1} parent=1 // pred_region
      %s95 = ssub.s32 16, 16
      %96 = vsyncadd [#allocation12], %s95
      %s98 = sshll.u32 [#allocation13], 4
      %s99 = int_to_ptr.vmem [resolvable:$true] %s98
      %101 = dma.hbm_to_vmem [thread:$0]  %s8, 16, %s99, [#allocation12]
    $region37: #{tpu_custom_call.1} parent=1 // pred_fallthru
      _
    // Predicated region
    $region38: #{tpu_custom_call.1} parent=1 // pred_check
      _
    $region39: #{tpu_custom_call.1} parent=1 // pred_check_branch
      %103 = sbr.rel (0) target = $region41
    $region40: #{tpu_custom_call.1} parent=1 // pred_region
      _
    $region41: #{tpu_custom_call.1} parent=1 // pred_fallthru
      _
    // Predicated region
    $region42: #{tpu_custom_call.1} parent=1 // pred_check
      _
    $region43: #{tpu_custom_call.1} parent=1 // pred_check_branch
      %105 = sbr.rel (0) target = $region45
    $region44: #{tpu_custom_call.1} parent=1 // pred_region
      _
    $region45: #{tpu_custom_call.1} parent=1 // pred_fallthru
      _
    // Predicated region
    $region46: #{tpu_custom_call.1} parent=1 // pred_check
      _
    $region47: #{tpu_custom_call.1} parent=1 // pred_check_branch
      %107 = sbr.rel (0) target = $region49
    $region48: #{tpu_custom_call.1} parent=1 // pred_region
      %108 = dma.done [#allocation3], 128
    $region49: #{tpu_custom_call.1} parent=1 // pred_fallthru
      _
    // Predicated region
    $region50: #{tpu_custom_call.1} parent=1 // pred_check
      _
    $region51: #{tpu_custom_call.1} parent=1 // pred_check_branch
      %110 = sbr.rel (0) target = $region53
    $region52: #{tpu_custom_call.1} parent=1 // pred_region
      %111 = dma.done [#allocation6], 128
    $region53: #{tpu_custom_call.1} parent=1 // pred_fallthru
      _
    // Predicated region
    $region54: #{tpu_custom_call.1} parent=1 // pred_check
      _
    $region55: #{tpu_custom_call.1} parent=1 // pred_check_branch
      %113 = sbr.rel (0) target = $region57
    $region56: #{tpu_custom_call.1} parent=1 // pred_region
      %114 = dma.done [#allocation6], 16
    $region57: #{tpu_custom_call.1} parent=1 // pred_fallthru
      _
    // Predicated region
    $region58: #{tpu_custom_call.1} parent=1 // pred_check
      _
    $region59: #{tpu_custom_call.1} parent=1 // pred_check_branch
      %116 = sbr.rel (0) target = $region61
    $region60: #{tpu_custom_call.1} parent=1 // pred_region
      %117 = dma.done [#allocation9], 16
    $region61: #{tpu_custom_call.1} parent=1 // pred_fallthru
      _
    // Predicated region
    $region62: #{tpu_custom_call.1} parent=1 // pred_check
      _
    $region63: #{tpu_custom_call.1} parent=1 // pred_check_branch
      %119 = sbr.rel (0) target = $region65
    $region64: #{tpu_custom_call.1} parent=1 // pred_region
      %120 = dma.done [#allocation9], 512
    $region65: #{tpu_custom_call.1} parent=1 // pred_fallthru
      _
    // Predicated region
    $region66: #{tpu_custom_call.1} parent=1 // pred_check
      _
    $region67: #{tpu_custom_call.1} parent=1 // pred_check_branch
      %122 = sbr.rel (0) target = $region69
    $region68: #{tpu_custom_call.1} parent=1 // pred_region
      %123 = dma.done [#allocation12], 512
    $region69: #{tpu_custom_call.1} parent=1 // pred_fallthru
      _
    // Predicated region
    $region70: #{tpu_custom_call.1} parent=1 // pred_check
      _
    $region71: #{tpu_custom_call.1} parent=1 // pred_check_branch
      %125 = sbr.rel (0) target = $region73
    $region72: #{tpu_custom_call.1} parent=1 // pred_region
      %126 = dma.done [#allocation12], 16
    $region73: #{tpu_custom_call.1} parent=1 // pred_fallthru
      _
    %v127 = vld [vmem:[#allocation2] sm:$0xff]
    %v128 = vld [vmem:[#allocation5] sm:$0xff]
    %v129 = vld [vmem:[#allocation7] sm:$0x1]
    %v131 = vlaneseq
    %v132 = vshrl.u32 %v131, 7
    %v133 = vsub.s32 0, %v132
    %v134 = vrot.slane %v129, %v133
    %vm136 = vcmask 64512
    %v138 = vsel %vm136, %v127, 0
    %140 = vmatprep.subr.mxu0 0.0
    %141 = vmatpush1.msra.mxu0 0.0
    %142 = vmatprep.subr.mxu0 0.0
    %143 = vmatpush1.msra.mxu0 0.0
    %144 = vmatprep.subr.mxu0 0.0
    %145 = vmatpush1.msra.mxu0 0.0
    %146 = vmatprep.subr.mxu0 0.0
    %147 = vmatpush1.msra.mxu0 0.0
    %148 = vmatprep.subr.mxu0 0.0
    %149 = vmatpush1.msra.mxu0 0.0
    %150 = vmatprep.subr.mxu0 0.0
    %151 = vmatpush1.msra.mxu0 0.0
    %152 = vmatprep.subr.mxu0 0.0
    %153 = vmatpush1.msra.mxu0 0.0
    %154 = vmatprep.subr.mxu0 0.0
    %155 = vmatpush1.msra.mxu0 0.0
    %156 = vmatprep.subr.mxu0 0.0
    %157 = vmatpush1.msra.mxu0 0.0
    %158 = vmatprep.subr.mxu0 0.0
    %159 = vmatpush1.msra.mxu0 0.0
    %160 = vmatprep.subr.mxu0 0.0
    %161 = vmatpush1.msra.mxu0 0.0
    %162 = vmatprep.subr.mxu0 0.0
    %163 = vmatpush1.msra.mxu0 0.0
    %164 = vmatprep.subr.mxu0 0.0
    %165 = vmatpush1.msra.mxu0 0.0
    %166 = vmatprep.subr.mxu0 0.0
    %167 = vmatpush1.msra.mxu0 0.0
    %168 = vmatprep.subr.mxu0 0.0
    %169 = vmatpush1.msra.mxu0 0.0
    %170 = vmatprep.subr.mxu0 0.0
    %171 = vmatpush1.msra.mxu0 %v128
    %172 = vmatprep.subr.mxu0 0.0
    %173 = vmatpush2.msra.mxu0 0.0
    %174 = vmatprep.subr.mxu0 0.0
    %175 = vmatpush2.msra.mxu0 0.0
    %176 = vmatprep.subr.mxu0 0.0
    %177 = vmatpush2.msra.mxu0 0.0
    %178 = vmatprep.subr.mxu0 0.0
    %179 = vmatpush2.msra.mxu0 0.0
    %180 = vmatprep.subr.mxu0 0.0
    %181 = vmatpush2.msra.mxu0 0.0
    %182 = vmatprep.subr.mxu0 0.0
    %183 = vmatpush2.msra.mxu0 0.0
    %184 = vmatprep.subr.mxu0 0.0
    %185 = vmatpush2.msra.mxu0 0.0
    %186 = vmatprep.subr.mxu0 0.0
    %187 = vmatpush2.msra.mxu0 0.0
    %188 = vmatprep.subr.mxu0 0.0
    %189 = vmatpush2.msra.mxu0 0.0
    %190 = vmatprep.subr.mxu0 0.0
    %191 = vmatpush2.msra.mxu0 0.0
    %192 = vmatprep.subr.mxu0 0.0
    %193 = vmatpush2.msra.mxu0 0.0
    %194 = vmatprep.subr.mxu0 0.0
    %195 = vmatpush2.msra.mxu0 0.0
    %196 = vmatprep.subr.mxu0 0.0
    %197 = vmatpush2.msra.mxu0 0.0
    %198 = vmatprep.subr.mxu0 0.0
    %199 = vmatpush2.msra.mxu0 0.0
    %200 = vmatprep.subr.mxu0 0.0
    %201 = vmatpush2.msra.mxu0 0.0
    %202 = vmatprep.subr.mxu0 0.0
    %203 = vmatpush2.msra.mxu0 0.0
    %204 = vmatprep.mubr.f32.mxu0 0.0
    %205 = vmatmul.mubr.f32.gmra.mxu0 %v138
    %v206 = vpop.f32.mrf.mxu0
    %v207 = vadd.f32 %v134, %v206
    %v208 = vpop.f32.mrf.mxu0
    %209 = vdwg.mxu0
    %v210 = vlaneseq
    %v211 = vand.u32 %v210, 127
    %vm212 = vcmp.eq.s32.totalorder %v211, 0
    %v213 = vsel %vm212, 1.0, 0.0
    %v214 = vld [vmem:[%s3] sm:$0xff]
    %v215 = vld [vmem:[%s3 + $0x8] sm:$0xff]
    %v216 = vld [vmem:[%s4] sm:$0xff]
    %v217 = vld [vmem:[%s4 + $0x8] sm:$0xff]
    %v218 = vld [vmem:[%s4 + $0x10] sm:$0xff]
    %v219 = vld [vmem:[%s4 + $0x18] sm:$0xff]
    %vm220 = vcmask 261120
    %v222 = vsel %vm220, %v207, 0
    %224 = vmatprep.subr.mxu0 0.0
    %225 = vmatpush1.msra.mxu0 0.0
    %226 = vmatprep.subr.mxu0 0.0
    %227 = vmatpush1.msra.mxu0 0.0
    %228 = vmatprep.subr.mxu0 0.0
    %229 = vmatpush1.msra.mxu0 0.0
    %230 = vmatprep.subr.mxu0 0.0
    %231 = vmatpush1.msra.mxu0 0.0
    %232 = vmatprep.subr.mxu0 0.0
    %233 = vmatpush1.msra.mxu0 0.0
    %234 = vmatprep.subr.mxu0 0.0
    %235 = vmatpush1.msra.mxu0 0.0
    %236 = vmatprep.subr.mxu0 0.0
    %237 = vmatpush1.msra.mxu0 0.0
    %238 = vmatprep.subr.mxu0 0.0
    %239 = vmatpush1.msra.mxu0 0.0
    %240 = vmatprep.subr.mxu0 0.0
    %241 = vmatpush1.msra.mxu0 0.0
    %242 = vmatprep.subr.mxu0 0.0
    %243 = vmatpush1.msra.mxu0 0.0
    %244 = vmatprep.subr.mxu0 0.0
    %245 = vmatpush1.msra.mxu0 0.0
    %246 = vmatprep.subr.mxu0 0.0
    %247 = vmatpush1.msra.mxu0 0.0
    %248 = vmatprep.subr.mxu0 0.0
    %249 = vmatpush1.msra.mxu0 %v219
    %250 = vmatprep.subr.mxu0 0.0
    %251 = vmatpush1.msra.mxu0 %v218
    %252 = vmatprep.subr.mxu0 0.0
    %253 = vmatpush1.msra.mxu0 %v217
    %254 = vmatprep.subr.mxu0 0.0
    %255 = vmatpush1.msra.mxu0 %v216
    %256 = vmatprep.subr.mxu0 0.0
    %257 = vmatpush2.msra.mxu0 0.0
    %258 = vmatprep.subr.mxu0 0.0
    %259 = vmatpush2.msra.mxu0 0.0
    %260 = vmatprep.subr.mxu0 0.0
    %261 = vmatpush2.msra.mxu0 0.0
    %262 = vmatprep.subr.mxu0 0.0
    %263 = vmatpush2.msra.mxu0 0.0
    %264 = vmatprep.subr.mxu0 0.0
    %265 = vmatpush2.msra.mxu0 0.0
    %266 = vmatprep.subr.mxu0 0.0
    %267 = vmatpush2.msra.mxu0 0.0
    %268 = vmatprep.subr.mxu0 0.0
    %269 = vmatpush2.msra.mxu0 0.0
    %270 = vmatprep.subr.mxu0 0.0
    %271 = vmatpush2.msra.mxu0 0.0
    %272 = vmatprep.subr.mxu0 0.0
    %273 = vmatpush2.msra.mxu0 0.0
    %274 = vmatprep.subr.mxu0 0.0
    %275 = vmatpush2.msra.mxu0 0.0
    %276 = vmatprep.subr.mxu0 0.0
    %277 = vmatpush2.msra.mxu0 0.0
    %278 = vmatprep.subr.mxu0 0.0
    %279 = vmatpush2.msra.mxu0 0.0
    %280 = vmatprep.subr.mxu0 0.0
    %281 = vmatpush2.msra.mxu0 0.0
    %282 = vmatprep.subr.mxu0 0.0
    %283 = vmatpush2.msra.mxu0 0.0
    %284 = vmatprep.subr.mxu0 0.0
    %285 = vmatpush2.msra.mxu0 0.0
    %286 = vmatprep.subr.mxu0 0.0
    %287 = vmatpush2.msra.mxu0 0.0
    %288 = vmatprep.mubr.f32.mxu0 0.0
    %289 = vmatmul.mubr.f32.gmra.mxu0 %v222
    %v290 = vpop.f32.mrf.mxu0
    %v291 = vadd.f32 0.0, %v290
    %v292 = vpop.f32.mrf.mxu0
    %293 = vdwg.mxu0
    %vm294 = vcmask 130048
    %v296 = vsel %vm294, %v213, 0
    %298 = vmatprep.subr.mxu0 0.0
    %299 = vmatpush1.msra.mxu0 0.0
    %300 = vmatprep.subr.mxu0 0.0
    %301 = vmatpush1.msra.mxu0 0.0
    %302 = vmatprep.subr.mxu0 0.0
    %303 = vmatpush1.msra.mxu0 0.0
    %304 = vmatprep.subr.mxu0 0.0
    %305 = vmatpush1.msra.mxu0 0.0
    %306 = vmatprep.subr.mxu0 0.0
    %307 = vmatpush1.msra.mxu0 0.0
    %308 = vmatprep.subr.mxu0 0.0
    %309 = vmatpush1.msra.mxu0 0.0
    %310 = vmatprep.subr.mxu0 0.0
    %311 = vmatpush1.msra.mxu0 0.0
    %312 = vmatprep.subr.mxu0 0.0
    %313 = vmatpush1.msra.mxu0 0.0
    %314 = vmatprep.subr.mxu0 0.0
    %315 = vmatpush1.msra.mxu0 0.0
    %316 = vmatprep.subr.mxu0 0.0
    %317 = vmatpush1.msra.mxu0 0.0
    %318 = vmatprep.subr.mxu0 0.0
    %319 = vmatpush1.msra.mxu0 0.0
    %320 = vmatprep.subr.mxu0 0.0
    %321 = vmatpush1.msra.mxu0 0.0
    %322 = vmatprep.subr.mxu0 0.0
    %323 = vmatpush1.msra.mxu0 0.0
    %324 = vmatprep.subr.mxu0 0.0
    %325 = vmatpush1.msra.mxu0 0.0
    %326 = vmatprep.subr.mxu0 0.0
    %327 = vmatpush1.msra.mxu0 %v215
    %328 = vmatprep.subr.mxu0 0.0
    %329 = vmatpush1.msra.mxu0 %v214
    %330 = vmatprep.subr.mxu0 0.0
    %331 = vmatpush2.msra.mxu0 0.0
    %332 = vmatprep.subr.mxu0 0.0
    %333 = vmatpush2.msra.mxu0 0.0
    %334 = vmatprep.subr.mxu0 0.0
    %335 = vmatpush2.msra.mxu0 0.0
    %336 = vmatprep.subr.mxu0 0.0
    %337 = vmatpush2.msra.mxu0 0.0
    %338 = vmatprep.subr.mxu0 0.0
    %339 = vmatpush2.msra.mxu0 0.0
    %340 = vmatprep.subr.mxu0 0.0
    %341 = vmatpush2.msra.mxu0 0.0
    %342 = vmatprep.subr.mxu0 0.0
    %343 = vmatpush2.msra.mxu0 0.0
    %344 = vmatprep.subr.mxu0 0.0
    %345 = vmatpush2.msra.mxu0 0.0
    %346 = vmatprep.subr.mxu0 0.0
    %347 = vmatpush2.msra.mxu0 0.0
    %348 = vmatprep.subr.mxu0 0.0
    %349 = vmatpush2.msra.mxu0 0.0
    %350 = vmatprep.subr.mxu0 0.0
    %351 = vmatpush2.msra.mxu0 0.0
    %352 = vmatprep.subr.mxu0 0.0
    %353 = vmatpush2.msra.mxu0 0.0
    %354 = vmatprep.subr.mxu0 0.0
    %355 = vmatpush2.msra.mxu0 0.0
    %356 = vmatprep.subr.mxu0 0.0
    %357 = vmatpush2.msra.mxu0 0.0
    %358 = vmatprep.subr.mxu0 0.0
    %359 = vmatpush2.msra.mxu0 0.0
    %360 = vmatprep.subr.mxu0 0.0
    %361 = vmatpush2.msra.mxu0 0.0
    %362 = vmatprep.mubr.f32.mxu0 0.0
    %363 = vmatmul.mubr.f32.gmra.mxu0 %v296
    %v364 = vpop.f32.mrf.mxu0
    %v365 = vadd.f32 %v291, %v364
    %v366 = vpop.f32.mrf.mxu0
    %367 = vdwg.mxu0
    %v368 = vld [vmem:[#allocation8] sm:$0x1]
    %v370 = vlaneseq
    %v371 = vshrl.u32 %v370, 7
    %v372 = vsub.s32 0, %v371
    %v373 = vrot.slane %v368, %v372
    %v375 = vadd.f32 %v365, %v373
    %v376 = vxor.u32 %v375, 2147483648
    %v377 = vmul.f32 %v376, 1.442695
    %v378 = vpow.pop %v377
    %v379 = vadd.f32 %v378, 1.0
    %v380 = vrcp.pop %v379
    %v381 = vmul.f32 1.0, %v380
    %v382 = vtanh.pop %v375
    %v383 = vmul.f32 %v381, %v207
    %385 = vrot.lane.b32.xlu0 %v382, 32
    %v386 = vpop.permute.xlu0 %385
    %v388 = vmul.f32 %v381, %v386
    %390 = vrot.lane.b32.xlu0 %v388, 32
    %v391 = vpop.permute.xlu0 %390
    %v393 = vadd.f32 %v383, %v391
    %v394 = vtanh.pop %v393
    %396 = vrot.lane.b32.xlu0 %v394, 32
    %v397 = vpop.permute.xlu0 %396
    %v399 = vmul.f32 %v381, %v397
    %v400 = vld [vmem:[#allocation10] sm:$0xff]
    %v401 = vld [vmem:[#allocation10 + $0x8] sm:$0xff]
    %v402 = vld [vmem:[#allocation10 + $0x10] sm:$0xff]
    %v403 = vld [vmem:[#allocation10 + $0x18] sm:$0xff]
    %v404 = vld [vmem:[#allocation11] sm:$0xff]
    %v405 = vld [vmem:[#allocation11 + $0x8] sm:$0xff]
    %v406 = vld [vmem:[#allocation11 + $0x10] sm:$0xff]
    %v407 = vld [vmem:[#allocation11 + $0x18] sm:$0xff]
    %408 = vrot.lane.b32.xlu0 %v207, 64
    %v409 = vpop.permute.xlu0 %408
    %v410 = vsel %vm220, %v409, 0
    %412 = vmatprep.subr.mxu0 0.0
    %413 = vmatpush1.msra.mxu0 0.0
    %414 = vmatprep.subr.mxu0 0.0
    %415 = vmatpush1.msra.mxu0 0.0
    %416 = vmatprep.subr.mxu0 0.0
    %417 = vmatpush1.msra.mxu0 0.0
    %418 = vmatprep.subr.mxu0 0.0
    %419 = vmatpush1.msra.mxu0 0.0
    %420 = vmatprep.subr.mxu0 0.0
    %421 = vmatpush1.msra.mxu0 0.0
    %422 = vmatprep.subr.mxu0 0.0
    %423 = vmatpush1.msra.mxu0 0.0
    %424 = vmatprep.subr.mxu0 0.0
    %425 = vmatpush1.msra.mxu0 0.0
    %426 = vmatprep.subr.mxu0 0.0
    %427 = vmatpush1.msra.mxu0 0.0
    %428 = vmatprep.subr.mxu0 0.0
    %429 = vmatpush1.msra.mxu0 0.0
    %430 = vmatprep.subr.mxu0 0.0
    %431 = vmatpush1.msra.mxu0 0.0
    %432 = vmatprep.subr.mxu0 0.0
    %433 = vmatpush1.msra.mxu0 0.0
    %434 = vmatprep.subr.mxu0 0.0
    %435 = vmatpush1.msra.mxu0 0.0
    %436 = vmatprep.subr.mxu0 0.0
    %437 = vmatpush1.msra.mxu0 %v407
    %438 = vmatprep.subr.mxu0 0.0
    %439 = vmatpush1.msra.mxu0 %v406
    %440 = vmatprep.subr.mxu0 0.0
    %441 = vmatpush1.msra.mxu0 %v405
    %442 = vmatprep.subr.mxu0 0.0
    %443 = vmatpush1.msra.mxu0 %v404
    %444 = vmatprep.subr.mxu0 0.0
    %445 = vmatpush2.msra.mxu0 0.0
    %446 = vmatprep.subr.mxu0 0.0
    %447 = vmatpush2.msra.mxu0 0.0
    %448 = vmatprep.subr.mxu0 0.0
    %449 = vmatpush2.msra.mxu0 0.0
    %450 = vmatprep.subr.mxu0 0.0
    %451 = vmatpush2.msra.mxu0 0.0
    %452 = vmatprep.subr.mxu0 0.0
    %453 = vmatpush2.msra.mxu0 0.0
    %454 = vmatprep.subr.mxu0 0.0
    %455 = vmatpush2.msra.mxu0 0.0
    %456 = vmatprep.subr.mxu0 0.0
    %457 = vmatpush2.msra.mxu0 0.0
    %458 = vmatprep.subr.mxu0 0.0
    %459 = vmatpush2.msra.mxu0 0.0
    %460 = vmatprep.subr.mxu0 0.0
    %461 = vmatpush2.msra.mxu0 0.0
    %462 = vmatprep.subr.mxu0 0.0
    %463 = vmatpush2.msra.mxu0 0.0
    %464 = vmatprep.subr.mxu0 0.0
    %465 = vmatpush2.msra.mxu0 0.0
    %466 = vmatprep.subr.mxu0 0.0
    %467 = vmatpush2.msra.mxu0 0.0
    %468 = vmatprep.subr.mxu0 0.0
    %469 = vmatpush2.msra.mxu0 0.0
    %470 = vmatprep.subr.mxu0 0.0
    %471 = vmatpush2.msra.mxu0 0.0
    %472 = vmatprep.subr.mxu0 0.0
    %473 = vmatpush2.msra.mxu0 0.0
    %474 = vmatprep.subr.mxu0 0.0
    %475 = vmatpush2.msra.mxu0 0.0
    %476 = vmatprep.mubr.f32.mxu0 0.0
    %477 = vmatmul.mubr.f32.gmra.mxu0 %v410
    %v478 = vpop.f32.mrf.mxu0
    %v479 = vadd.f32 0.0, %v478
    %v480 = vpop.f32.mrf.mxu0
    %481 = vdwg.mxu0
    %483 = vrot.lane.b32.xlu0 %v399, 64
    %v484 = vpop.permute.xlu0 %483
    %v485 = vsel %vm220, %v484, 0
    %487 = vmatprep.subr.mxu0 0.0
    %488 = vmatpush1.msra.mxu0 0.0
    %489 = vmatprep.subr.mxu0 0.0
    %490 = vmatpush1.msra.mxu0 0.0
    %491 = vmatprep.subr.mxu0 0.0
    %492 = vmatpush1.msra.mxu0 0.0
    %493 = vmatprep.subr.mxu0 0.0
    %494 = vmatpush1.msra.mxu0 0.0
    %495 = vmatprep.subr.mxu0 0.0
    %496 = vmatpush1.msra.mxu0 0.0
    %497 = vmatprep.subr.mxu0 0.0
    %498 = vmatpush1.msra.mxu0 0.0
    %499 = vmatprep.subr.mxu0 0.0
    %500 = vmatpush1.msra.mxu0 0.0
    %501 = vmatprep.subr.mxu0 0.0
    %502 = vmatpush1.msra.mxu0 0.0
    %503 = vmatprep.subr.mxu0 0.0
    %504 = vmatpush1.msra.mxu0 0.0
    %505 = vmatprep.subr.mxu0 0.0
    %506 = vmatpush1.msra.mxu0 0.0
    %507 = vmatprep.subr.mxu0 0.0
    %508 = vmatpush1.msra.mxu0 0.0
    %509 = vmatprep.subr.mxu0 0.0
    %510 = vmatpush1.msra.mxu0 0.0
    %511 = vmatprep.subr.mxu0 0.0
    %512 = vmatpush1.msra.mxu0 %v403
    %513 = vmatprep.subr.mxu0 0.0
    %514 = vmatpush1.msra.mxu0 %v402
    %515 = vmatprep.subr.mxu0 0.0
    %516 = vmatpush1.msra.mxu0 %v401
    %517 = vmatprep.subr.mxu0 0.0
    %518 = vmatpush1.msra.mxu0 %v400
    %519 = vmatprep.subr.mxu0 0.0
    %520 = vmatpush2.msra.mxu0 0.0
    %521 = vmatprep.subr.mxu0 0.0
    %522 = vmatpush2.msra.mxu0 0.0
    %523 = vmatprep.subr.mxu0 0.0
    %524 = vmatpush2.msra.mxu0 0.0
    %525 = vmatprep.subr.mxu0 0.0
    %526 = vmatpush2.msra.mxu0 0.0
    %527 = vmatprep.subr.mxu0 0.0
    %528 = vmatpush2.msra.mxu0 0.0
    %529 = vmatprep.subr.mxu0 0.0
    %530 = vmatpush2.msra.mxu0 0.0
    %531 = vmatprep.subr.mxu0 0.0
    %532 = vmatpush2.msra.mxu0 0.0
    %533 = vmatprep.subr.mxu0 0.0
    %534 = vmatpush2.msra.mxu0 0.0
    %535 = vmatprep.subr.mxu0 0.0
    %536 = vmatpush2.msra.mxu0 0.0
    %537 = vmatprep.subr.mxu0 0.0
    %538 = vmatpush2.msra.mxu0 0.0
    %539 = vmatprep.subr.mxu0 0.0
    %540 = vmatpush2.msra.mxu0 0.0
    %541 = vmatprep.subr.mxu0 0.0
    %542 = vmatpush2.msra.mxu0 0.0
    %543 = vmatprep.subr.mxu0 0.0
    %544 = vmatpush2.msra.mxu0 0.0
    %545 = vmatprep.subr.mxu0 0.0
    %546 = vmatpush2.msra.mxu0 0.0
    %547 = vmatprep.subr.mxu0 0.0
    %548 = vmatpush2.msra.mxu0 0.0
    %549 = vmatprep.subr.mxu0 0.0
    %550 = vmatpush2.msra.mxu0 0.0
    %551 = vmatprep.mubr.f32.mxu0 0.0
    %552 = vmatmul.mubr.f32.gmra.mxu0 %v485
    %v553 = vpop.f32.mrf.mxu0
    %v554 = vadd.f32 %v479, %v553
    %v555 = vpop.f32.mrf.mxu0
    %556 = vdwg.mxu0
    %v557 = vld [vmem:[#allocation13] sm:$0x1]
    %v559 = vlaneseq
    %v560 = vshrl.u32 %v559, 7
    %v561 = vsub.s32 0, %v560
    %v562 = vrot.slane %v557, %v561
    %v564 = vadd.f32 %v554, %v562
    %v565 = vxor.u32 %v564, 2147483648
    %v566 = vmul.f32 %v565, 1.442695
    %v567 = vpow.pop %v566
    %v568 = vadd.f32 %v567, 1.0
    %v569 = vrcp.pop %v568
    %v570 = vmul.f32 1.0, %v569
    %v571 = vtanh.pop %v564
    %v573 = vmul.f32 %v570, %v409
    %575 = vrot.lane.b32.xlu0 %v571, 32
    %v576 = vpop.permute.xlu0 %575
    %v578 = vmul.f32 %v570, %v576
    %580 = vrot.lane.b32.xlu0 %v578, 32
    %v581 = vpop.permute.xlu0 %580
    %v583 = vadd.f32 %v573, %v581
    %v584 = vtanh.pop %v583
    %586 = vrot.lane.b32.xlu0 %v584, 32
    %v587 = vpop.permute.xlu0 %586
    %v589 = vmul.f32 %v570, %v587
    %v590 = vld [vmem:[%s9] sm:$0xff]
    %v591 = vld [vmem:[%s9 + $0x8] sm:$0xff]
    %v592 = vld [vmem:[%s9 + $0x10] sm:$0xff]
    %v593 = vld [vmem:[%s9 + $0x18] sm:$0xff]
    %v594 = vld [vmem:[%s10] sm:$0x1]
    %v596 = vlaneseq
    %v597 = vshrl.u32 %v596, 7
    %v598 = vsub.s32 0, %v597
    %v599 = vrot.slane %v594, %v598
    %602 = vrot.lane.b32.xlu0 %v589, 64
    %v603 = vpop.permute.xlu0 %602
    %v604 = vsel %vm220, %v603, 0
    %606 = vmatprep.subr.mxu0 0.0
    %607 = vmatpush1.msra.mxu0 0.0
    %608 = vmatprep.subr.mxu0 0.0
    %609 = vmatpush1.msra.mxu0 0.0
    %610 = vmatprep.subr.mxu0 0.0
    %611 = vmatpush1.msra.mxu0 0.0
    %612 = vmatprep.subr.mxu0 0.0
    %613 = vmatpush1.msra.mxu0 0.0
    %614 = vmatprep.subr.mxu0 0.0
    %615 = vmatpush1.msra.mxu0 0.0
    %616 = vmatprep.subr.mxu0 0.0
    %617 = vmatpush1.msra.mxu0 0.0
    %618 = vmatprep.subr.mxu0 0.0
    %619 = vmatpush1.msra.mxu0 0.0
    %620 = vmatprep.subr.mxu0 0.0
    %621 = vmatpush1.msra.mxu0 0.0
    %622 = vmatprep.subr.mxu0 0.0
    %623 = vmatpush1.msra.mxu0 0.0
    %624 = vmatprep.subr.mxu0 0.0
    %625 = vmatpush1.msra.mxu0 0.0
    %626 = vmatprep.subr.mxu0 0.0
    %627 = vmatpush1.msra.mxu0 0.0
    %628 = vmatprep.subr.mxu0 0.0
    %629 = vmatpush1.msra.mxu0 0.0
    %630 = vmatprep.subr.mxu0 0.0
    %631 = vmatpush1.msra.mxu0 %v593
    %632 = vmatprep.subr.mxu0 0.0
    %633 = vmatpush1.msra.mxu0 %v592
    %634 = vmatprep.subr.mxu0 0.0
    %635 = vmatpush1.msra.mxu0 %v591
    %636 = vmatprep.subr.mxu0 0.0
    %637 = vmatpush1.msra.mxu0 %v590
    %638 = vmatprep.subr.mxu0 0.0
    %639 = vmatpush2.msra.mxu0 0.0
    %640 = vmatprep.subr.mxu0 0.0
    %641 = vmatpush2.msra.mxu0 0.0
    %642 = vmatprep.subr.mxu0 0.0
    %643 = vmatpush2.msra.mxu0 0.0
    %644 = vmatprep.subr.mxu0 0.0
    %645 = vmatpush2.msra.mxu0 0.0
    %646 = vmatprep.subr.mxu0 0.0
    %647 = vmatpush2.msra.mxu0 0.0
    %648 = vmatprep.subr.mxu0 0.0
    %649 = vmatpush2.msra.mxu0 0.0
    %650 = vmatprep.subr.mxu0 0.0
    %651 = vmatpush2.msra.mxu0 0.0
    %652 = vmatprep.subr.mxu0 0.0
    %653 = vmatpush2.msra.mxu0 0.0
    %654 = vmatprep.subr.mxu0 0.0
    %655 = vmatpush2.msra.mxu0 0.0
    %656 = vmatprep.subr.mxu0 0.0
    %657 = vmatpush2.msra.mxu0 0.0
    %658 = vmatprep.subr.mxu0 0.0
    %659 = vmatpush2.msra.mxu0 0.0
    %660 = vmatprep.subr.mxu0 0.0
    %661 = vmatpush2.msra.mxu0 0.0
    %662 = vmatprep.subr.mxu0 0.0
    %663 = vmatpush2.msra.mxu0 0.0
    %664 = vmatprep.subr.mxu0 0.0
    %665 = vmatpush2.msra.mxu0 0.0
    %666 = vmatprep.subr.mxu0 0.0
    %667 = vmatpush2.msra.mxu0 0.0
    %668 = vmatprep.subr.mxu0 0.0
    %669 = vmatpush2.msra.mxu0 0.0
    %670 = vmatprep.mubr.f32.mxu0 0.0
    %671 = vmatmul.mubr.f32.gmra.mxu0 %v604
    %v672 = vpop.f32.mrf.mxu0
    %v673 = vadd.f32 %v599, %v672
    %v674 = vpop.f32.mrf.mxu0
    %675 = vdwg.mxu0
    %v676 = vsel %vm294, %v673, -inf
    %677 = vmax.xlane.f32.xlu0 %v676
    %v678 = vpop.xlane.xlu0 %677
    %v679 = vsub.f32 %v673, %v678
    %v680 = vmul.f32 %v679, 1.442695
    %v681 = vpow.pop %v680
    %v682 = vsel %vm294, %v681, 0.0
    %683 = vadd.xlane.f32.xlu0 %v682
    %v684 = vpop.xlane.xlu0 %683
    %v685 = vrcp.pop %v684
    %v686 = vmul.f32 %v681, %v685
    %687 = vst.msk [vmem:[#allocation15] sm:$0xff] %vm294, %v673
    %688 = vst.msk [vmem:[#allocation14] sm:$0xff] %vm294, %v686
    %v689 = vld [vmem:[%s3] sm:$0xff]
    %v690 = vld [vmem:[%s3 + $0x8] sm:$0xff]
    %v691 = vld [vmem:[%s4] sm:$0xff]
    %v692 = vld [vmem:[%s4 + $0x8] sm:$0xff]
    %v693 = vld [vmem:[%s4 + $0x10] sm:$0xff]
    %v694 = vld [vmem:[%s4 + $0x18] sm:$0xff]
    %695 = vmatprep.subr.mxu0 0.0
    %696 = vmatpush1.msra.mxu0 0.0
    %697 = vmatprep.subr.mxu0 0.0
    %698 = vmatpush1.msra.mxu0 0.0
    %699 = vmatprep.subr.mxu0 0.0
    %700 = vmatpush1.msra.mxu0 0.0
    %701 = vmatprep.subr.mxu0 0.0
    %702 = vmatpush1.msra.mxu0 0.0
    %703 = vmatprep.subr.mxu0 0.0
    %704 = vmatpush1.msra.mxu0 0.0
    %705 = vmatprep.subr.mxu0 0.0
    %706 = vmatpush1.msra.mxu0 0.0
    %707 = vmatprep.subr.mxu0 0.0
    %708 = vmatpush1.msra.mxu0 0.0
    %709 = vmatprep.subr.mxu0 0.0
    %710 = vmatpush1.msra.mxu0 0.0
    %711 = vmatprep.subr.mxu0 0.0
    %712 = vmatpush1.msra.mxu0 0.0
    %713 = vmatprep.subr.mxu0 0.0
    %714 = vmatpush1.msra.mxu0 0.0
    %715 = vmatprep.subr.mxu0 0.0
    %716 = vmatpush1.msra.mxu0 0.0
    %717 = vmatprep.subr.mxu0 0.0
    %718 = vmatpush1.msra.mxu0 0.0
    %719 = vmatprep.subr.mxu0 0.0
    %720 = vmatpush1.msra.mxu0 %v694
    %721 = vmatprep.subr.mxu0 0.0
    %722 = vmatpush1.msra.mxu0 %v693
    %723 = vmatprep.subr.mxu0 0.0
    %724 = vmatpush1.msra.mxu0 %v692
    %725 = vmatprep.subr.mxu0 0.0
    %726 = vmatpush1.msra.mxu0 %v691
    %727 = vmatprep.subr.mxu0 0.0
    %728 = vmatpush2.msra.mxu0 0.0
    %729 = vmatprep.subr.mxu0 0.0
    %730 = vmatpush2.msra.mxu0 0.0
    %731 = vmatprep.subr.mxu0 0.0
    %732 = vmatpush2.msra.mxu0 0.0
    %733 = vmatprep.subr.mxu0 0.0
    %734 = vmatpush2.msra.mxu0 0.0
    %735 = vmatprep.subr.mxu0 0.0
    %736 = vmatpush2.msra.mxu0 0.0
    %737 = vmatprep.subr.mxu0 0.0
    %738 = vmatpush2.msra.mxu0 0.0
    %739 = vmatprep.subr.mxu0 0.0
    %740 = vmatpush2.msra.mxu0 0.0
    %741 = vmatprep.subr.mxu0 0.0
    %742 = vmatpush2.msra.mxu0 0.0
    %743 = vmatprep.subr.mxu0 0.0
    %744 = vmatpush2.msra.mxu0 0.0
    %745 = vmatprep.subr.mxu0 0.0
    %746 = vmatpush2.msra.mxu0 0.0
    %747 = vmatprep.subr.mxu0 0.0
    %748 = vmatpush2.msra.mxu0 0.0
    %749 = vmatprep.subr.mxu0 0.0
    %750 = vmatpush2.msra.mxu0 0.0
    %751 = vmatprep.subr.mxu0 0.0
    %752 = vmatpush2.msra.mxu0 0.0
    %753 = vmatprep.subr.mxu0 0.0
    %754 = vmatpush2.msra.mxu0 0.0
    %755 = vmatprep.subr.mxu0 0.0
    %756 = vmatpush2.msra.mxu0 0.0
    %757 = vmatprep.subr.mxu0 0.0
    %758 = vmatpush2.msra.mxu0 0.0
    %759 = vmatprep.mubr.f32.mxu0 0.0
    %760 = vmatmul.mubr.f32.gmra.mxu0 %v485
    %v761 = vpop.f32.mrf.mxu0
    %v762 = vadd.f32 0.0, %v761
    %v763 = vpop.f32.mrf.mxu0
    %764 = vdwg.mxu0
    %v766 = vsel %vm294, %v686, 0
    %768 = vmatprep.subr.mxu0 0.0
    %769 = vmatpush1.msra.mxu0 0.0
    %770 = vmatprep.subr.mxu0 0.0
    %771 = vmatpush1.msra.mxu0 0.0
    %772 = vmatprep.subr.mxu0 0.0
    %773 = vmatpush1.msra.mxu0 0.0
    %774 = vmatprep.subr.mxu0 0.0
    %775 = vmatpush1.msra.mxu0 0.0
    %776 = vmatprep.subr.mxu0 0.0
    %777 = vmatpush1.msra.mxu0 0.0
    %778 = vmatprep.subr.mxu0 0.0
    %779 = vmatpush1.msra.mxu0 0.0
    %780 = vmatprep.subr.mxu0 0.0
    %781 = vmatpush1.msra.mxu0 0.0
    %782 = vmatprep.subr.mxu0 0.0
    %783 = vmatpush1.msra.mxu0 0.0
    %784 = vmatprep.subr.mxu0 0.0
    %785 = vmatpush1.msra.mxu0 0.0
    %786 = vmatprep.subr.mxu0 0.0
    %787 = vmatpush1.msra.mxu0 0.0
    %788 = vmatprep.subr.mxu0 0.0
    %789 = vmatpush1.msra.mxu0 0.0
    %790 = vmatprep.subr.mxu0 0.0
    %791 = vmatpush1.msra.mxu0 0.0
    %792 = vmatprep.subr.mxu0 0.0
    %793 = vmatpush1.msra.mxu0 0.0
    %794 = vmatprep.subr.mxu0 0.0
    %795 = vmatpush1.msra.mxu0 0.0
    %796 = vmatprep.subr.mxu0 0.0
    %797 = vmatpush1.msra.mxu0 %v690
    %798 = vmatprep.subr.mxu0 0.0
    %799 = vmatpush1.msra.mxu0 %v689
    %800 = vmatprep.subr.mxu0 0.0
    %801 = vmatpush2.msra.mxu0 0.0
    %802 = vmatprep.subr.mxu0 0.0
    %803 = vmatpush2.msra.mxu0 0.0
    %804 = vmatprep.subr.mxu0 0.0
    %805 = vmatpush2.msra.mxu0 0.0
    %806 = vmatprep.subr.mxu0 0.0
    %807 = vmatpush2.msra.mxu0 0.0
    %808 = vmatprep.subr.mxu0 0.0
    %809 = vmatpush2.msra.mxu0 0.0
    %810 = vmatprep.subr.mxu0 0.0
    %811 = vmatpush2.msra.mxu0 0.0
    %812 = vmatprep.subr.mxu0 0.0
    %813 = vmatpush2.msra.mxu0 0.0
    %814 = vmatprep.subr.mxu0 0.0
    %815 = vmatpush2.msra.mxu0 0.0
    %816 = vmatprep.subr.mxu0 0.0
    %817 = vmatpush2.msra.mxu0 0.0
    %818 = vmatprep.subr.mxu0 0.0
    %819 = vmatpush2.msra.mxu0 0.0
    %820 = vmatprep.subr.mxu0 0.0
    %821 = vmatpush2.msra.mxu0 0.0
    %822 = vmatprep.subr.mxu0 0.0
    %823 = vmatpush2.msra.mxu0 0.0
    %824 = vmatprep.subr.mxu0 0.0
    %825 = vmatpush2.msra.mxu0 0.0
    %826 = vmatprep.subr.mxu0 0.0
    %827 = vmatpush2.msra.mxu0 0.0
    %828 = vmatprep.subr.mxu0 0.0
    %829 = vmatpush2.msra.mxu0 0.0
    %830 = vmatprep.subr.mxu0 0.0
    %831 = vmatpush2.msra.mxu0 0.0
    %832 = vmatprep.mubr.f32.mxu0 0.0
    %833 = vmatmul.mubr.f32.gmra.mxu0 %v766
    %v834 = vpop.f32.mrf.mxu0
    %v835 = vadd.f32 %v762, %v834
    %v836 = vpop.f32.mrf.mxu0
    %837 = vdwg.mxu0
    %v838 = vld [vmem:[#allocation8] sm:$0x1]
    %v840 = vlaneseq
    %v841 = vshrl.u32 %v840, 7
    %v842 = vsub.s32 0, %v841
    %v843 = vrot.slane %v838, %v842
    %v845 = vadd.f32 %v835, %v843
    %v846 = vxor.u32 %v845, 2147483648
    %v847 = vmul.f32 %v846, 1.442695
    %v848 = vpow.pop %v847
    %v849 = vadd.f32 %v848, 1.0
    %v850 = vrcp.pop %v849
    %v851 = vmul.f32 1.0, %v850
    %v852 = vtanh.pop %v845
    %v853 = vmul.f32 %v851, %v393
    %855 = vrot.lane.b32.xlu0 %v852, 32
    %v856 = vpop.permute.xlu0 %855
    %v858 = vmul.f32 %v851, %v856
    %860 = vrot.lane.b32.xlu0 %v858, 32
    %v861 = vpop.permute.xlu0 %860
    %v863 = vadd.f32 %v853, %v861
    %v864 = vtanh.pop %v863
    %866 = vrot.lane.b32.xlu0 %v864, 32
    %v867 = vpop.permute.xlu0 %866
    %v869 = vmul.f32 %v851, %v867
    %v870 = vld [vmem:[#allocation10] sm:$0xff]
    %v871 = vld [vmem:[#allocation10 + $0x8] sm:$0xff]
    %v872 = vld [vmem:[#allocation10 + $0x10] sm:$0xff]
    %v873 = vld [vmem:[#allocation10 + $0x18] sm:$0xff]
    %v874 = vld [vmem:[#allocation11] sm:$0xff]
    %v875 = vld [vmem:[#allocation11 + $0x8] sm:$0xff]
    %v876 = vld [vmem:[#allocation11 + $0x10] sm:$0xff]
    %v877 = vld [vmem:[#allocation11 + $0x18] sm:$0xff]
    %878 = vmatprep.subr.mxu0 0.0
    %879 = vmatpush1.msra.mxu0 0.0
    %880 = vmatprep.subr.mxu0 0.0
    %881 = vmatpush1.msra.mxu0 0.0
    %882 = vmatprep.subr.mxu0 0.0
    %883 = vmatpush1.msra.mxu0 0.0
    %884 = vmatprep.subr.mxu0 0.0
    %885 = vmatpush1.msra.mxu0 0.0
    %886 = vmatprep.subr.mxu0 0.0
    %887 = vmatpush1.msra.mxu0 0.0
    %888 = vmatprep.subr.mxu0 0.0
    %889 = vmatpush1.msra.mxu0 0.0
    %890 = vmatprep.subr.mxu0 0.0
    %891 = vmatpush1.msra.mxu0 0.0
    %892 = vmatprep.subr.mxu0 0.0
    %893 = vmatpush1.msra.mxu0 0.0
    %894 = vmatprep.subr.mxu0 0.0
    %895 = vmatpush1.msra.mxu0 0.0
    %896 = vmatprep.subr.mxu0 0.0
    %897 = vmatpush1.msra.mxu0 0.0
    %898 = vmatprep.subr.mxu0 0.0
    %899 = vmatpush1.msra.mxu0 0.0
    %900 = vmatprep.subr.mxu0 0.0
    %901 = vmatpush1.msra.mxu0 0.0
    %902 = vmatprep.subr.mxu0 0.0
    %903 = vmatpush1.msra.mxu0 %v877
    %904 = vmatprep.subr.mxu0 0.0
    %905 = vmatpush1.msra.mxu0 %v876
    %906 = vmatprep.subr.mxu0 0.0
    %907 = vmatpush1.msra.mxu0 %v875
    %908 = vmatprep.subr.mxu0 0.0
    %909 = vmatpush1.msra.mxu0 %v874
    %910 = vmatprep.subr.mxu0 0.0
    %911 = vmatpush2.msra.mxu0 0.0
    %912 = vmatprep.subr.mxu0 0.0
    %913 = vmatpush2.msra.mxu0 0.0
    %914 = vmatprep.subr.mxu0 0.0
    %915 = vmatpush2.msra.mxu0 0.0
    %916 = vmatprep.subr.mxu0 0.0
    %917 = vmatpush2.msra.mxu0 0.0
    %918 = vmatprep.subr.mxu0 0.0
    %919 = vmatpush2.msra.mxu0 0.0
    %920 = vmatprep.subr.mxu0 0.0
    %921 = vmatpush2.msra.mxu0 0.0
    %922 = vmatprep.subr.mxu0 0.0
    %923 = vmatpush2.msra.mxu0 0.0
    %924 = vmatprep.subr.mxu0 0.0
    %925 = vmatpush2.msra.mxu0 0.0
    %926 = vmatprep.subr.mxu0 0.0
    %927 = vmatpush2.msra.mxu0 0.0
    %928 = vmatprep.subr.mxu0 0.0
    %929 = vmatpush2.msra.mxu0 0.0
    %930 = vmatprep.subr.mxu0 0.0
    %931 = vmatpush2.msra.mxu0 0.0
    %932 = vmatprep.subr.mxu0 0.0
    %933 = vmatpush2.msra.mxu0 0.0
    %934 = vmatprep.subr.mxu0 0.0
    %935 = vmatpush2.msra.mxu0 0.0
    %936 = vmatprep.subr.mxu0 0.0
    %937 = vmatpush2.msra.mxu0 0.0
    %938 = vmatprep.subr.mxu0 0.0
    %939 = vmatpush2.msra.mxu0 0.0
    %940 = vmatprep.subr.mxu0 0.0
    %941 = vmatpush2.msra.mxu0 0.0
    %942 = vmatprep.mubr.f32.mxu0 0.0
    %943 = vmatmul.mubr.f32.gmra.mxu0 %v604
    %v944 = vpop.f32.mrf.mxu0
    %v945 = vadd.f32 0.0, %v944
    %v946 = vpop.f32.mrf.mxu0
    %947 = vdwg.mxu0
    %949 = vrot.lane.b32.xlu0 %v869, 64
    %v950 = vpop.permute.xlu0 %949
    %v951 = vsel %vm220, %v950, 0
    %953 = vmatprep.subr.mxu0 0.0
    %954 = vmatpush1.msra.mxu0 0.0
    %955 = vmatprep.subr.mxu0 0.0
    %956 = vmatpush1.msra.mxu0 0.0
    %957 = vmatprep.subr.mxu0 0.0
    %958 = vmatpush1.msra.mxu0 0.0
    %959 = vmatprep.subr.mxu0 0.0
    %960 = vmatpush1.msra.mxu0 0.0
    %961 = vmatprep.subr.mxu0 0.0
    %962 = vmatpush1.msra.mxu0 0.0
    %963 = vmatprep.subr.mxu0 0.0
    %964 = vmatpush1.msra.mxu0 0.0
    %965 = vmatprep.subr.mxu0 0.0
    %966 = vmatpush1.msra.mxu0 0.0
    %967 = vmatprep.subr.mxu0 0.0
    %968 = vmatpush1.msra.mxu0 0.0
    %969 = vmatprep.subr.mxu0 0.0
    %970 = vmatpush1.msra.mxu0 0.0
    %971 = vmatprep.subr.mxu0 0.0
    %972 = vmatpush1.msra.mxu0 0.0
    %973 = vmatprep.subr.mxu0 0.0
    %974 = vmatpush1.msra.mxu0 0.0
    %975 = vmatprep.subr.mxu0 0.0
    %976 = vmatpush1.msra.mxu0 0.0
    %977 = vmatprep.subr.mxu0 0.0
    %978 = vmatpush1.msra.mxu0 %v873
    %979 = vmatprep.subr.mxu0 0.0
    %980 = vmatpush1.msra.mxu0 %v872
    %981 = vmatprep.subr.mxu0 0.0
    %982 = vmatpush1.msra.mxu0 %v871
    %983 = vmatprep.subr.mxu0 0.0
    %984 = vmatpush1.msra.mxu0 %v870
    %985 = vmatprep.subr.mxu0 0.0
    %986 = vmatpush2.msra.mxu0 0.0
    %987 = vmatprep.subr.mxu0 0.0
    %988 = vmatpush2.msra.mxu0 0.0
    %989 = vmatprep.subr.mxu0 0.0
    %990 = vmatpush2.msra.mxu0 0.0
    %991 = vmatprep.subr.mxu0 0.0
    %992 = vmatpush2.msra.mxu0 0.0
    %993 = vmatprep.subr.mxu0 0.0
    %994 = vmatpush2.msra.mxu0 0.0
    %995 = vmatprep.subr.mxu0 0.0
    %996 = vmatpush2.msra.mxu0 0.0
    %997 = vmatprep.subr.mxu0 0.0
    %998 = vmatpush2.msra.mxu0 0.0
    %999 = vmatprep.subr.mxu0 0.0
    %1000 = vmatpush2.msra.mxu0 0.0
    %1001 = vmatprep.subr.mxu0 0.0
    %1002 = vmatpush2.msra.mxu0 0.0
    %1003 = vmatprep.subr.mxu0 0.0
    %1004 = vmatpush2.msra.mxu0 0.0
    %1005 = vmatprep.subr.mxu0 0.0
    %1006 = vmatpush2.msra.mxu0 0.0
    %1007 = vmatprep.subr.mxu0 0.0
    %1008 = vmatpush2.msra.mxu0 0.0
    %1009 = vmatprep.subr.mxu0 0.0
    %1010 = vmatpush2.msra.mxu0 0.0
    %1011 = vmatprep.subr.mxu0 0.0
    %1012 = vmatpush2.msra.mxu0 0.0
    %1013 = vmatprep.subr.mxu0 0.0
    %1014 = vmatpush2.msra.mxu0 0.0
    %1015 = vmatprep.subr.mxu0 0.0
    %1016 = vmatpush2.msra.mxu0 0.0
    %1017 = vmatprep.mubr.f32.mxu0 0.0
    %1018 = vmatmul.mubr.f32.gmra.mxu0 %v951
    %v1019 = vpop.f32.mrf.mxu0
    %v1020 = vadd.f32 %v945, %v1019
    %v1021 = vpop.f32.mrf.mxu0
    %1022 = vdwg.mxu0
    %v1023 = vld [vmem:[#allocation13] sm:$0x1]
    %v1025 = vlaneseq
    %v1026 = vshrl.u32 %v1025, 7
    %v1027 = vsub.s32 0, %v1026
    %v1028 = vrot.slane %v1023, %v1027
    %v1030 = vadd.f32 %v1020, %v1028
    %v1031 = vxor.u32 %v1030, 2147483648
    %v1032 = vmul.f32 %v1031, 1.442695
    %v1033 = vpow.pop %v1032
    %v1034 = vadd.f32 %v1033, 1.0
    %v1035 = vrcp.pop %v1034
    %v1036 = vmul.f32 1.0, %v1035
    %v1037 = vtanh.pop %v1030
    %v1038 = vmul.f32 %v1036, %v583
    %1040 = vrot.lane.b32.xlu0 %v1037, 32
    %v1041 = vpop.permute.xlu0 %1040
    %v1043 = vmul.f32 %v1036, %v1041
    %1045 = vrot.lane.b32.xlu0 %v1043, 32
    %v1046 = vpop.permute.xlu0 %1045
    %v1048 = vadd.f32 %v1038, %v1046
    %v1049 = vtanh.pop %v1048
    %1051 = vrot.lane.b32.xlu0 %v1049, 32
    %v1052 = vpop.permute.xlu0 %1051
    %v1054 = vmul.f32 %v1036, %v1052
    %v1055 = vld [vmem:[%s9] sm:$0xff]
    %v1056 = vld [vmem:[%s9 + $0x8] sm:$0xff]
    %v1057 = vld [vmem:[%s9 + $0x10] sm:$0xff]
    %v1058 = vld [vmem:[%s9 + $0x18] sm:$0xff]
    %v1059 = vld [vmem:[%s10] sm:$0x1]
    %v1061 = vlaneseq
    %v1062 = vshrl.u32 %v1061, 7
    %v1063 = vsub.s32 0, %v1062
    %v1064 = vrot.slane %v1059, %v1063
    %1067 = vrot.lane.b32.xlu0 %v1054, 64
    %v1068 = vpop.permute.xlu0 %1067
    %v1069 = vsel %vm220, %v1068, 0
    %1071 = vmatprep.subr.mxu0 0.0
    %1072 = vmatpush1.msra.mxu0 0.0
    %1073 = vmatprep.subr.mxu0 0.0
    %1074 = vmatpush1.msra.mxu0 0.0
    %1075 = vmatprep.subr.mxu0 0.0
    %1076 = vmatpush1.msra.mxu0 0.0
    %1077 = vmatprep.subr.mxu0 0.0
    %1078 = vmatpush1.msra.mxu0 0.0
    %1079 = vmatprep.subr.mxu0 0.0
    %1080 = vmatpush1.msra.mxu0 0.0
    %1081 = vmatprep.subr.mxu0 0.0
    %1082 = vmatpush1.msra.mxu0 0.0
    %1083 = vmatprep.subr.mxu0 0.0
    %1084 = vmatpush1.msra.mxu0 0.0
    %1085 = vmatprep.subr.mxu0 0.0
    %1086 = vmatpush1.msra.mxu0 0.0
    %1087 = vmatprep.subr.mxu0 0.0
    %1088 = vmatpush1.msra.mxu0 0.0
    %1089 = vmatprep.subr.mxu0 0.0
    %1090 = vmatpush1.msra.mxu0 0.0
    %1091 = vmatprep.subr.mxu0 0.0
    %1092 = vmatpush1.msra.mxu0 0.0
    %1093 = vmatprep.subr.mxu0 0.0
    %1094 = vmatpush1.msra.mxu0 0.0
    %1095 = vmatprep.subr.mxu0 0.0
    %1096 = vmatpush1.msra.mxu0 %v1058
    %1097 = vmatprep.subr.mxu0 0.0
    %1098 = vmatpush1.msra.mxu0 %v1057
    %1099 = vmatprep.subr.mxu0 0.0
    %1100 = vmatpush1.msra.mxu0 %v1056
    %1101 = vmatprep.subr.mxu0 0.0
    %1102 = vmatpush1.msra.mxu0 %v1055
    %1103 = vmatprep.subr.mxu0 0.0
    %1104 = vmatpush2.msra.mxu0 0.0
    %1105 = vmatprep.subr.mxu0 0.0
    %1106 = vmatpush2.msra.mxu0 0.0
    %1107 = vmatprep.subr.mxu0 0.0
    %1108 = vmatpush2.msra.mxu0 0.0
    %1109 = vmatprep.subr.mxu0 0.0
    %1110 = vmatpush2.msra.mxu0 0.0
    %1111 = vmatprep.subr.mxu0 0.0
    %1112 = vmatpush2.msra.mxu0 0.0
    %1113 = vmatprep.subr.mxu0 0.0
    %1114 = vmatpush2.msra.mxu0 0.0
    %1115 = vmatprep.subr.mxu0 0.0
    %1116 = vmatpush2.msra.mxu0 0.0
    %1117 = vmatprep.subr.mxu0 0.0
    %1118 = vmatpush2.msra.mxu0 0.0
    %1119 = vmatprep.subr.mxu0 0.0
    %1120 = vmatpush2.msra.mxu0 0.0
    %1121 = vmatprep.subr.mxu0 0.0
    %1122 = vmatpush2.msra.mxu0 0.0
    %1123 = vmatprep.subr.mxu0 0.0
    %1124 = vmatpush2.msra.mxu0 0.0
    %1125 = vmatprep.subr.mxu0 0.0
    %1126 = vmatpush2.msra.mxu0 0.0
    %1127 = vmatprep.subr.mxu0 0.0
    %1128 = vmatpush2.msra.mxu0 0.0
    %1129 = vmatprep.subr.mxu0 0.0
    %1130 = vmatpush2.msra.mxu0 0.0
    %1131 = vmatprep.subr.mxu0 0.0
    %1132 = vmatpush2.msra.mxu0 0.0
    %1133 = vmatprep.subr.mxu0 0.0
    %1134 = vmatpush2.msra.mxu0 0.0
    %1135 = vmatprep.mubr.f32.mxu0 0.0
    %1136 = vmatmul.mubr.f32.gmra.mxu0 %v1069
    %v1137 = vpop.f32.mrf.mxu0
    %v1138 = vadd.f32 %v1064, %v1137
    %v1139 = vpop.f32.mrf.mxu0
    %1140 = vdwg.mxu0
    %v1141 = vsel %vm294, %v1138, -inf
    %1142 = vmax.xlane.f32.xlu0 %v1141
    %v1143 = vpop.xlane.xlu0 %1142
    %v1144 = vsub.f32 %v1138, %v1143
    %v1145 = vmul.f32 %v1144, 1.442695
    %v1146 = vpow.pop %v1145
    %v1147 = vsel %vm294, %v1146, 0.0
    %1148 = vadd.xlane.f32.xlu0 %v1147
    %v1149 = vpop.xlane.xlu0 %1148
    %v1150 = vrcp.pop %v1149
    %v1151 = vmul.f32 %v1146, %v1150
    %1153 = vrot.lane.b32.xlu0 %v1138, 16
    %v1154 = vpop.permute.xlu0 %1153
    %vm1156 = vcmask 261248
    %1157 = vst.msk [vmem:[#allocation15] sm:$0xff] %vm1156, %v1154
    %1159 = vrot.lane.b32.xlu0 %v1151, 16
    %v1160 = vpop.permute.xlu0 %1159
    %1162 = vst.msk [vmem:[#allocation14] sm:$0xff] %vm1156, %v1160
    %v1163 = vld [vmem:[%s3] sm:$0xff]
    %v1164 = vld [vmem:[%s3 + $0x8] sm:$0xff]
    %v1165 = vld [vmem:[%s4] sm:$0xff]
    %v1166 = vld [vmem:[%s4 + $0x8] sm:$0xff]
    %v1167 = vld [vmem:[%s4 + $0x10] sm:$0xff]
    %v1168 = vld [vmem:[%s4 + $0x18] sm:$0xff]
    %1169 = vmatprep.subr.mxu0 0.0
    %1170 = vmatpush1.msra.mxu0 0.0
    %1171 = vmatprep.subr.mxu0 0.0
    %1172 = vmatpush1.msra.mxu0 0.0
    %1173 = vmatprep.subr.mxu0 0.0
    %1174 = vmatpush1.msra.mxu0 0.0
    %1175 = vmatprep.subr.mxu0 0.0
    %1176 = vmatpush1.msra.mxu0 0.0
    %1177 = vmatprep.subr.mxu0 0.0
    %1178 = vmatpush1.msra.mxu0 0.0
    %1179 = vmatprep.subr.mxu0 0.0
    %1180 = vmatpush1.msra.mxu0 0.0
    %1181 = vmatprep.subr.mxu0 0.0
    %1182 = vmatpush1.msra.mxu0 0.0
    %1183 = vmatprep.subr.mxu0 0.0
    %1184 = vmatpush1.msra.mxu0 0.0
    %1185 = vmatprep.subr.mxu0 0.0
    %1186 = vmatpush1.msra.mxu0 0.0
    %1187 = vmatprep.subr.mxu0 0.0
    %1188 = vmatpush1.msra.mxu0 0.0
    %1189 = vmatprep.subr.mxu0 0.0
    %1190 = vmatpush1.msra.mxu0 0.0
    %1191 = vmatprep.subr.mxu0 0.0
    %1192 = vmatpush1.msra.mxu0 0.0
    %1193 = vmatprep.subr.mxu0 0.0
    %1194 = vmatpush1.msra.mxu0 %v1168
    %1195 = vmatprep.subr.mxu0 0.0
    %1196 = vmatpush1.msra.mxu0 %v1167
    %1197 = vmatprep.subr.mxu0 0.0
    %1198 = vmatpush1.msra.mxu0 %v1166
    %1199 = vmatprep.subr.mxu0 0.0
    %1200 = vmatpush1.msra.mxu0 %v1165
    %1201 = vmatprep.subr.mxu0 0.0
    %1202 = vmatpush2.msra.mxu0 0.0
    %1203 = vmatprep.subr.mxu0 0.0
    %1204 = vmatpush2.msra.mxu0 0.0
    %1205 = vmatprep.subr.mxu0 0.0
    %1206 = vmatpush2.msra.mxu0 0.0
    %1207 = vmatprep.subr.mxu0 0.0
    %1208 = vmatpush2.msra.mxu0 0.0
    %1209 = vmatprep.subr.mxu0 0.0
    %1210 = vmatpush2.msra.mxu0 0.0
    %1211 = vmatprep.subr.mxu0 0.0
    %1212 = vmatpush2.msra.mxu0 0.0
    %1213 = vmatprep.subr.mxu0 0.0
    %1214 = vmatpush2.msra.mxu0 0.0
    %1215 = vmatprep.subr.mxu0 0.0
    %1216 = vmatpush2.msra.mxu0 0.0
    %1217 = vmatprep.subr.mxu0 0.0
    %1218 = vmatpush2.msra.mxu0 0.0
    %1219 = vmatprep.subr.mxu0 0.0
    %1220 = vmatpush2.msra.mxu0 0.0
    %1221 = vmatprep.subr.mxu0 0.0
    %1222 = vmatpush2.msra.mxu0 0.0
    %1223 = vmatprep.subr.mxu0 0.0
    %1224 = vmatpush2.msra.mxu0 0.0
    %1225 = vmatprep.subr.mxu0 0.0
    %1226 = vmatpush2.msra.mxu0 0.0
    %1227 = vmatprep.subr.mxu0 0.0
    %1228 = vmatpush2.msra.mxu0 0.0
    %1229 = vmatprep.subr.mxu0 0.0
    %1230 = vmatpush2.msra.mxu0 0.0
    %1231 = vmatprep.subr.mxu0 0.0
    %1232 = vmatpush2.msra.mxu0 0.0
    %1233 = vmatprep.mubr.f32.mxu0 0.0
    %1234 = vmatmul.mubr.f32.gmra.mxu0 %v951
    %v1235 = vpop.f32.mrf.mxu0
    %v1236 = vadd.f32 0.0, %v1235
    %v1237 = vpop.f32.mrf.mxu0
    %1238 = vdwg.mxu0
    %v1239 = vsel %vm294, %v1151, 0
    %1241 = vmatprep.subr.mxu0 0.0
    %1242 = vmatpush1.msra.mxu0 0.0
    %1243 = vmatprep.subr.mxu0 0.0
    %1244 = vmatpush1.msra.mxu0 0.0
    %1245 = vmatprep.subr.mxu0 0.0
    %1246 = vmatpush1.msra.mxu0 0.0
    %1247 = vmatprep.subr.mxu0 0.0
    %1248 = vmatpush1.msra.mxu0 0.0
    %1249 = vmatprep.subr.mxu0 0.0
    %1250 = vmatpush1.msra.mxu0 0.0
    %1251 = vmatprep.subr.mxu0 0.0
    %1252 = vmatpush1.msra.mxu0 0.0
    %1253 = vmatprep.subr.mxu0 0.0
    %1254 = vmatpush1.msra.mxu0 0.0
    %1255 = vmatprep.subr.mxu0 0.0
    %1256 = vmatpush1.msra.mxu0 0.0
    %1257 = vmatprep.subr.mxu0 0.0
    %1258 = vmatpush1.msra.mxu0 0.0
    %1259 = vmatprep.subr.mxu0 0.0
    %1260 = vmatpush1.msra.mxu0 0.0
    %1261 = vmatprep.subr.mxu0 0.0
    %1262 = vmatpush1.msra.mxu0 0.0
    %1263 = vmatprep.subr.mxu0 0.0
    %1264 = vmatpush1.msra.mxu0 0.0
    %1265 = vmatprep.subr.mxu0 0.0
    %1266 = vmatpush1.msra.mxu0 0.0
    %1267 = vmatprep.subr.mxu0 0.0
    %1268 = vmatpush1.msra.mxu0 0.0
    %1269 = vmatprep.subr.mxu0 0.0
    %1270 = vmatpush1.msra.mxu0 %v1164
    %1271 = vmatprep.subr.mxu0 0.0
    %1272 = vmatpush1.msra.mxu0 %v1163
    %1273 = vmatprep.subr.mxu0 0.0
    %1274 = vmatpush2.msra.mxu0 0.0
    %1275 = vmatprep.subr.mxu0 0.0
    %1276 = vmatpush2.msra.mxu0 0.0
    %1277 = vmatprep.subr.mxu0 0.0
    %1278 = vmatpush2.msra.mxu0 0.0
    %1279 = vmatprep.subr.mxu0 0.0
    %1280 = vmatpush2.msra.mxu0 0.0
    %1281 = vmatprep.subr.mxu0 0.0
    %1282 = vmatpush2.msra.mxu0 0.0
    %1283 = vmatprep.subr.mxu0 0.0
    %1284 = vmatpush2.msra.mxu0 0.0
    %1285 = vmatprep.subr.mxu0 0.0
    %1286 = vmatpush2.msra.mxu0 0.0
    %1287 = vmatprep.subr.mxu0 0.0
    %1288 = vmatpush2.msra.mxu0 0.0
    %1289 = vmatprep.subr.mxu0 0.0
    %1290 = vmatpush2.msra.mxu0 0.0
    %1291 = vmatprep.subr.mxu0 0.0
    %1292 = vmatpush2.msra.mxu0 0.0
    %1293 = vmatprep.subr.mxu0 0.0
    %1294 = vmatpush2.msra.mxu0 0.0
    %1295 = vmatprep.subr.mxu0 0.0
    %1296 = vmatpush2.msra.mxu0 0.0
    %1297 = vmatprep.subr.mxu0 0.0
    %1298 = vmatpush2.msra.mxu0 0.0
    %1299 = vmatprep.subr.mxu0 0.0
    %1300 = vmatpush2.msra.mxu0 0.0
    %1301 = vmatprep.subr.mxu0 0.0
    %1302 = vmatpush2.msra.mxu0 0.0
    %1303 = vmatprep.subr.mxu0 0.0
    %1304 = vmatpush2.msra.mxu0 0.0
    %1305 = vmatprep.mubr.f32.mxu0 0.0
    %1306 = vmatmul.mubr.f32.gmra.mxu0 %v1239
    %v1307 = vpop.f32.mrf.mxu0
    %v1308 = vadd.f32 %v1236, %v1307
    %v1309 = vpop.f32.mrf.mxu0
    %1310 = vdwg.mxu0
    %v1311 = vld [vmem:[#allocation8] sm:$0x1]
    %v1313 = vlaneseq
    %v1314 = vshrl.u32 %v1313, 7
    %v1315 = vsub.s32 0, %v1314
    %v1316 = vrot.slane %v1311, %v1315
    %v1318 = vadd.f32 %v1308, %v1316
    %v1319 = vxor.u32 %v1318, 2147483648
    %v1320 = vmul.f32 %v1319, 1.442695
    %v1321 = vpow.pop %v1320
    %v1322 = vadd.f32 %v1321, 1.0
    %v1323 = vrcp.pop %v1322
    %v1324 = vmul.f32 1.0, %v1323
    %v1325 = vtanh.pop %v1318
    %v1326 = vmul.f32 %v1324, %v863
    %1328 = vrot.lane.b32.xlu0 %v1325, 32
    %v1329 = vpop.permute.xlu0 %1328
    %v1331 = vmul.f32 %v1324, %v1329
    %1333 = vrot.lane.b32.xlu0 %v1331, 32
    %v1334 = vpop.permute.xlu0 %1333
    %v1336 = vadd.f32 %v1326, %v1334
    %v1337 = vtanh.pop %v1336
    %1339 = vrot.lane.b32.xlu0 %v1337, 32
    %v1340 = vpop.permute.xlu0 %1339
    %v1342 = vmul.f32 %v1324, %v1340
    %v1343 = vld [vmem:[#allocation10] sm:$0xff]
    %v1344 = vld [vmem:[#allocation10 + $0x8] sm:$0xff]
    %v1345 = vld [vmem:[#allocation10 + $0x10] sm:$0xff]
    %v1346 = vld [vmem:[#allocation10 + $0x18] sm:$0xff]
    %v1347 = vld [vmem:[#allocation11] sm:$0xff]
    %v1348 = vld [vmem:[#allocation11 + $0x8] sm:$0xff]
    %v1349 = vld [vmem:[#allocation11 + $0x10] sm:$0xff]
    %v1350 = vld [vmem:[#allocation11 + $0x18] sm:$0xff]
    %1351 = vmatprep.subr.mxu0 0.0
    %1352 = vmatpush1.msra.mxu0 0.0
    %1353 = vmatprep.subr.mxu0 0.0
    %1354 = vmatpush1.msra.mxu0 0.0
    %1355 = vmatprep.subr.mxu0 0.0
    %1356 = vmatpush1.msra.mxu0 0.0
    %1357 = vmatprep.subr.mxu0 0.0
    %1358 = vmatpush1.msra.mxu0 0.0
    %1359 = vmatprep.subr.mxu0 0.0
    %1360 = vmatpush1.msra.mxu0 0.0
    %1361 = vmatprep.subr.mxu0 0.0
    %1362 = vmatpush1.msra.mxu0 0.0
    %1363 = vmatprep.subr.mxu0 0.0
    %1364 = vmatpush1.msra.mxu0 0.0
    %1365 = vmatprep.subr.mxu0 0.0
    %1366 = vmatpush1.msra.mxu0 0.0
    %1367 = vmatprep.subr.mxu0 0.0
    %1368 = vmatpush1.msra.mxu0 0.0
    %1369 = vmatprep.subr.mxu0 0.0
    %1370 = vmatpush1.msra.mxu0 0.0
    %1371 = vmatprep.subr.mxu0 0.0
    %1372 = vmatpush1.msra.mxu0 0.0
    %1373 = vmatprep.subr.mxu0 0.0
    %1374 = vmatpush1.msra.mxu0 0.0
    %1375 = vmatprep.subr.mxu0 0.0
    %1376 = vmatpush1.msra.mxu0 %v1350
    %1377 = vmatprep.subr.mxu0 0.0
    %1378 = vmatpush1.msra.mxu0 %v1349
    %1379 = vmatprep.subr.mxu0 0.0
    %1380 = vmatpush1.msra.mxu0 %v1348
    %1381 = vmatprep.subr.mxu0 0.0
    %1382 = vmatpush1.msra.mxu0 %v1347
    %1383 = vmatprep.subr.mxu0 0.0
    %1384 = vmatpush2.msra.mxu0 0.0
    %1385 = vmatprep.subr.mxu0 0.0
    %1386 = vmatpush2.msra.mxu0 0.0
    %1387 = vmatprep.subr.mxu0 0.0
    %1388 = vmatpush2.msra.mxu0 0.0
    %1389 = vmatprep.subr.mxu0 0.0
    %1390 = vmatpush2.msra.mxu0 0.0
    %1391 = vmatprep.subr.mxu0 0.0
    %1392 = vmatpush2.msra.mxu0 0.0
    %1393 = vmatprep.subr.mxu0 0.0
    %1394 = vmatpush2.msra.mxu0 0.0
    %1395 = vmatprep.subr.mxu0 0.0
    %1396 = vmatpush2.msra.mxu0 0.0
    %1397 = vmatprep.subr.mxu0 0.0
    %1398 = vmatpush2.msra.mxu0 0.0
    %1399 = vmatprep.subr.mxu0 0.0
    %1400 = vmatpush2.msra.mxu0 0.0
    %1401 = vmatprep.subr.mxu0 0.0
    %1402 = vmatpush2.msra.mxu0 0.0
    %1403 = vmatprep.subr.mxu0 0.0
    %1404 = vmatpush2.msra.mxu0 0.0
    %1405 = vmatprep.subr.mxu0 0.0
    %1406 = vmatpush2.msra.mxu0 0.0
    %1407 = vmatprep.subr.mxu0 0.0
    %1408 = vmatpush2.msra.mxu0 0.0
    %1409 = vmatprep.subr.mxu0 0.0
    %1410 = vmatpush2.msra.mxu0 0.0
    %1411 = vmatprep.subr.mxu0 0.0
    %1412 = vmatpush2.msra.mxu0 0.0
    %1413 = vmatprep.subr.mxu0 0.0
    %1414 = vmatpush2.msra.mxu0 0.0
    %1415 = vmatprep.mubr.f32.mxu0 0.0
    %1416 = vmatmul.mubr.f32.gmra.mxu0 %v1069
    %v1417 = vpop.f32.mrf.mxu0
    %v1418 = vadd.f32 0.0, %v1417
    %v1419 = vpop.f32.mrf.mxu0
    %1420 = vdwg.mxu0
    %1422 = vrot.lane.b32.xlu0 %v1342, 64
    %v1423 = vpop.permute.xlu0 %1422
    %v1424 = vsel %vm220, %v1423, 0
    %1426 = vmatprep.subr.mxu0 0.0
    %1427 = vmatpush1.msra.mxu0 0.0
    %1428 = vmatprep.subr.mxu0 0.0
    %1429 = vmatpush1.msra.mxu0 0.0
    %1430 = vmatprep.subr.mxu0 0.0
    %1431 = vmatpush1.msra.mxu0 0.0
    %1432 = vmatprep.subr.mxu0 0.0
    %1433 = vmatpush1.msra.mxu0 0.0
    %1434 = vmatprep.subr.mxu0 0.0
    %1435 = vmatpush1.msra.mxu0 0.0
    %1436 = vmatprep.subr.mxu0 0.0
    %1437 = vmatpush1.msra.mxu0 0.0
    %1438 = vmatprep.subr.mxu0 0.0
    %1439 = vmatpush1.msra.mxu0 0.0
    %1440 = vmatprep.subr.mxu0 0.0
    %1441 = vmatpush1.msra.mxu0 0.0
    %1442 = vmatprep.subr.mxu0 0.0
    %1443 = vmatpush1.msra.mxu0 0.0
    %1444 = vmatprep.subr.mxu0 0.0
    %1445 = vmatpush1.msra.mxu0 0.0
    %1446 = vmatprep.subr.mxu0 0.0
    %1447 = vmatpush1.msra.mxu0 0.0
    %1448 = vmatprep.subr.mxu0 0.0
    %1449 = vmatpush1.msra.mxu0 0.0
    %1450 = vmatprep.subr.mxu0 0.0
    %1451 = vmatpush1.msra.mxu0 %v1346
    %1452 = vmatprep.subr.mxu0 0.0
    %1453 = vmatpush1.msra.mxu0 %v1345
    %1454 = vmatprep.subr.mxu0 0.0
    %1455 = vmatpush1.msra.mxu0 %v1344
    %1456 = vmatprep.subr.mxu0 0.0
    %1457 = vmatpush1.msra.mxu0 %v1343
    %1458 = vmatprep.subr.mxu0 0.0
    %1459 = vmatpush2.msra.mxu0 0.0
    %1460 = vmatprep.subr.mxu0 0.0
    %1461 = vmatpush2.msra.mxu0 0.0
    %1462 = vmatprep.subr.mxu0 0.0
    %1463 = vmatpush2.msra.mxu0 0.0
    %1464 = vmatprep.subr.mxu0 0.0
    %1465 = vmatpush2.msra.mxu0 0.0
    %1466 = vmatprep.subr.mxu0 0.0
    %1467 = vmatpush2.msra.mxu0 0.0
    %1468 = vmatprep.subr.mxu0 0.0
    %1469 = vmatpush2.msra.mxu0 0.0
    %1470 = vmatprep.subr.mxu0 0.0
    %1471 = vmatpush2.msra.mxu0 0.0
    %1472 = vmatprep.subr.mxu0 0.0
    %1473 = vmatpush2.msra.mxu0 0.0
    %1474 = vmatprep.subr.mxu0 0.0
    %1475 = vmatpush2.msra.mxu0 0.0
    %1476 = vmatprep.subr.mxu0 0.0
    %1477 = vmatpush2.msra.mxu0 0.0
    %1478 = vmatprep.subr.mxu0 0.0
    %1479 = vmatpush2.msra.mxu0 0.0
    %1480 = vmatprep.subr.mxu0 0.0
    %1481 = vmatpush2.msra.mxu0 0.0
    %1482 = vmatprep.subr.mxu0 0.0
    %1483 = vmatpush2.msra.mxu0 0.0
    %1484 = vmatprep.subr.mxu0 0.0
    %1485 = vmatpush2.msra.mxu0 0.0
    %1486 = vmatprep.subr.mxu0 0.0
    %1487 = vmatpush2.msra.mxu0 0.0
    %1488 = vmatprep.subr.mxu0 0.0
    %1489 = vmatpush2.msra.mxu0 0.0
    %1490 = vmatprep.mubr.f32.mxu0 0.0
    %1491 = vmatmul.mubr.f32.gmra.mxu0 %v1424
    %v1492 = vpop.f32.mrf.mxu0
    %v1493 = vadd.f32 %v1418, %v1492
    %v1494 = vpop.f32.mrf.mxu0
    %1495 = vdwg.mxu0
    %v1496 = vld [vmem:[#allocation13] sm:$0x1]
    %v1498 = vlaneseq
    %v1499 = vshrl.u32 %v1498, 7
    %v1500 = vsub.s32 0, %v1499
    %v1501 = vrot.slane %v1496, %v1500
    %v1503 = vadd.f32 %v1493, %v1501
    %v1504 = vxor.u32 %v1503, 2147483648
    %v1505 = vmul.f32 %v1504, 1.442695
    %v1506 = vpow.pop %v1505
    %v1507 = vadd.f32 %v1506, 1.0
    %v1508 = vrcp.pop %v1507
    %v1509 = vmul.f32 1.0, %v1508
    %v1510 = vtanh.pop %v1503
    %v1511 = vmul.f32 %v1509, %v1048
    %1513 = vrot.lane.b32.xlu0 %v1510, 32
    %v1514 = vpop.permute.xlu0 %1513
    %v1516 = vmul.f32 %v1509, %v1514
    %1518 = vrot.lane.b32.xlu0 %v1516, 32
    %v1519 = vpop.permute.xlu0 %1518
    %v1521 = vadd.f32 %v1511, %v1519
    %v1522 = vtanh.pop %v1521
    %1524 = vrot.lane.b32.xlu0 %v1522, 32
    %v1525 = vpop.permute.xlu0 %1524
    %v1527 = vmul.f32 %v1509, %v1525
    %v1528 = vld [vmem:[%s9] sm:$0xff]
    %v1529 = vld [vmem:[%s9 + $0x8] sm:$0xff]
    %v1530 = vld [vmem:[%s9 + $0x10] sm:$0xff]
    %v1531 = vld [vmem:[%s9 + $0x18] sm:$0xff]
    %v1532 = vld [vmem:[%s10] sm:$0x1]
    %v1534 = vlaneseq
    %v1535 = vshrl.u32 %v1534, 7
    %v1536 = vsub.s32 0, %v1535
    %v1537 = vrot.slane %v1532, %v1536
    %1540 = vrot.lane.b32.xlu0 %v1527, 64
    %v1541 = vpop.permute.xlu0 %1540
    %v1542 = vsel %vm220, %v1541, 0
    %1544 = vmatprep.subr.mxu0 0.0
    %1545 = vmatpush1.msra.mxu0 0.0
    %1546 = vmatprep.subr.mxu0 0.0
    %1547 = vmatpush1.msra.mxu0 0.0
    %1548 = vmatprep.subr.mxu0 0.0
    %1549 = vmatpush1.msra.mxu0 0.0
    %1550 = vmatprep.subr.mxu0 0.0
    %1551 = vmatpush1.msra.mxu0 0.0
    %1552 = vmatprep.subr.mxu0 0.0
    %1553 = vmatpush1.msra.mxu0 0.0
    %1554 = vmatprep.subr.mxu0 0.0
    %1555 = vmatpush1.msra.mxu0 0.0
    %1556 = vmatprep.subr.mxu0 0.0
    %1557 = vmatpush1.msra.mxu0 0.0
    %1558 = vmatprep.subr.mxu0 0.0
    %1559 = vmatpush1.msra.mxu0 0.0
    %1560 = vmatprep.subr.mxu0 0.0
    %1561 = vmatpush1.msra.mxu0 0.0
    %1562 = vmatprep.subr.mxu0 0.0
    %1563 = vmatpush1.msra.mxu0 0.0
    %1564 = vmatprep.subr.mxu0 0.0
    %1565 = vmatpush1.msra.mxu0 0.0
    %1566 = vmatprep.subr.mxu0 0.0
    %1567 = vmatpush1.msra.mxu0 0.0
    %1568 = vmatprep.subr.mxu0 0.0
    %1569 = vmatpush1.msra.mxu0 %v1531
    %1570 = vmatprep.subr.mxu0 0.0
    %1571 = vmatpush1.msra.mxu0 %v1530
    %1572 = vmatprep.subr.mxu0 0.0
    %1573 = vmatpush1.msra.mxu0 %v1529
    %1574 = vmatprep.subr.mxu0 0.0
    %1575 = vmatpush1.msra.mxu0 %v1528
    %1576 = vmatprep.subr.mxu0 0.0
    %1577 = vmatpush2.msra.mxu0 0.0
    %1578 = vmatprep.subr.mxu0 0.0
    %1579 = vmatpush2.msra.mxu0 0.0
    %1580 = vmatprep.subr.mxu0 0.0
    %1581 = vmatpush2.msra.mxu0 0.0
    %1582 = vmatprep.subr.mxu0 0.0
    %1583 = vmatpush2.msra.mxu0 0.0
    %1584 = vmatprep.subr.mxu0 0.0
    %1585 = vmatpush2.msra.mxu0 0.0
    %1586 = vmatprep.subr.mxu0 0.0
    %1587 = vmatpush2.msra.mxu0 0.0
    %1588 = vmatprep.subr.mxu0 0.0
    %1589 = vmatpush2.msra.mxu0 0.0
    %1590 = vmatprep.subr.mxu0 0.0
    %1591 = vmatpush2.msra.mxu0 0.0
    %1592 = vmatprep.subr.mxu0 0.0
    %1593 = vmatpush2.msra.mxu0 0.0
    %1594 = vmatprep.subr.mxu0 0.0
    %1595 = vmatpush2.msra.mxu0 0.0
    %1596 = vmatprep.subr.mxu0 0.0
    %1597 = vmatpush2.msra.mxu0 0.0
    %1598 = vmatprep.subr.mxu0 0.0
    %1599 = vmatpush2.msra.mxu0 0.0
    %1600 = vmatprep.subr.mxu0 0.0
    %1601 = vmatpush2.msra.mxu0 0.0
    %1602 = vmatprep.subr.mxu0 0.0
    %1603 = vmatpush2.msra.mxu0 0.0
    %1604 = vmatprep.subr.mxu0 0.0
    %1605 = vmatpush2.msra.mxu0 0.0
    %1606 = vmatprep.subr.mxu0 0.0
    %1607 = vmatpush2.msra.mxu0 0.0
    %1608 = vmatprep.mubr.f32.mxu0 0.0
    %1609 = vmatmul.mubr.f32.gmra.mxu0 %v1542
    %v1610 = vpop.f32.mrf.mxu0
    %v1611 = vadd.f32 %v1537, %v1610
    %v1612 = vpop.f32.mrf.mxu0
    %1613 = vdwg.mxu0
    %v1614 = vsel %vm294, %v1611, -inf
    %1615 = vmax.xlane.f32.xlu0 %v1614
    %v1616 = vpop.xlane.xlu0 %1615
    %v1617 = vsub.f32 %v1611, %v1616
    %v1618 = vmul.f32 %v1617, 1.442695
    %v1619 = vpow.pop %v1618
    %v1620 = vsel %vm294, %v1619, 0.0
    %1621 = vadd.xlane.f32.xlu0 %v1620
    %v1622 = vpop.xlane.xlu0 %1621
    %v1623 = vrcp.pop %v1622
    %v1624 = vmul.f32 %v1619, %v1623
    %1626 = vrot.lane.b32.xlu0 %v1611, 32
    %v1627 = vpop.permute.xlu0 %1626
    %vm1629 = vcmask 392448
    %1630 = vst.msk [vmem:[#allocation15] sm:$0xff] %vm1629, %v1627
    %1632 = vrot.lane.b32.xlu0 %v1624, 32
    %v1633 = vpop.permute.xlu0 %1632
    %1635 = vst.msk [vmem:[#allocation14] sm:$0xff] %vm1629, %v1633
    %v1636 = vld [vmem:[%s3] sm:$0xff]
    %v1637 = vld [vmem:[%s3 + $0x8] sm:$0xff]
    %v1638 = vld [vmem:[%s4] sm:$0xff]
    %v1639 = vld [vmem:[%s4 + $0x8] sm:$0xff]
    %v1640 = vld [vmem:[%s4 + $0x10] sm:$0xff]
    %v1641 = vld [vmem:[%s4 + $0x18] sm:$0xff]
    %1642 = vmatprep.subr.mxu0 0.0
    %1643 = vmatpush1.msra.mxu0 0.0
    %1644 = vmatprep.subr.mxu0 0.0
    %1645 = vmatpush1.msra.mxu0 0.0
    %1646 = vmatprep.subr.mxu0 0.0
    %1647 = vmatpush1.msra.mxu0 0.0
    %1648 = vmatprep.subr.mxu0 0.0
    %1649 = vmatpush1.msra.mxu0 0.0
    %1650 = vmatprep.subr.mxu0 0.0
    %1651 = vmatpush1.msra.mxu0 0.0
    %1652 = vmatprep.subr.mxu0 0.0
    %1653 = vmatpush1.msra.mxu0 0.0
    %1654 = vmatprep.subr.mxu0 0.0
    %1655 = vmatpush1.msra.mxu0 0.0
    %1656 = vmatprep.subr.mxu0 0.0
    %1657 = vmatpush1.msra.mxu0 0.0
    %1658 = vmatprep.subr.mxu0 0.0
    %1659 = vmatpush1.msra.mxu0 0.0
    %1660 = vmatprep.subr.mxu0 0.0
    %1661 = vmatpush1.msra.mxu0 0.0
    %1662 = vmatprep.subr.mxu0 0.0
    %1663 = vmatpush1.msra.mxu0 0.0
    %1664 = vmatprep.subr.mxu0 0.0
    %1665 = vmatpush1.msra.mxu0 0.0
    %1666 = vmatprep.subr.mxu0 0.0
    %1667 = vmatpush1.msra.mxu0 %v1641
    %1668 = vmatprep.subr.mxu0 0.0
    %1669 = vmatpush1.msra.mxu0 %v1640
    %1670 = vmatprep.subr.mxu0 0.0
    %1671 = vmatpush1.msra.mxu0 %v1639
    %1672 = vmatprep.subr.mxu0 0.0
    %1673 = vmatpush1.msra.mxu0 %v1638
    %1674 = vmatprep.subr.mxu0 0.0
    %1675 = vmatpush2.msra.mxu0 0.0
    %1676 = vmatprep.subr.mxu0 0.0
    %1677 = vmatpush2.msra.mxu0 0.0
    %1678 = vmatprep.subr.mxu0 0.0
    %1679 = vmatpush2.msra.mxu0 0.0
    %1680 = vmatprep.subr.mxu0 0.0
    %1681 = vmatpush2.msra.mxu0 0.0
    %1682 = vmatprep.subr.mxu0 0.0
    %1683 = vmatpush2.msra.mxu0 0.0
    %1684 = vmatprep.subr.mxu0 0.0
    %1685 = vmatpush2.msra.mxu0 0.0
    %1686 = vmatprep.subr.mxu0 0.0
    %1687 = vmatpush2.msra.mxu0 0.0
    %1688 = vmatprep.subr.mxu0 0.0
    %1689 = vmatpush2.msra.mxu0 0.0
    %1690 = vmatprep.subr.mxu0 0.0
    %1691 = vmatpush2.msra.mxu0 0.0
    %1692 = vmatprep.subr.mxu0 0.0
    %1693 = vmatpush2.msra.mxu0 0.0
    %1694 = vmatprep.subr.mxu0 0.0
    %1695 = vmatpush2.msra.mxu0 0.0
    %1696 = vmatprep.subr.mxu0 0.0
    %1697 = vmatpush2.msra.mxu0 0.0
    %1698 = vmatprep.subr.mxu0 0.0
    %1699 = vmatpush2.msra.mxu0 0.0
    %1700 = vmatprep.subr.mxu0 0.0
    %1701 = vmatpush2.msra.mxu0 0.0
    %1702 = vmatprep.subr.mxu0 0.0
    %1703 = vmatpush2.msra.mxu0 0.0
    %1704 = vmatprep.subr.mxu0 0.0
    %1705 = vmatpush2.msra.mxu0 0.0
    %1706 = vmatprep.mubr.f32.mxu0 0.0
    %1707 = vmatmul.mubr.f32.gmra.mxu0 %v1424
    %v1708 = vpop.f32.mrf.mxu0
    %v1709 = vadd.f32 0.0, %v1708
    %v1710 = vpop.f32.mrf.mxu0
    %1711 = vdwg.mxu0
    %v1712 = vsel %vm294, %v1624, 0
    %1714 = vmatprep.subr.mxu0 0.0
    %1715 = vmatpush1.msra.mxu0 0.0
    %1716 = vmatprep.subr.mxu0 0.0
    %1717 = vmatpush1.msra.mxu0 0.0
    %1718 = vmatprep.subr.mxu0 0.0
    %1719 = vmatpush1.msra.mxu0 0.0
    %1720 = vmatprep.subr.mxu0 0.0
    %1721 = vmatpush1.msra.mxu0 0.0
    %1722 = vmatprep.subr.mxu0 0.0
    %1723 = vmatpush1.msra.mxu0 0.0
    %1724 = vmatprep.subr.mxu0 0.0
    %1725 = vmatpush1.msra.mxu0 0.0
    %1726 = vmatprep.subr.mxu0 0.0
    %1727 = vmatpush1.msra.mxu0 0.0
    %1728 = vmatprep.subr.mxu0 0.0
    %1729 = vmatpush1.msra.mxu0 0.0
    %1730 = vmatprep.subr.mxu0 0.0
    %1731 = vmatpush1.msra.mxu0 0.0
    %1732 = vmatprep.subr.mxu0 0.0
    %1733 = vmatpush1.msra.mxu0 0.0
    %1734 = vmatprep.subr.mxu0 0.0
    %1735 = vmatpush1.msra.mxu0 0.0
    %1736 = vmatprep.subr.mxu0 0.0
    %1737 = vmatpush1.msra.mxu0 0.0
    %1738 = vmatprep.subr.mxu0 0.0
    %1739 = vmatpush1.msra.mxu0 0.0
    %1740 = vmatprep.subr.mxu0 0.0
    %1741 = vmatpush1.msra.mxu0 0.0
    %1742 = vmatprep.subr.mxu0 0.0
    %1743 = vmatpush1.msra.mxu0 %v1637
    %1744 = vmatprep.subr.mxu0 0.0
    %1745 = vmatpush1.msra.mxu0 %v1636
    %1746 = vmatprep.subr.mxu0 0.0
    %1747 = vmatpush2.msra.mxu0 0.0
    %1748 = vmatprep.subr.mxu0 0.0
    %1749 = vmatpush2.msra.mxu0 0.0
    %1750 = vmatprep.subr.mxu0 0.0
    %1751 = vmatpush2.msra.mxu0 0.0
    %1752 = vmatprep.subr.mxu0 0.0
    %1753 = vmatpush2.msra.mxu0 0.0
    %1754 = vmatprep.subr.mxu0 0.0
    %1755 = vmatpush2.msra.mxu0 0.0
    %1756 = vmatprep.subr.mxu0 0.0
    %1757 = vmatpush2.msra.mxu0 0.0
    %1758 = vmatprep.subr.mxu0 0.0
    %1759 = vmatpush2.msra.mxu0 0.0
    %1760 = vmatprep.subr.mxu0 0.0
    %1761 = vmatpush2.msra.mxu0 0.0
    %1762 = vmatprep.subr.mxu0 0.0
    %1763 = vmatpush2.msra.mxu0 0.0
    %1764 = vmatprep.subr.mxu0 0.0
    %1765 = vmatpush2.msra.mxu0 0.0
    %1766 = vmatprep.subr.mxu0 0.0
    %1767 = vmatpush2.msra.mxu0 0.0
    %1768 = vmatprep.subr.mxu0 0.0
    %1769 = vmatpush2.msra.mxu0 0.0
    %1770 = vmatprep.subr.mxu0 0.0
    %1771 = vmatpush2.msra.mxu0 0.0
    %1772 = vmatprep.subr.mxu0 0.0
    %1773 = vmatpush2.msra.mxu0 0.0
    %1774 = vmatprep.subr.mxu0 0.0
    %1775 = vmatpush2.msra.mxu0 0.0
    %1776 = vmatprep.subr.mxu0 0.0
    %1777 = vmatpush2.msra.mxu0 0.0
    %1778 = vmatprep.mubr.f32.mxu0 0.0
    %1779 = vmatmul.mubr.f32.gmra.mxu0 %v1712
    %v1780 = vpop.f32.mrf.mxu0
    %v1781 = vadd.f32 %v1709, %v1780
    %v1782 = vpop.f32.mrf.mxu0
    %1783 = vdwg.mxu0
    %v1784 = vld [vmem:[#allocation8] sm:$0x1]
    %v1786 = vlaneseq
    %v1787 = vshrl.u32 %v1786, 7
    %v1788 = vsub.s32 0, %v1787
    %v1789 = vrot.slane %v1784, %v1788
    %v1791 = vadd.f32 %v1781, %v1789
    %v1792 = vxor.u32 %v1791, 2147483648
    %v1793 = vmul.f32 %v1792, 1.442695
    %v1794 = vpow.pop %v1793
    %v1795 = vadd.f32 %v1794, 1.0
    %v1796 = vrcp.pop %v1795
    %v1797 = vmul.f32 1.0, %v1796
    %v1798 = vtanh.pop %v1791
    %v1799 = vmul.f32 %v1797, %v1336
    %1801 = vrot.lane.b32.xlu0 %v1798, 32
    %v1802 = vpop.permute.xlu0 %1801
    %v1804 = vmul.f32 %v1797, %v1802
    %1806 = vrot.lane.b32.xlu0 %v1804, 32
    %v1807 = vpop.permute.xlu0 %1806
    %v1809 = vadd.f32 %v1799, %v1807
    %v1810 = vtanh.pop %v1809
    %1812 = vrot.lane.b32.xlu0 %v1810, 32
    %v1813 = vpop.permute.xlu0 %1812
    %v1815 = vmul.f32 %v1797, %v1813
    %v1816 = vld [vmem:[#allocation10] sm:$0xff]
    %v1817 = vld [vmem:[#allocation10 + $0x8] sm:$0xff]
    %v1818 = vld [vmem:[#allocation10 + $0x10] sm:$0xff]
    %v1819 = vld [vmem:[#allocation10 + $0x18] sm:$0xff]
    %v1820 = vld [vmem:[#allocation11] sm:$0xff]
    %v1821 = vld [vmem:[#allocation11 + $0x8] sm:$0xff]
    %v1822 = vld [vmem:[#allocation11 + $0x10] sm:$0xff]
    %v1823 = vld [vmem:[#allocation11 + $0x18] sm:$0xff]
    %1824 = vmatprep.subr.mxu0 0.0
    %1825 = vmatpush1.msra.mxu0 0.0
    %1826 = vmatprep.subr.mxu0 0.0
    %1827 = vmatpush1.msra.mxu0 0.0
    %1828 = vmatprep.subr.mxu0 0.0
    %1829 = vmatpush1.msra.mxu0 0.0
    %1830 = vmatprep.subr.mxu0 0.0
    %1831 = vmatpush1.msra.mxu0 0.0
    %1832 = vmatprep.subr.mxu0 0.0
    %1833 = vmatpush1.msra.mxu0 0.0
    %1834 = vmatprep.subr.mxu0 0.0
    %1835 = vmatpush1.msra.mxu0 0.0
    %1836 = vmatprep.subr.mxu0 0.0
    %1837 = vmatpush1.msra.mxu0 0.0
    %1838 = vmatprep.subr.mxu0 0.0
    %1839 = vmatpush1.msra.mxu0 0.0
    %1840 = vmatprep.subr.mxu0 0.0
    %1841 = vmatpush1.msra.mxu0 0.0
    %1842 = vmatprep.subr.mxu0 0.0
    %1843 = vmatpush1.msra.mxu0 0.0
    %1844 = vmatprep.subr.mxu0 0.0
    %1845 = vmatpush1.msra.mxu0 0.0
    %1846 = vmatprep.subr.mxu0 0.0
    %1847 = vmatpush1.msra.mxu0 0.0
    %1848 = vmatprep.subr.mxu0 0.0
    %1849 = vmatpush1.msra.mxu0 %v1823
    %1850 = vmatprep.subr.mxu0 0.0
    %1851 = vmatpush1.msra.mxu0 %v1822
    %1852 = vmatprep.subr.mxu0 0.0
    %1853 = vmatpush1.msra.mxu0 %v1821
    %1854 = vmatprep.subr.mxu0 0.0
    %1855 = vmatpush1.msra.mxu0 %v1820
    %1856 = vmatprep.subr.mxu0 0.0
    %1857 = vmatpush2.msra.mxu0 0.0
    %1858 = vmatprep.subr.mxu0 0.0
    %1859 = vmatpush2.msra.mxu0 0.0
    %1860 = vmatprep.subr.mxu0 0.0
    %1861 = vmatpush2.msra.mxu0 0.0
    %1862 = vmatprep.subr.mxu0 0.0
    %1863 = vmatpush2.msra.mxu0 0.0
    %1864 = vmatprep.subr.mxu0 0.0
    %1865 = vmatpush2.msra.mxu0 0.0
    %1866 = vmatprep.subr.mxu0 0.0
    %1867 = vmatpush2.msra.mxu0 0.0
    %1868 = vmatprep.subr.mxu0 0.0
    %1869 = vmatpush2.msra.mxu0 0.0
    %1870 = vmatprep.subr.mxu0 0.0
    %1871 = vmatpush2.msra.mxu0 0.0
    %1872 = vmatprep.subr.mxu0 0.0
    %1873 = vmatpush2.msra.mxu0 0.0
    %1874 = vmatprep.subr.mxu0 0.0
    %1875 = vmatpush2.msra.mxu0 0.0
    %1876 = vmatprep.subr.mxu0 0.0
    %1877 = vmatpush2.msra.mxu0 0.0
    %1878 = vmatprep.subr.mxu0 0.0
    %1879 = vmatpush2.msra.mxu0 0.0
    %1880 = vmatprep.subr.mxu0 0.0
    %1881 = vmatpush2.msra.mxu0 0.0
    %1882 = vmatprep.subr.mxu0 0.0
    %1883 = vmatpush2.msra.mxu0 0.0
    %1884 = vmatprep.subr.mxu0 0.0
    %1885 = vmatpush2.msra.mxu0 0.0
    %1886 = vmatprep.subr.mxu0 0.0
    %1887 = vmatpush2.msra.mxu0 0.0
    %1888 = vmatprep.mubr.f32.mxu0 0.0
    %1889 = vmatmul.mubr.f32.gmra.mxu0 %v1542
    %v1890 = vpop.f32.mrf.mxu0
    %v1891 = vadd.f32 0.0, %v1890
    %v1892 = vpop.f32.mrf.mxu0
    %1893 = vdwg.mxu0
    %1895 = vrot.lane.b32.xlu0 %v1815, 64
    %v1896 = vpop.permute.xlu0 %1895
    %v1897 = vsel %vm220, %v1896, 0
    %1899 = vmatprep.subr.mxu0 0.0
    %1900 = vmatpush1.msra.mxu0 0.0
    %1901 = vmatprep.subr.mxu0 0.0
    %1902 = vmatpush1.msra.mxu0 0.0
    %1903 = vmatprep.subr.mxu0 0.0
    %1904 = vmatpush1.msra.mxu0 0.0
    %1905 = vmatprep.subr.mxu0 0.0
    %1906 = vmatpush1.msra.mxu0 0.0
    %1907 = vmatprep.subr.mxu0 0.0
    %1908 = vmatpush1.msra.mxu0 0.0
    %1909 = vmatprep.subr.mxu0 0.0
    %1910 = vmatpush1.msra.mxu0 0.0
    %1911 = vmatprep.subr.mxu0 0.0
    %1912 = vmatpush1.msra.mxu0 0.0
    %1913 = vmatprep.subr.mxu0 0.0
    %1914 = vmatpush1.msra.mxu0 0.0
    %1915 = vmatprep.subr.mxu0 0.0
    %1916 = vmatpush1.msra.mxu0 0.0
    %1917 = vmatprep.subr.mxu0 0.0
    %1918 = vmatpush1.msra.mxu0 0.0
    %1919 = vmatprep.subr.mxu0 0.0
    %1920 = vmatpush1.msra.mxu0 0.0
    %1921 = vmatprep.subr.mxu0 0.0
    %1922 = vmatpush1.msra.mxu0 0.0
    %1923 = vmatprep.subr.mxu0 0.0
    %1924 = vmatpush1.msra.mxu0 %v1819
    %1925 = vmatprep.subr.mxu0 0.0
    %1926 = vmatpush1.msra.mxu0 %v1818
    %1927 = vmatprep.subr.mxu0 0.0
    %1928 = vmatpush1.msra.mxu0 %v1817
    %1929 = vmatprep.subr.mxu0 0.0
    %1930 = vmatpush1.msra.mxu0 %v1816
    %1931 = vmatprep.subr.mxu0 0.0
    %1932 = vmatpush2.msra.mxu0 0.0
    %1933 = vmatprep.subr.mxu0 0.0
    %1934 = vmatpush2.msra.mxu0 0.0
    %1935 = vmatprep.subr.mxu0 0.0
    %1936 = vmatpush2.msra.mxu0 0.0
    %1937 = vmatprep.subr.mxu0 0.0
    %1938 = vmatpush2.msra.mxu0 0.0
    %1939 = vmatprep.subr.mxu0 0.0
    %1940 = vmatpush2.msra.mxu0 0.0
    %1941 = vmatprep.subr.mxu0 0.0
    %1942 = vmatpush2.msra.mxu0 0.0
    %1943 = vmatprep.subr.mxu0 0.0
    %1944 = vmatpush2.msra.mxu0 0.0
    %1945 = vmatprep.subr.mxu0 0.0
    %1946 = vmatpush2.msra.mxu0 0.0
    %1947 = vmatprep.subr.mxu0 0.0
    %1948 = vmatpush2.msra.mxu0 0.0
    %1949 = vmatprep.subr.mxu0 0.0
    %1950 = vmatpush2.msra.mxu0 0.0
    %1951 = vmatprep.subr.mxu0 0.0
    %1952 = vmatpush2.msra.mxu0 0.0
    %1953 = vmatprep.subr.mxu0 0.0
    %1954 = vmatpush2.msra.mxu0 0.0
    %1955 = vmatprep.subr.mxu0 0.0
    %1956 = vmatpush2.msra.mxu0 0.0
    %1957 = vmatprep.subr.mxu0 0.0
    %1958 = vmatpush2.msra.mxu0 0.0
    %1959 = vmatprep.subr.mxu0 0.0
    %1960 = vmatpush2.msra.mxu0 0.0
    %1961 = vmatprep.subr.mxu0 0.0
    %1962 = vmatpush2.msra.mxu0 0.0
    %1963 = vmatprep.mubr.f32.mxu0 0.0
    %1964 = vmatmul.mubr.f32.gmra.mxu0 %v1897
    %v1965 = vpop.f32.mrf.mxu0
    %v1966 = vadd.f32 %v1891, %v1965
    %v1967 = vpop.f32.mrf.mxu0
    %1968 = vdwg.mxu0
    %v1969 = vld [vmem:[#allocation13] sm:$0x1]
    %v1971 = vlaneseq
    %v1972 = vshrl.u32 %v1971, 7
    %v1973 = vsub.s32 0, %v1972
    %v1974 = vrot.slane %v1969, %v1973
    %v1976 = vadd.f32 %v1966, %v1974
    %v1977 = vxor.u32 %v1976, 2147483648
    %v1978 = vmul.f32 %v1977, 1.442695
    %v1979 = vpow.pop %v1978
    %v1980 = vadd.f32 %v1979, 1.0
    %v1981 = vrcp.pop %v1980
    %v1982 = vmul.f32 1.0, %v1981
    %v1983 = vtanh.pop %v1976
    %v1984 = vmul.f32 %v1982, %v1521
    %1986 = vrot.lane.b32.xlu0 %v1983, 32
    %v1987 = vpop.permute.xlu0 %1986
    %v1989 = vmul.f32 %v1982, %v1987
    %1991 = vrot.lane.b32.xlu0 %v1989, 32
    %v1992 = vpop.permute.xlu0 %1991
    %v1994 = vadd.f32 %v1984, %v1992
    %v1995 = vtanh.pop %v1994
    %1997 = vrot.lane.b32.xlu0 %v1995, 32
    %v1998 = vpop.permute.xlu0 %1997
    %v2000 = vmul.f32 %v1982, %v1998
    %v2001 = vld [vmem:[%s9] sm:$0xff]
    %v2002 = vld [vmem:[%s9 + $0x8] sm:$0xff]
    %v2003 = vld [vmem:[%s9 + $0x10] sm:$0xff]
    %v2004 = vld [vmem:[%s9 + $0x18] sm:$0xff]
    %v2005 = vld [vmem:[%s10] sm:$0x1]
    %v2007 = vlaneseq
    %v2008 = vshrl.u32 %v2007, 7
    %v2009 = vsub.s32 0, %v2008
    %v2010 = vrot.slane %v2005, %v2009
    %2013 = vrot.lane.b32.xlu0 %v2000, 64
    %v2014 = vpop.permute.xlu0 %2013
    %v2015 = vsel %vm220, %v2014, 0
    %2017 = vmatprep.subr.mxu0 0.0
    %2018 = vmatpush1.msra.mxu0 0.0
    %2019 = vmatprep.subr.mxu0 0.0
    %2020 = vmatpush1.msra.mxu0 0.0
    %2021 = vmatprep.subr.mxu0 0.0
    %2022 = vmatpush1.msra.mxu0 0.0
    %2023 = vmatprep.subr.mxu0 0.0
    %2024 = vmatpush1.msra.mxu0 0.0
    %2025 = vmatprep.subr.mxu0 0.0
    %2026 = vmatpush1.msra.mxu0 0.0
    %2027 = vmatprep.subr.mxu0 0.0
    %2028 = vmatpush1.msra.mxu0 0.0
    %2029 = vmatprep.subr.mxu0 0.0
    %2030 = vmatpush1.msra.mxu0 0.0
    %2031 = vmatprep.subr.mxu0 0.0
    %2032 = vmatpush1.msra.mxu0 0.0
    %2033 = vmatprep.subr.mxu0 0.0
    %2034 = vmatpush1.msra.mxu0 0.0
    %2035 = vmatprep.subr.mxu0 0.0
    %2036 = vmatpush1.msra.mxu0 0.0
    %2037 = vmatprep.subr.mxu0 0.0
    %2038 = vmatpush1.msra.mxu0 0.0
    %2039 = vmatprep.subr.mxu0 0.0
    %2040 = vmatpush1.msra.mxu0 0.0
    %2041 = vmatprep.subr.mxu0 0.0
    %2042 = vmatpush1.msra.mxu0 %v2004
    %2043 = vmatprep.subr.mxu0 0.0
    %2044 = vmatpush1.msra.mxu0 %v2003
    %2045 = vmatprep.subr.mxu0 0.0
    %2046 = vmatpush1.msra.mxu0 %v2002
    %2047 = vmatprep.subr.mxu0 0.0
    %2048 = vmatpush1.msra.mxu0 %v2001
    %2049 = vmatprep.subr.mxu0 0.0
    %2050 = vmatpush2.msra.mxu0 0.0
    %2051 = vmatprep.subr.mxu0 0.0
    %2052 = vmatpush2.msra.mxu0 0.0
    %2053 = vmatprep.subr.mxu0 0.0
    %2054 = vmatpush2.msra.mxu0 0.0
    %2055 = vmatprep.subr.mxu0 0.0
    %2056 = vmatpush2.msra.mxu0 0.0
    %2057 = vmatprep.subr.mxu0 0.0
    %2058 = vmatpush2.msra.mxu0 0.0
    %2059 = vmatprep.subr.mxu0 0.0
    %2060 = vmatpush2.msra.mxu0 0.0
    %2061 = vmatprep.subr.mxu0 0.0
    %2062 = vmatpush2.msra.mxu0 0.0
    %2063 = vmatprep.subr.mxu0 0.0
    %2064 = vmatpush2.msra.mxu0 0.0
    %2065 = vmatprep.subr.mxu0 0.0
    %2066 = vmatpush2.msra.mxu0 0.0
    %2067 = vmatprep.subr.mxu0 0.0
    %2068 = vmatpush2.msra.mxu0 0.0
    %2069 = vmatprep.subr.mxu0 0.0
    %2070 = vmatpush2.msra.mxu0 0.0
    %2071 = vmatprep.subr.mxu0 0.0
    %2072 = vmatpush2.msra.mxu0 0.0
    %2073 = vmatprep.subr.mxu0 0.0
    %2074 = vmatpush2.msra.mxu0 0.0
    %2075 = vmatprep.subr.mxu0 0.0
    %2076 = vmatpush2.msra.mxu0 0.0
    %2077 = vmatprep.subr.mxu0 0.0
    %2078 = vmatpush2.msra.mxu0 0.0
    %2079 = vmatprep.subr.mxu0 0.0
    %2080 = vmatpush2.msra.mxu0 0.0
    %2081 = vmatprep.mubr.f32.mxu0 0.0
    %2082 = vmatmul.mubr.f32.gmra.mxu0 %v2015
    %v2083 = vpop.f32.mrf.mxu0
    %v2084 = vadd.f32 %v2010, %v2083
    %v2085 = vpop.f32.mrf.mxu0
    %2086 = vdwg.mxu0
    %v2087 = vsel %vm294, %v2084, -inf
    %2088 = vmax.xlane.f32.xlu0 %v2087
    %v2089 = vpop.xlane.xlu0 %2088
    %v2090 = vsub.f32 %v2084, %v2089
    %v2091 = vmul.f32 %v2090, 1.442695
    %v2092 = vpow.pop %v2091
    %v2093 = vsel %vm294, %v2092, 0.0
    %2094 = vadd.xlane.f32.xlu0 %v2093
    %v2095 = vpop.xlane.xlu0 %2094
    %v2096 = vrcp.pop %v2095
    %v2097 = vmul.f32 %v2092, %v2096
    %2099 = vrot.lane.b32.xlu0 %v2084, 48
    %v2100 = vpop.permute.xlu0 %2099
    %vm2102 = vcmask 523648
    %2103 = vst.msk [vmem:[#allocation15] sm:$0xff] %vm2102, %v2100
    %2105 = vrot.lane.b32.xlu0 %v2097, 48
    %v2106 = vpop.permute.xlu0 %2105
    %2108 = vst.msk [vmem:[#allocation14] sm:$0xff] %vm2102, %v2106
    %v2109 = vld [vmem:[%s3] sm:$0xff]
    %v2110 = vld [vmem:[%s3 + $0x8] sm:$0xff]
    %v2111 = vld [vmem:[%s4] sm:$0xff]
    %v2112 = vld [vmem:[%s4 + $0x8] sm:$0xff]
    %v2113 = vld [vmem:[%s4 + $0x10] sm:$0xff]
    %v2114 = vld [vmem:[%s4 + $0x18] sm:$0xff]
    %2115 = vmatprep.subr.mxu0 0.0
    %2116 = vmatpush1.msra.mxu0 0.0
    %2117 = vmatprep.subr.mxu0 0.0
    %2118 = vmatpush1.msra.mxu0 0.0
    %2119 = vmatprep.subr.mxu0 0.0
    %2120 = vmatpush1.msra.mxu0 0.0
    %2121 = vmatprep.subr.mxu0 0.0
    %2122 = vmatpush1.msra.mxu0 0.0
    %2123 = vmatprep.subr.mxu0 0.0
    %2124 = vmatpush1.msra.mxu0 0.0
    %2125 = vmatprep.subr.mxu0 0.0
    %2126 = vmatpush1.msra.mxu0 0.0
    %2127 = vmatprep.subr.mxu0 0.0
    %2128 = vmatpush1.msra.mxu0 0.0
    %2129 = vmatprep.subr.mxu0 0.0
    %2130 = vmatpush1.msra.mxu0 0.0
    %2131 = vmatprep.subr.mxu0 0.0
    %2132 = vmatpush1.msra.mxu0 0.0
    %2133 = vmatprep.subr.mxu0 0.0
    %2134 = vmatpush1.msra.mxu0 0.0
    %2135 = vmatprep.subr.mxu0 0.0
    %2136 = vmatpush1.msra.mxu0 0.0
    %2137 = vmatprep.subr.mxu0 0.0
    %2138 = vmatpush1.msra.mxu0 0.0
    %2139 = vmatprep.subr.mxu0 0.0
    %2140 = vmatpush1.msra.mxu0 %v2114
    %2141 = vmatprep.subr.mxu0 0.0
    %2142 = vmatpush1.msra.mxu0 %v2113
    %2143 = vmatprep.subr.mxu0 0.0
    %2144 = vmatpush1.msra.mxu0 %v2112
    %2145 = vmatprep.subr.mxu0 0.0
    %2146 = vmatpush1.msra.mxu0 %v2111
    %2147 = vmatprep.subr.mxu0 0.0
    %2148 = vmatpush2.msra.mxu0 0.0
    %2149 = vmatprep.subr.mxu0 0.0
    %2150 = vmatpush2.msra.mxu0 0.0
    %2151 = vmatprep.subr.mxu0 0.0
    %2152 = vmatpush2.msra.mxu0 0.0
    %2153 = vmatprep.subr.mxu0 0.0
    %2154 = vmatpush2.msra.mxu0 0.0
    %2155 = vmatprep.subr.mxu0 0.0
    %2156 = vmatpush2.msra.mxu0 0.0
    %2157 = vmatprep.subr.mxu0 0.0
    %2158 = vmatpush2.msra.mxu0 0.0
    %2159 = vmatprep.subr.mxu0 0.0
    %2160 = vmatpush2.msra.mxu0 0.0
    %2161 = vmatprep.subr.mxu0 0.0
    %2162 = vmatpush2.msra.mxu0 0.0
    %2163 = vmatprep.subr.mxu0 0.0
    %2164 = vmatpush2.msra.mxu0 0.0
    %2165 = vmatprep.subr.mxu0 0.0
    %2166 = vmatpush2.msra.mxu0 0.0
    %2167 = vmatprep.subr.mxu0 0.0
    %2168 = vmatpush2.msra.mxu0 0.0
    %2169 = vmatprep.subr.mxu0 0.0
    %2170 = vmatpush2.msra.mxu0 0.0
    %2171 = vmatprep.subr.mxu0 0.0
    %2172 = vmatpush2.msra.mxu0 0.0
    %2173 = vmatprep.subr.mxu0 0.0
    %2174 = vmatpush2.msra.mxu0 0.0
    %2175 = vmatprep.subr.mxu0 0.0
    %2176 = vmatpush2.msra.mxu0 0.0
    %2177 = vmatprep.subr.mxu0 0.0
    %2178 = vmatpush2.msra.mxu0 0.0
    %2179 = vmatprep.mubr.f32.mxu0 0.0
    %2180 = vmatmul.mubr.f32.gmra.mxu0 %v1897
    %v2181 = vpop.f32.mrf.mxu0
    %v2182 = vadd.f32 0.0, %v2181
    %v2183 = vpop.f32.mrf.mxu0
    %2184 = vdwg.mxu0
    %v2185 = vsel %vm294, %v2097, 0
    %2187 = vmatprep.subr.mxu0 0.0
    %2188 = vmatpush1.msra.mxu0 0.0
    %2189 = vmatprep.subr.mxu0 0.0
    %2190 = vmatpush1.msra.mxu0 0.0
    %2191 = vmatprep.subr.mxu0 0.0
    %2192 = vmatpush1.msra.mxu0 0.0
    %2193 = vmatprep.subr.mxu0 0.0
    %2194 = vmatpush1.msra.mxu0 0.0
    %2195 = vmatprep.subr.mxu0 0.0
    %2196 = vmatpush1.msra.mxu0 0.0
    %2197 = vmatprep.subr.mxu0 0.0
    %2198 = vmatpush1.msra.mxu0 0.0
    %2199 = vmatprep.subr.mxu0 0.0
    %2200 = vmatpush1.msra.mxu0 0.0
    %2201 = vmatprep.subr.mxu0 0.0
    %2202 = vmatpush1.msra.mxu0 0.0
    %2203 = vmatprep.subr.mxu0 0.0
    %2204 = vmatpush1.msra.mxu0 0.0
    %2205 = vmatprep.subr.mxu0 0.0
    %2206 = vmatpush1.msra.mxu0 0.0
    %2207 = vmatprep.subr.mxu0 0.0
    %2208 = vmatpush1.msra.mxu0 0.0
    %2209 = vmatprep.subr.mxu0 0.0
    %2210 = vmatpush1.msra.mxu0 0.0
    %2211 = vmatprep.subr.mxu0 0.0
    %2212 = vmatpush1.msra.mxu0 0.0
    %2213 = vmatprep.subr.mxu0 0.0
    %2214 = vmatpush1.msra.mxu0 0.0
    %2215 = vmatprep.subr.mxu0 0.0
    %2216 = vmatpush1.msra.mxu0 %v2110
    %2217 = vmatprep.subr.mxu0 0.0
    %2218 = vmatpush1.msra.mxu0 %v2109
    %2219 = vmatprep.subr.mxu0 0.0
    %2220 = vmatpush2.msra.mxu0 0.0
    %2221 = vmatprep.subr.mxu0 0.0
    %2222 = vmatpush2.msra.mxu0 0.0
    %2223 = vmatprep.subr.mxu0 0.0
    %2224 = vmatpush2.msra.mxu0 0.0
    %2225 = vmatprep.subr.mxu0 0.0
    %2226 = vmatpush2.msra.mxu0 0.0
    %2227 = vmatprep.subr.mxu0 0.0
    %2228 = vmatpush2.msra.mxu0 0.0
    %2229 = vmatprep.subr.mxu0 0.0
    %2230 = vmatpush2.msra.mxu0 0.0
    %2231 = vmatprep.subr.mxu0 0.0
    %2232 = vmatpush2.msra.mxu0 0.0
    %2233 = vmatprep.subr.mxu0 0.0
    %2234 = vmatpush2.msra.mxu0 0.0
    %2235 = vmatprep.subr.mxu0 0.0
    %2236 = vmatpush2.msra.mxu0 0.0
    %2237 = vmatprep.subr.mxu0 0.0
    %2238 = vmatpush2.msra.mxu0 0.0
    %2239 = vmatprep.subr.mxu0 0.0
    %2240 = vmatpush2.msra.mxu0 0.0
    %2241 = vmatprep.subr.mxu0 0.0
    %2242 = vmatpush2.msra.mxu0 0.0
    %2243 = vmatprep.subr.mxu0 0.0
    %2244 = vmatpush2.msra.mxu0 0.0
    %2245 = vmatprep.subr.mxu0 0.0
    %2246 = vmatpush2.msra.mxu0 0.0
    %2247 = vmatprep.subr.mxu0 0.0
    %2248 = vmatpush2.msra.mxu0 0.0
    %2249 = vmatprep.subr.mxu0 0.0
    %2250 = vmatpush2.msra.mxu0 0.0
    %2251 = vmatprep.mubr.f32.mxu0 0.0
    %2252 = vmatmul.mubr.f32.gmra.mxu0 %v2185
    %v2253 = vpop.f32.mrf.mxu0
    %v2254 = vadd.f32 %v2182, %v2253
    %v2255 = vpop.f32.mrf.mxu0
    %2256 = vdwg.mxu0
    %v2257 = vld [vmem:[#allocation8] sm:$0x1]
    %v2259 = vlaneseq
    %v2260 = vshrl.u32 %v2259, 7
    %v2261 = vsub.s32 0, %v2260
    %v2262 = vrot.slane %v2257, %v2261
    %v2264 = vadd.f32 %v2254, %v2262
    %v2265 = vxor.u32 %v2264, 2147483648
    %v2266 = vmul.f32 %v2265, 1.442695
    %v2267 = vpow.pop %v2266
    %v2268 = vadd.f32 %v2267, 1.0
    %v2269 = vrcp.pop %v2268
    %v2270 = vmul.f32 1.0, %v2269
    %v2271 = vtanh.pop %v2264
    %v2272 = vmul.f32 %v2270, %v1809
    %2274 = vrot.lane.b32.xlu0 %v2271, 32
    %v2275 = vpop.permute.xlu0 %2274
    %v2277 = vmul.f32 %v2270, %v2275
    %2279 = vrot.lane.b32.xlu0 %v2277, 32
    %v2280 = vpop.permute.xlu0 %2279
    %v2282 = vadd.f32 %v2272, %v2280
    %v2283 = vtanh.pop %v2282
    %2285 = vrot.lane.b32.xlu0 %v2283, 32
    %v2286 = vpop.permute.xlu0 %2285
    %v2288 = vmul.f32 %v2270, %v2286
    %v2289 = vld [vmem:[#allocation10] sm:$0xff]
    %v2290 = vld [vmem:[#allocation10 + $0x8] sm:$0xff]
    %v2291 = vld [vmem:[#allocation10 + $0x10] sm:$0xff]
    %v2292 = vld [vmem:[#allocation10 + $0x18] sm:$0xff]
    %v2293 = vld [vmem:[#allocation11] sm:$0xff]
    %v2294 = vld [vmem:[#allocation11 + $0x8] sm:$0xff]
    %v2295 = vld [vmem:[#allocation11 + $0x10] sm:$0xff]
    %v2296 = vld [vmem:[#allocation11 + $0x18] sm:$0xff]
    %2297 = vmatprep.subr.mxu0 0.0
    %2298 = vmatpush1.msra.mxu0 0.0
    %2299 = vmatprep.subr.mxu0 0.0
    %2300 = vmatpush1.msra.mxu0 0.0
    %2301 = vmatprep.subr.mxu0 0.0
    %2302 = vmatpush1.msra.mxu0 0.0
    %2303 = vmatprep.subr.mxu0 0.0
    %2304 = vmatpush1.msra.mxu0 0.0
    %2305 = vmatprep.subr.mxu0 0.0
    %2306 = vmatpush1.msra.mxu0 0.0
    %2307 = vmatprep.subr.mxu0 0.0
    %2308 = vmatpush1.msra.mxu0 0.0
    %2309 = vmatprep.subr.mxu0 0.0
    %2310 = vmatpush1.msra.mxu0 0.0
    %2311 = vmatprep.subr.mxu0 0.0
    %2312 = vmatpush1.msra.mxu0 0.0
    %2313 = vmatprep.subr.mxu0 0.0
    %2314 = vmatpush1.msra.mxu0 0.0
    %2315 = vmatprep.subr.mxu0 0.0
    %2316 = vmatpush1.msra.mxu0 0.0
    %2317 = vmatprep.subr.mxu0 0.0
    %2318 = vmatpush1.msra.mxu0 0.0
    %2319 = vmatprep.subr.mxu0 0.0
    %2320 = vmatpush1.msra.mxu0 0.0
    %2321 = vmatprep.subr.mxu0 0.0
    %2322 = vmatpush1.msra.mxu0 %v2296
    %2323 = vmatprep.subr.mxu0 0.0
    %2324 = vmatpush1.msra.mxu0 %v2295
    %2325 = vmatprep.subr.mxu0 0.0
    %2326 = vmatpush1.msra.mxu0 %v2294
    %2327 = vmatprep.subr.mxu0 0.0
    %2328 = vmatpush1.msra.mxu0 %v2293
    %2329 = vmatprep.subr.mxu0 0.0
    %2330 = vmatpush2.msra.mxu0 0.0
    %2331 = vmatprep.subr.mxu0 0.0
    %2332 = vmatpush2.msra.mxu0 0.0
    %2333 = vmatprep.subr.mxu0 0.0
    %2334 = vmatpush2.msra.mxu0 0.0
    %2335 = vmatprep.subr.mxu0 0.0
    %2336 = vmatpush2.msra.mxu0 0.0
    %2337 = vmatprep.subr.mxu0 0.0
    %2338 = vmatpush2.msra.mxu0 0.0
    %2339 = vmatprep.subr.mxu0 0.0
    %2340 = vmatpush2.msra.mxu0 0.0
    %2341 = vmatprep.subr.mxu0 0.0
    %2342 = vmatpush2.msra.mxu0 0.0
    %2343 = vmatprep.subr.mxu0 0.0
    %2344 = vmatpush2.msra.mxu0 0.0
    %2345 = vmatprep.subr.mxu0 0.0
    %2346 = vmatpush2.msra.mxu0 0.0
    %2347 = vmatprep.subr.mxu0 0.0
    %2348 = vmatpush2.msra.mxu0 0.0
    %2349 = vmatprep.subr.mxu0 0.0
    %2350 = vmatpush2.msra.mxu0 0.0
    %2351 = vmatprep.subr.mxu0 0.0
    %2352 = vmatpush2.msra.mxu0 0.0
    %2353 = vmatprep.subr.mxu0 0.0
    %2354 = vmatpush2.msra.mxu0 0.0
    %2355 = vmatprep.subr.mxu0 0.0
    %2356 = vmatpush2.msra.mxu0 0.0
    %2357 = vmatprep.subr.mxu0 0.0
    %2358 = vmatpush2.msra.mxu0 0.0
    %2359 = vmatprep.subr.mxu0 0.0
    %2360 = vmatpush2.msra.mxu0 0.0
    %2361 = vmatprep.mubr.f32.mxu0 0.0
    %2362 = vmatmul.mubr.f32.gmra.mxu0 %v2015
    %v2363 = vpop.f32.mrf.mxu0
    %v2364 = vadd.f32 0.0, %v2363
    %v2365 = vpop.f32.mrf.mxu0
    %2366 = vdwg.mxu0
    %2368 = vrot.lane.b32.xlu0 %v2288, 64
    %v2369 = vpop.permute.xlu0 %2368
    %v2370 = vsel %vm220, %v2369, 0
    %2372 = vmatprep.subr.mxu0 0.0
    %2373 = vmatpush1.msra.mxu0 0.0
    %2374 = vmatprep.subr.mxu0 0.0
    %2375 = vmatpush1.msra.mxu0 0.0
    %2376 = vmatprep.subr.mxu0 0.0
    %2377 = vmatpush1.msra.mxu0 0.0
    %2378 = vmatprep.subr.mxu0 0.0
    %2379 = vmatpush1.msra.mxu0 0.0
    %2380 = vmatprep.subr.mxu0 0.0
    %2381 = vmatpush1.msra.mxu0 0.0
    %2382 = vmatprep.subr.mxu0 0.0
    %2383 = vmatpush1.msra.mxu0 0.0
    %2384 = vmatprep.subr.mxu0 0.0
    %2385 = vmatpush1.msra.mxu0 0.0
    %2386 = vmatprep.subr.mxu0 0.0
    %2387 = vmatpush1.msra.mxu0 0.0
    %2388 = vmatprep.subr.mxu0 0.0
    %2389 = vmatpush1.msra.mxu0 0.0
    %2390 = vmatprep.subr.mxu0 0.0
    %2391 = vmatpush1.msra.mxu0 0.0
    %2392 = vmatprep.subr.mxu0 0.0
    %2393 = vmatpush1.msra.mxu0 0.0
    %2394 = vmatprep.subr.mxu0 0.0
    %2395 = vmatpush1.msra.mxu0 0.0
    %2396 = vmatprep.subr.mxu0 0.0
    %2397 = vmatpush1.msra.mxu0 %v2292
    %2398 = vmatprep.subr.mxu0 0.0
    %2399 = vmatpush1.msra.mxu0 %v2291
    %2400 = vmatprep.subr.mxu0 0.0
    %2401 = vmatpush1.msra.mxu0 %v2290
    %2402 = vmatprep.subr.mxu0 0.0
    %2403 = vmatpush1.msra.mxu0 %v2289
    %2404 = vmatprep.subr.mxu0 0.0
    %2405 = vmatpush2.msra.mxu0 0.0
    %2406 = vmatprep.subr.mxu0 0.0
    %2407 = vmatpush2.msra.mxu0 0.0
    %2408 = vmatprep.subr.mxu0 0.0
    %2409 = vmatpush2.msra.mxu0 0.0
    %2410 = vmatprep.subr.mxu0 0.0
    %2411 = vmatpush2.msra.mxu0 0.0
    %2412 = vmatprep.subr.mxu0 0.0
    %2413 = vmatpush2.msra.mxu0 0.0
    %2414 = vmatprep.subr.mxu0 0.0
    %2415 = vmatpush2.msra.mxu0 0.0
    %2416 = vmatprep.subr.mxu0 0.0
    %2417 = vmatpush2.msra.mxu0 0.0
    %2418 = vmatprep.subr.mxu0 0.0
    %2419 = vmatpush2.msra.mxu0 0.0
    %2420 = vmatprep.subr.mxu0 0.0
    %2421 = vmatpush2.msra.mxu0 0.0
    %2422 = vmatprep.subr.mxu0 0.0
    %2423 = vmatpush2.msra.mxu0 0.0
    %2424 = vmatprep.subr.mxu0 0.0
    %2425 = vmatpush2.msra.mxu0 0.0
    %2426 = vmatprep.subr.mxu0 0.0
    %2427 = vmatpush2.msra.mxu0 0.0
    %2428 = vmatprep.subr.mxu0 0.0
    %2429 = vmatpush2.msra.mxu0 0.0
    %2430 = vmatprep.subr.mxu0 0.0
    %2431 = vmatpush2.msra.mxu0 0.0
    %2432 = vmatprep.subr.mxu0 0.0
    %2433 = vmatpush2.msra.mxu0 0.0
    %2434 = vmatprep.subr.mxu0 0.0
    %2435 = vmatpush2.msra.mxu0 0.0
    %2436 = vmatprep.mubr.f32.mxu0 0.0
    %2437 = vmatmul.mubr.f32.gmra.mxu0 %v2370
    %v2438 = vpop.f32.mrf.mxu0
    %v2439 = vadd.f32 %v2364, %v2438
    %v2440 = vpop.f32.mrf.mxu0
    %2441 = vdwg.mxu0
    %v2442 = vld [vmem:[#allocation13] sm:$0x1]
    %v2444 = vlaneseq
    %v2445 = vshrl.u32 %v2444, 7
    %v2446 = vsub.s32 0, %v2445
    %v2447 = vrot.slane %v2442, %v2446
    %v2449 = vadd.f32 %v2439, %v2447
    %v2450 = vxor.u32 %v2449, 2147483648
    %v2451 = vmul.f32 %v2450, 1.442695
    %v2452 = vpow.pop %v2451
    %v2453 = vadd.f32 %v2452, 1.0
    %v2454 = vrcp.pop %v2453
    %v2455 = vmul.f32 1.0, %v2454
    %v2456 = vtanh.pop %v2449
    %v2457 = vmul.f32 %v2455, %v1994
    %2459 = vrot.lane.b32.xlu0 %v2456, 32
    %v2460 = vpop.permute.xlu0 %2459
    %v2462 = vmul.f32 %v2455, %v2460
    %2464 = vrot.lane.b32.xlu0 %v2462, 32
    %v2465 = vpop.permute.xlu0 %2464
    %v2467 = vadd.f32 %v2457, %v2465
    %v2468 = vtanh.pop %v2467
    %2470 = vrot.lane.b32.xlu0 %v2468, 32
    %v2471 = vpop.permute.xlu0 %2470
    %v2473 = vmul.f32 %v2455, %v2471
    %v2474 = vld [vmem:[%s9] sm:$0xff]
    %v2475 = vld [vmem:[%s9 + $0x8] sm:$0xff]
    %v2476 = vld [vmem:[%s9 + $0x10] sm:$0xff]
    %v2477 = vld [vmem:[%s9 + $0x18] sm:$0xff]
    %v2478 = vld [vmem:[%s10] sm:$0x1]
    %v2480 = vlaneseq
    %v2481 = vshrl.u32 %v2480, 7
    %v2482 = vsub.s32 0, %v2481
    %v2483 = vrot.slane %v2478, %v2482
    %2486 = vrot.lane.b32.xlu0 %v2473, 64
    %v2487 = vpop.permute.xlu0 %2486
    %v2488 = vsel %vm220, %v2487, 0
    %2490 = vmatprep.subr.mxu0 0.0
    %2491 = vmatpush1.msra.mxu0 0.0
    %2492 = vmatprep.subr.mxu0 0.0
    %2493 = vmatpush1.msra.mxu0 0.0
    %2494 = vmatprep.subr.mxu0 0.0
    %2495 = vmatpush1.msra.mxu0 0.0
    %2496 = vmatprep.subr.mxu0 0.0
    %2497 = vmatpush1.msra.mxu0 0.0
    %2498 = vmatprep.subr.mxu0 0.0
    %2499 = vmatpush1.msra.mxu0 0.0
    %2500 = vmatprep.subr.mxu0 0.0
    %2501 = vmatpush1.msra.mxu0 0.0
    %2502 = vmatprep.subr.mxu0 0.0
    %2503 = vmatpush1.msra.mxu0 0.0
    %2504 = vmatprep.subr.mxu0 0.0
    %2505 = vmatpush1.msra.mxu0 0.0
    %2506 = vmatprep.subr.mxu0 0.0
    %2507 = vmatpush1.msra.mxu0 0.0
    %2508 = vmatprep.subr.mxu0 0.0
    %2509 = vmatpush1.msra.mxu0 0.0
    %2510 = vmatprep.subr.mxu0 0.0
    %2511 = vmatpush1.msra.mxu0 0.0
    %2512 = vmatprep.subr.mxu0 0.0
    %2513 = vmatpush1.msra.mxu0 0.0
    %2514 = vmatprep.subr.mxu0 0.0
    %2515 = vmatpush1.msra.mxu0 %v2477
    %2516 = vmatprep.subr.mxu0 0.0
    %2517 = vmatpush1.msra.mxu0 %v2476
    %2518 = vmatprep.subr.mxu0 0.0
    %2519 = vmatpush1.msra.mxu0 %v2475
    %2520 = vmatprep.subr.mxu0 0.0
    %2521 = vmatpush1.msra.mxu0 %v2474
    %2522 = vmatprep.subr.mxu0 0.0
    %2523 = vmatpush2.msra.mxu0 0.0
    %2524 = vmatprep.subr.mxu0 0.0
    %2525 = vmatpush2.msra.mxu0 0.0
    %2526 = vmatprep.subr.mxu0 0.0
    %2527 = vmatpush2.msra.mxu0 0.0
    %2528 = vmatprep.subr.mxu0 0.0
    %2529 = vmatpush2.msra.mxu0 0.0
    %2530 = vmatprep.subr.mxu0 0.0
    %2531 = vmatpush2.msra.mxu0 0.0
    %2532 = vmatprep.subr.mxu0 0.0
    %2533 = vmatpush2.msra.mxu0 0.0
    %2534 = vmatprep.subr.mxu0 0.0
    %2535 = vmatpush2.msra.mxu0 0.0
    %2536 = vmatprep.subr.mxu0 0.0
    %2537 = vmatpush2.msra.mxu0 0.0
    %2538 = vmatprep.subr.mxu0 0.0
    %2539 = vmatpush2.msra.mxu0 0.0
    %2540 = vmatprep.subr.mxu0 0.0
    %2541 = vmatpush2.msra.mxu0 0.0
    %2542 = vmatprep.subr.mxu0 0.0
    %2543 = vmatpush2.msra.mxu0 0.0
    %2544 = vmatprep.subr.mxu0 0.0
    %2545 = vmatpush2.msra.mxu0 0.0
    %2546 = vmatprep.subr.mxu0 0.0
    %2547 = vmatpush2.msra.mxu0 0.0
    %2548 = vmatprep.subr.mxu0 0.0
    %2549 = vmatpush2.msra.mxu0 0.0
    %2550 = vmatprep.subr.mxu0 0.0
    %2551 = vmatpush2.msra.mxu0 0.0
    %2552 = vmatprep.subr.mxu0 0.0
    %2553 = vmatpush2.msra.mxu0 0.0
    %2554 = vmatprep.mubr.f32.mxu0 0.0
    %2555 = vmatmul.mubr.f32.gmra.mxu0 %v2488
    %v2556 = vpop.f32.mrf.mxu0
    %v2557 = vadd.f32 %v2483, %v2556
    %v2558 = vpop.f32.mrf.mxu0
    %2559 = vdwg.mxu0
    %v2560 = vsel %vm294, %v2557, -inf
    %2561 = vmax.xlane.f32.xlu0 %v2560
    %v2562 = vpop.xlane.xlu0 %2561
    %v2563 = vsub.f32 %v2557, %v2562
    %v2564 = vmul.f32 %v2563, 1.442695
    %v2565 = vpow.pop %v2564
    %v2566 = vsel %vm294, %v2565, 0.0
    %2567 = vadd.xlane.f32.xlu0 %v2566
    %v2568 = vpop.xlane.xlu0 %2567
    %v2569 = vrcp.pop %v2568
    %v2570 = vmul.f32 %v2565, %v2569
    %2572 = vrot.lane.b32.xlu0 %v2557, 64
    %v2573 = vpop.permute.xlu0 %2572
    %vm2575 = vcmask 654848
    %2576 = vst.msk [vmem:[#allocation15] sm:$0xff] %vm2575, %v2573
    %2578 = vrot.lane.b32.xlu0 %v2570, 64
    %v2579 = vpop.permute.xlu0 %2578
    %2581 = vst.msk [vmem:[#allocation14] sm:$0xff] %vm2575, %v2579
    %v2582 = vld [vmem:[%s3] sm:$0xff]
    %v2583 = vld [vmem:[%s3 + $0x8] sm:$0xff]
    %v2584 = vld [vmem:[%s4] sm:$0xff]
    %v2585 = vld [vmem:[%s4 + $0x8] sm:$0xff]
    %v2586 = vld [vmem:[%s4 + $0x10] sm:$0xff]
    %v2587 = vld [vmem:[%s4 + $0x18] sm:$0xff]
    %2588 = vmatprep.subr.mxu0 0.0
    %2589 = vmatpush1.msra.mxu0 0.0
    %2590 = vmatprep.subr.mxu0 0.0
    %2591 = vmatpush1.msra.mxu0 0.0
    %2592 = vmatprep.subr.mxu0 0.0
    %2593 = vmatpush1.msra.mxu0 0.0
    %2594 = vmatprep.subr.mxu0 0.0
    %2595 = vmatpush1.msra.mxu0 0.0
    %2596 = vmatprep.subr.mxu0 0.0
    %2597 = vmatpush1.msra.mxu0 0.0
    %2598 = vmatprep.subr.mxu0 0.0
    %2599 = vmatpush1.msra.mxu0 0.0
    %2600 = vmatprep.subr.mxu0 0.0
    %2601 = vmatpush1.msra.mxu0 0.0
    %2602 = vmatprep.subr.mxu0 0.0
    %2603 = vmatpush1.msra.mxu0 0.0
    %2604 = vmatprep.subr.mxu0 0.0
    %2605 = vmatpush1.msra.mxu0 0.0
    %2606 = vmatprep.subr.mxu0 0.0
    %2607 = vmatpush1.msra.mxu0 0.0
    %2608 = vmatprep.subr.mxu0 0.0
    %2609 = vmatpush1.msra.mxu0 0.0
    %2610 = vmatprep.subr.mxu0 0.0
    %2611 = vmatpush1.msra.mxu0 0.0
    %2612 = vmatprep.subr.mxu0 0.0
    %2613 = vmatpush1.msra.mxu0 %v2587
    %2614 = vmatprep.subr.mxu0 0.0
    %2615 = vmatpush1.msra.mxu0 %v2586
    %2616 = vmatprep.subr.mxu0 0.0
    %2617 = vmatpush1.msra.mxu0 %v2585
    %2618 = vmatprep.subr.mxu0 0.0
    %2619 = vmatpush1.msra.mxu0 %v2584
    %2620 = vmatprep.subr.mxu0 0.0
    %2621 = vmatpush2.msra.mxu0 0.0
    %2622 = vmatprep.subr.mxu0 0.0
    %2623 = vmatpush2.msra.mxu0 0.0
    %2624 = vmatprep.subr.mxu0 0.0
    %2625 = vmatpush2.msra.mxu0 0.0
    %2626 = vmatprep.subr.mxu0 0.0
    %2627 = vmatpush2.msra.mxu0 0.0
    %2628 = vmatprep.subr.mxu0 0.0
    %2629 = vmatpush2.msra.mxu0 0.0
    %2630 = vmatprep.subr.mxu0 0.0
    %2631 = vmatpush2.msra.mxu0 0.0
    %2632 = vmatprep.subr.mxu0 0.0
    %2633 = vmatpush2.msra.mxu0 0.0
    %2634 = vmatprep.subr.mxu0 0.0
    %2635 = vmatpush2.msra.mxu0 0.0
    %2636 = vmatprep.subr.mxu0 0.0
    %2637 = vmatpush2.msra.mxu0 0.0
    %2638 = vmatprep.subr.mxu0 0.0
    %2639 = vmatpush2.msra.mxu0 0.0
    %2640 = vmatprep.subr.mxu0 0.0
    %2641 = vmatpush2.msra.mxu0 0.0
    %2642 = vmatprep.subr.mxu0 0.0
    %2643 = vmatpush2.msra.mxu0 0.0
    %2644 = vmatprep.subr.mxu0 0.0
    %2645 = vmatpush2.msra.mxu0 0.0
    %2646 = vmatprep.subr.mxu0 0.0
    %2647 = vmatpush2.msra.mxu0 0.0
    %2648 = vmatprep.subr.mxu0 0.0
    %2649 = vmatpush2.msra.mxu0 0.0
    %2650 = vmatprep.subr.mxu0 0.0
    %2651 = vmatpush2.msra.mxu0 0.0
    %2652 = vmatprep.mubr.f32.mxu0 0.0
    %2653 = vmatmul.mubr.f32.gmra.mxu0 %v2370
    %v2654 = vpop.f32.mrf.mxu0
    %v2655 = vadd.f32 0.0, %v2654
    %v2656 = vpop.f32.mrf.mxu0
    %2657 = vdwg.mxu0
    %v2658 = vsel %vm294, %v2570, 0
    %2660 = vmatprep.subr.mxu0 0.0
    %2661 = vmatpush1.msra.mxu0 0.0
    %2662 = vmatprep.subr.mxu0 0.0
    %2663 = vmatpush1.msra.mxu0 0.0
    %2664 = vmatprep.subr.mxu0 0.0
    %2665 = vmatpush1.msra.mxu0 0.0
    %2666 = vmatprep.subr.mxu0 0.0
    %2667 = vmatpush1.msra.mxu0 0.0
    %2668 = vmatprep.subr.mxu0 0.0
    %2669 = vmatpush1.msra.mxu0 0.0
    %2670 = vmatprep.subr.mxu0 0.0
    %2671 = vmatpush1.msra.mxu0 0.0
    %2672 = vmatprep.subr.mxu0 0.0
    %2673 = vmatpush1.msra.mxu0 0.0
    %2674 = vmatprep.subr.mxu0 0.0
    %2675 = vmatpush1.msra.mxu0 0.0
    %2676 = vmatprep.subr.mxu0 0.0
    %2677 = vmatpush1.msra.mxu0 0.0
    %2678 = vmatprep.subr.mxu0 0.0
    %2679 = vmatpush1.msra.mxu0 0.0
    %2680 = vmatprep.subr.mxu0 0.0
    %2681 = vmatpush1.msra.mxu0 0.0
    %2682 = vmatprep.subr.mxu0 0.0
    %2683 = vmatpush1.msra.mxu0 0.0
    %2684 = vmatprep.subr.mxu0 0.0
    %2685 = vmatpush1.msra.mxu0 0.0
    %2686 = vmatprep.subr.mxu0 0.0
    %2687 = vmatpush1.msra.mxu0 0.0
    %2688 = vmatprep.subr.mxu0 0.0
    %2689 = vmatpush1.msra.mxu0 %v2583
    %2690 = vmatprep.subr.mxu0 0.0
    %2691 = vmatpush1.msra.mxu0 %v2582
    %2692 = vmatprep.subr.mxu0 0.0
    %2693 = vmatpush2.msra.mxu0 0.0
    %2694 = vmatprep.subr.mxu0 0.0
    %2695 = vmatpush2.msra.mxu0 0.0
    %2696 = vmatprep.subr.mxu0 0.0
    %2697 = vmatpush2.msra.mxu0 0.0
    %2698 = vmatprep.subr.mxu0 0.0
    %2699 = vmatpush2.msra.mxu0 0.0
    %2700 = vmatprep.subr.mxu0 0.0
    %2701 = vmatpush2.msra.mxu0 0.0
    %2702 = vmatprep.subr.mxu0 0.0
    %2703 = vmatpush2.msra.mxu0 0.0
    %2704 = vmatprep.subr.mxu0 0.0
    %2705 = vmatpush2.msra.mxu0 0.0
    %2706 = vmatprep.subr.mxu0 0.0
    %2707 = vmatpush2.msra.mxu0 0.0
    %2708 = vmatprep.subr.mxu0 0.0
    %2709 = vmatpush2.msra.mxu0 0.0
    %2710 = vmatprep.subr.mxu0 0.0
    %2711 = vmatpush2.msra.mxu0 0.0
    %2712 = vmatprep.subr.mxu0 0.0
    %2713 = vmatpush2.msra.mxu0 0.0
    %2714 = vmatprep.subr.mxu0 0.0
    %2715 = vmatpush2.msra.mxu0 0.0
    %2716 = vmatprep.subr.mxu0 0.0
    %2717 = vmatpush2.msra.mxu0 0.0
    %2718 = vmatprep.subr.mxu0 0.0
    %2719 = vmatpush2.msra.mxu0 0.0
    %2720 = vmatprep.subr.mxu0 0.0
    %2721 = vmatpush2.msra.mxu0 0.0
    %2722 = vmatprep.subr.mxu0 0.0
    %2723 = vmatpush2.msra.mxu0 0.0
    %2724 = vmatprep.mubr.f32.mxu0 0.0
    %2725 = vmatmul.mubr.f32.gmra.mxu0 %v2658
    %v2726 = vpop.f32.mrf.mxu0
    %v2727 = vadd.f32 %v2655, %v2726
    %v2728 = vpop.f32.mrf.mxu0
    %2729 = vdwg.mxu0
    %v2730 = vld [vmem:[#allocation8] sm:$0x1]
    %v2732 = vlaneseq
    %v2733 = vshrl.u32 %v2732, 7
    %v2734 = vsub.s32 0, %v2733
    %v2735 = vrot.slane %v2730, %v2734
    %v2737 = vadd.f32 %v2727, %v2735
    %v2738 = vxor.u32 %v2737, 2147483648
    %v2739 = vmul.f32 %v2738, 1.442695
    %v2740 = vpow.pop %v2739
    %v2741 = vadd.f32 %v2740, 1.0
    %v2742 = vrcp.pop %v2741
    %v2743 = vmul.f32 1.0, %v2742
    %v2744 = vtanh.pop %v2737
    %v2745 = vmul.f32 %v2743, %v2282
    %2747 = vrot.lane.b32.xlu0 %v2744, 32
    %v2748 = vpop.permute.xlu0 %2747
    %v2750 = vmul.f32 %v2743, %v2748
    %2752 = vrot.lane.b32.xlu0 %v2750, 32
    %v2753 = vpop.permute.xlu0 %2752
    %v2755 = vadd.f32 %v2745, %v2753
    %v2756 = vtanh.pop %v2755
    %2758 = vrot.lane.b32.xlu0 %v2756, 32
    %v2759 = vpop.permute.xlu0 %2758
    %v2761 = vmul.f32 %v2743, %v2759
    %v2762 = vld [vmem:[#allocation10] sm:$0xff]
    %v2763 = vld [vmem:[#allocation10 + $0x8] sm:$0xff]
    %v2764 = vld [vmem:[#allocation10 + $0x10] sm:$0xff]
    %v2765 = vld [vmem:[#allocation10 + $0x18] sm:$0xff]
    %v2766 = vld [vmem:[#allocation11] sm:$0xff]
    %v2767 = vld [vmem:[#allocation11 + $0x8] sm:$0xff]
    %v2768 = vld [vmem:[#allocation11 + $0x10] sm:$0xff]
    %v2769 = vld [vmem:[#allocation11 + $0x18] sm:$0xff]
    %2770 = vmatprep.subr.mxu0 0.0
    %2771 = vmatpush1.msra.mxu0 0.0
    %2772 = vmatprep.subr.mxu0 0.0
    %2773 = vmatpush1.msra.mxu0 0.0
    %2774 = vmatprep.subr.mxu0 0.0
    %2775 = vmatpush1.msra.mxu0 0.0
    %2776 = vmatprep.subr.mxu0 0.0
    %2777 = vmatpush1.msra.mxu0 0.0
    %2778 = vmatprep.subr.mxu0 0.0
    %2779 = vmatpush1.msra.mxu0 0.0
    %2780 = vmatprep.subr.mxu0 0.0
    %2781 = vmatpush1.msra.mxu0 0.0
    %2782 = vmatprep.subr.mxu0 0.0
    %2783 = vmatpush1.msra.mxu0 0.0
    %2784 = vmatprep.subr.mxu0 0.0
    %2785 = vmatpush1.msra.mxu0 0.0
    %2786 = vmatprep.subr.mxu0 0.0
    %2787 = vmatpush1.msra.mxu0 0.0
    %2788 = vmatprep.subr.mxu0 0.0
    %2789 = vmatpush1.msra.mxu0 0.0
    %2790 = vmatprep.subr.mxu0 0.0
    %2791 = vmatpush1.msra.mxu0 0.0
    %2792 = vmatprep.subr.mxu0 0.0
    %2793 = vmatpush1.msra.mxu0 0.0
    %2794 = vmatprep.subr.mxu0 0.0
    %2795 = vmatpush1.msra.mxu0 %v2769
    %2796 = vmatprep.subr.mxu0 0.0
    %2797 = vmatpush1.msra.mxu0 %v2768
    %2798 = vmatprep.subr.mxu0 0.0
    %2799 = vmatpush1.msra.mxu0 %v2767
    %2800 = vmatprep.subr.mxu0 0.0
    %2801 = vmatpush1.msra.mxu0 %v2766
    %2802 = vmatprep.subr.mxu0 0.0
    %2803 = vmatpush2.msra.mxu0 0.0
    %2804 = vmatprep.subr.mxu0 0.0
    %2805 = vmatpush2.msra.mxu0 0.0
    %2806 = vmatprep.subr.mxu0 0.0
    %2807 = vmatpush2.msra.mxu0 0.0
    %2808 = vmatprep.subr.mxu0 0.0
    %2809 = vmatpush2.msra.mxu0 0.0
    %2810 = vmatprep.subr.mxu0 0.0
    %2811 = vmatpush2.msra.mxu0 0.0
    %2812 = vmatprep.subr.mxu0 0.0
    %2813 = vmatpush2.msra.mxu0 0.0
    %2814 = vmatprep.subr.mxu0 0.0
    %2815 = vmatpush2.msra.mxu0 0.0
    %2816 = vmatprep.subr.mxu0 0.0
    %2817 = vmatpush2.msra.mxu0 0.0
    %2818 = vmatprep.subr.mxu0 0.0
    %2819 = vmatpush2.msra.mxu0 0.0
    %2820 = vmatprep.subr.mxu0 0.0
    %2821 = vmatpush2.msra.mxu0 0.0
    %2822 = vmatprep.subr.mxu0 0.0
    %2823 = vmatpush2.msra.mxu0 0.0
    %2824 = vmatprep.subr.mxu0 0.0
    %2825 = vmatpush2.msra.mxu0 0.0
    %2826 = vmatprep.subr.mxu0 0.0
    %2827 = vmatpush2.msra.mxu0 0.0
    %2828 = vmatprep.subr.mxu0 0.0
    %2829 = vmatpush2.msra.mxu0 0.0
    %2830 = vmatprep.subr.mxu0 0.0
    %2831 = vmatpush2.msra.mxu0 0.0
    %2832 = vmatprep.subr.mxu0 0.0
    %2833 = vmatpush2.msra.mxu0 0.0
    %2834 = vmatprep.mubr.f32.mxu0 0.0
    %2835 = vmatmul.mubr.f32.gmra.mxu0 %v2488
    %v2836 = vpop.f32.mrf.mxu0
    %v2837 = vadd.f32 0.0, %v2836
    %v2838 = vpop.f32.mrf.mxu0
    %2839 = vdwg.mxu0
    %2841 = vrot.lane.b32.xlu0 %v2761, 64
    %v2842 = vpop.permute.xlu0 %2841
    %v2843 = vsel %vm220, %v2842, 0
    %2845 = vmatprep.subr.mxu0 0.0
    %2846 = vmatpush1.msra.mxu0 0.0
    %2847 = vmatprep.subr.mxu0 0.0
    %2848 = vmatpush1.msra.mxu0 0.0
    %2849 = vmatprep.subr.mxu0 0.0
    %2850 = vmatpush1.msra.mxu0 0.0
    %2851 = vmatprep.subr.mxu0 0.0
    %2852 = vmatpush1.msra.mxu0 0.0
    %2853 = vmatprep.subr.mxu0 0.0
    %2854 = vmatpush1.msra.mxu0 0.0
    %2855 = vmatprep.subr.mxu0 0.0
    %2856 = vmatpush1.msra.mxu0 0.0
    %2857 = vmatprep.subr.mxu0 0.0
    %2858 = vmatpush1.msra.mxu0 0.0
    %2859 = vmatprep.subr.mxu0 0.0
    %2860 = vmatpush1.msra.mxu0 0.0
    %2861 = vmatprep.subr.mxu0 0.0
    %2862 = vmatpush1.msra.mxu0 0.0
    %2863 = vmatprep.subr.mxu0 0.0
    %2864 = vmatpush1.msra.mxu0 0.0
    %2865 = vmatprep.subr.mxu0 0.0
    %2866 = vmatpush1.msra.mxu0 0.0
    %2867 = vmatprep.subr.mxu0 0.0
    %2868 = vmatpush1.msra.mxu0 0.0
    %2869 = vmatprep.subr.mxu0 0.0
    %2870 = vmatpush1.msra.mxu0 %v2765
    %2871 = vmatprep.subr.mxu0 0.0
    %2872 = vmatpush1.msra.mxu0 %v2764
    %2873 = vmatprep.subr.mxu0 0.0
    %2874 = vmatpush1.msra.mxu0 %v2763
    %2875 = vmatprep.subr.mxu0 0.0
    %2876 = vmatpush1.msra.mxu0 %v2762
    %2877 = vmatprep.subr.mxu0 0.0
    %2878 = vmatpush2.msra.mxu0 0.0
    %2879 = vmatprep.subr.mxu0 0.0
    %2880 = vmatpush2.msra.mxu0 0.0
    %2881 = vmatprep.subr.mxu0 0.0
    %2882 = vmatpush2.msra.mxu0 0.0
    %2883 = vmatprep.subr.mxu0 0.0
    %2884 = vmatpush2.msra.mxu0 0.0
    %2885 = vmatprep.subr.mxu0 0.0
    %2886 = vmatpush2.msra.mxu0 0.0
    %2887 = vmatprep.subr.mxu0 0.0
    %2888 = vmatpush2.msra.mxu0 0.0
    %2889 = vmatprep.subr.mxu0 0.0
    %2890 = vmatpush2.msra.mxu0 0.0
    %2891 = vmatprep.subr.mxu0 0.0
    %2892 = vmatpush2.msra.mxu0 0.0
    %2893 = vmatprep.subr.mxu0 0.0
    %2894 = vmatpush2.msra.mxu0 0.0
    %2895 = vmatprep.subr.mxu0 0.0
    %2896 = vmatpush2.msra.mxu0 0.0
    %2897 = vmatprep.subr.mxu0 0.0
    %2898 = vmatpush2.msra.mxu0 0.0
    %2899 = vmatprep.subr.mxu0 0.0
    %2900 = vmatpush2.msra.mxu0 0.0
    %2901 = vmatprep.subr.mxu0 0.0
    %2902 = vmatpush2.msra.mxu0 0.0
    %2903 = vmatprep.subr.mxu0 0.0
    %2904 = vmatpush2.msra.mxu0 0.0
    %2905 = vmatprep.subr.mxu0 0.0
    %2906 = vmatpush2.msra.mxu0 0.0
    %2907 = vmatprep.subr.mxu0 0.0
    %2908 = vmatpush2.msra.mxu0 0.0
    %2909 = vmatprep.mubr.f32.mxu0 0.0
    %2910 = vmatmul.mubr.f32.gmra.mxu0 %v2843
    %v2911 = vpop.f32.mrf.mxu0
    %v2912 = vadd.f32 %v2837, %v2911
    %v2913 = vpop.f32.mrf.mxu0
    %2914 = vdwg.mxu0
    %v2915 = vld [vmem:[#allocation13] sm:$0x1]
    %v2917 = vlaneseq
    %v2918 = vshrl.u32 %v2917, 7
    %v2919 = vsub.s32 0, %v2918
    %v2920 = vrot.slane %v2915, %v2919
    %v2922 = vadd.f32 %v2912, %v2920
    %v2923 = vxor.u32 %v2922, 2147483648
    %v2924 = vmul.f32 %v2923, 1.442695
    %v2925 = vpow.pop %v2924
    %v2926 = vadd.f32 %v2925, 1.0
    %v2927 = vrcp.pop %v2926
    %v2928 = vmul.f32 1.0, %v2927
    %v2929 = vtanh.pop %v2922
    %v2930 = vmul.f32 %v2928, %v2467
    %2932 = vrot.lane.b32.xlu0 %v2929, 32
    %v2933 = vpop.permute.xlu0 %2932
    %v2935 = vmul.f32 %v2928, %v2933
    %2937 = vrot.lane.b32.xlu0 %v2935, 32
    %v2938 = vpop.permute.xlu0 %2937
    %v2940 = vadd.f32 %v2930, %v2938
    %v2941 = vtanh.pop %v2940
    %2943 = vrot.lane.b32.xlu0 %v2941, 32
    %v2944 = vpop.permute.xlu0 %2943
    %v2946 = vmul.f32 %v2928, %v2944
    %v2947 = vld [vmem:[%s9] sm:$0xff]
    %v2948 = vld [vmem:[%s9 + $0x8] sm:$0xff]
    %v2949 = vld [vmem:[%s9 + $0x10] sm:$0xff]
    %v2950 = vld [vmem:[%s9 + $0x18] sm:$0xff]
    %v2951 = vld [vmem:[%s10] sm:$0x1]
    %v2953 = vlaneseq
    %v2954 = vshrl.u32 %v2953, 7
    %v2955 = vsub.s32 0, %v2954
    %v2956 = vrot.slane %v2951, %v2955
    %2959 = vrot.lane.b32.xlu0 %v2946, 64
    %v2960 = vpop.permute.xlu0 %2959
    %v2961 = vsel %vm220, %v2960, 0
    %2963 = vmatprep.subr.mxu0 0.0
    %2964 = vmatpush1.msra.mxu0 0.0
    %2965 = vmatprep.subr.mxu0 0.0
    %2966 = vmatpush1.msra.mxu0 0.0
    %2967 = vmatprep.subr.mxu0 0.0
    %2968 = vmatpush1.msra.mxu0 0.0
    %2969 = vmatprep.subr.mxu0 0.0
    %2970 = vmatpush1.msra.mxu0 0.0
    %2971 = vmatprep.subr.mxu0 0.0
    %2972 = vmatpush1.msra.mxu0 0.0
    %2973 = vmatprep.subr.mxu0 0.0
    %2974 = vmatpush1.msra.mxu0 0.0
    %2975 = vmatprep.subr.mxu0 0.0
    %2976 = vmatpush1.msra.mxu0 0.0
    %2977 = vmatprep.subr.mxu0 0.0
    %2978 = vmatpush1.msra.mxu0 0.0
    %2979 = vmatprep.subr.mxu0 0.0
    %2980 = vmatpush1.msra.mxu0 0.0
    %2981 = vmatprep.subr.mxu0 0.0
    %2982 = vmatpush1.msra.mxu0 0.0
    %2983 = vmatprep.subr.mxu0 0.0
    %2984 = vmatpush1.msra.mxu0 0.0
    %2985 = vmatprep.subr.mxu0 0.0
    %2986 = vmatpush1.msra.mxu0 0.0
    %2987 = vmatprep.subr.mxu0 0.0
    %2988 = vmatpush1.msra.mxu0 %v2950
    %2989 = vmatprep.subr.mxu0 0.0
    %2990 = vmatpush1.msra.mxu0 %v2949
    %2991 = vmatprep.subr.mxu0 0.0
    %2992 = vmatpush1.msra.mxu0 %v2948
    %2993 = vmatprep.subr.mxu0 0.0
    %2994 = vmatpush1.msra.mxu0 %v2947
    %2995 = vmatprep.subr.mxu0 0.0
    %2996 = vmatpush2.msra.mxu0 0.0
    %2997 = vmatprep.subr.mxu0 0.0
    %2998 = vmatpush2.msra.mxu0 0.0
    %2999 = vmatprep.subr.mxu0 0.0
    %3000 = vmatpush2.msra.mxu0 0.0
    %3001 = vmatprep.subr.mxu0 0.0
    %3002 = vmatpush2.msra.mxu0 0.0
    %3003 = vmatprep.subr.mxu0 0.0
    %3004 = vmatpush2.msra.mxu0 0.0
    %3005 = vmatprep.subr.mxu0 0.0
    %3006 = vmatpush2.msra.mxu0 0.0
    %3007 = vmatprep.subr.mxu0 0.0
    %3008 = vmatpush2.msra.mxu0 0.0
    %3009 = vmatprep.subr.mxu0 0.0
    %3010 = vmatpush2.msra.mxu0 0.0
    %3011 = vmatprep.subr.mxu0 0.0
    %3012 = vmatpush2.msra.mxu0 0.0
    %3013 = vmatprep.subr.mxu0 0.0
    %3014 = vmatpush2.msra.mxu0 0.0
    %3015 = vmatprep.subr.mxu0 0.0
    %3016 = vmatpush2.msra.mxu0 0.0
    %3017 = vmatprep.subr.mxu0 0.0
    %3018 = vmatpush2.msra.mxu0 0.0
    %3019 = vmatprep.subr.mxu0 0.0
    %3020 = vmatpush2.msra.mxu0 0.0
    %3021 = vmatprep.subr.mxu0 0.0
    %3022 = vmatpush2.msra.mxu0 0.0
    %3023 = vmatprep.subr.mxu0 0.0
    %3024 = vmatpush2.msra.mxu0 0.0
    %3025 = vmatprep.subr.mxu0 0.0
    %3026 = vmatpush2.msra.mxu0 0.0
    %3027 = vmatprep.mubr.f32.mxu0 0.0
    %3028 = vmatmul.mubr.f32.gmra.mxu0 %v2961
    %v3029 = vpop.f32.mrf.mxu0
    %v3030 = vadd.f32 %v2956, %v3029
    %v3031 = vpop.f32.mrf.mxu0
    %3032 = vdwg.mxu0
    %v3033 = vsel %vm294, %v3030, -inf
    %3034 = vmax.xlane.f32.xlu0 %v3033
    %v3035 = vpop.xlane.xlu0 %3034
    %v3036 = vsub.f32 %v3030, %v3035
    %v3037 = vmul.f32 %v3036, 1.442695
    %v3038 = vpow.pop %v3037
    %v3039 = vsel %vm294, %v3038, 0.0
    %3040 = vadd.xlane.f32.xlu0 %v3039
    %v3041 = vpop.xlane.xlu0 %3040
    %v3042 = vrcp.pop %v3041
    %v3043 = vmul.f32 %v3038, %v3042
    %3045 = vrot.lane.b32.xlu0 %v3030, 80
    %v3046 = vpop.permute.xlu0 %3045
    %vm3048 = vcmask 786048
    %3049 = vst.msk [vmem:[#allocation15] sm:$0xff] %vm3048, %v3046
    %3051 = vrot.lane.b32.xlu0 %v3043, 80
    %v3052 = vpop.permute.xlu0 %3051
    %3054 = vst.msk [vmem:[#allocation14] sm:$0xff] %vm3048, %v3052
    %v3055 = vld [vmem:[%s3] sm:$0xff]
    %v3056 = vld [vmem:[%s3 + $0x8] sm:$0xff]
    %v3057 = vld [vmem:[%s4] sm:$0xff]
    %v3058 = vld [vmem:[%s4 + $0x8] sm:$0xff]
    %v3059 = vld [vmem:[%s4 + $0x10] sm:$0xff]
    %v3060 = vld [vmem:[%s4 + $0x18] sm:$0xff]
    %3061 = vmatprep.subr.mxu0 0.0
    %3062 = vmatpush1.msra.mxu0 0.0
    %3063 = vmatprep.subr.mxu0 0.0
    %3064 = vmatpush1.msra.mxu0 0.0
    %3065 = vmatprep.subr.mxu0 0.0
    %3066 = vmatpush1.msra.mxu0 0.0
    %3067 = vmatprep.subr.mxu0 0.0
    %3068 = vmatpush1.msra.mxu0 0.0
    %3069 = vmatprep.subr.mxu0 0.0
    %3070 = vmatpush1.msra.mxu0 0.0
    %3071 = vmatprep.subr.mxu0 0.0
    %3072 = vmatpush1.msra.mxu0 0.0
    %3073 = vmatprep.subr.mxu0 0.0
    %3074 = vmatpush1.msra.mxu0 0.0
    %3075 = vmatprep.subr.mxu0 0.0
    %3076 = vmatpush1.msra.mxu0 0.0
    %3077 = vmatprep.subr.mxu0 0.0
    %3078 = vmatpush1.msra.mxu0 0.0
    %3079 = vmatprep.subr.mxu0 0.0
    %3080 = vmatpush1.msra.mxu0 0.0
    %3081 = vmatprep.subr.mxu0 0.0
    %3082 = vmatpush1.msra.mxu0 0.0
    %3083 = vmatprep.subr.mxu0 0.0
    %3084 = vmatpush1.msra.mxu0 0.0
    %3085 = vmatprep.subr.mxu0 0.0
    %3086 = vmatpush1.msra.mxu0 %v3060
    %3087 = vmatprep.subr.mxu0 0.0
    %3088 = vmatpush1.msra.mxu0 %v3059
    %3089 = vmatprep.subr.mxu0 0.0
    %3090 = vmatpush1.msra.mxu0 %v3058
    %3091 = vmatprep.subr.mxu0 0.0
    %3092 = vmatpush1.msra.mxu0 %v3057
    %3093 = vmatprep.subr.mxu0 0.0
    %3094 = vmatpush2.msra.mxu0 0.0
    %3095 = vmatprep.subr.mxu0 0.0
    %3096 = vmatpush2.msra.mxu0 0.0
    %3097 = vmatprep.subr.mxu0 0.0
    %3098 = vmatpush2.msra.mxu0 0.0
    %3099 = vmatprep.subr.mxu0 0.0
    %3100 = vmatpush2.msra.mxu0 0.0
    %3101 = vmatprep.subr.mxu0 0.0
    %3102 = vmatpush2.msra.mxu0 0.0
    %3103 = vmatprep.subr.mxu0 0.0
    %3104 = vmatpush2.msra.mxu0 0.0
    %3105 = vmatprep.subr.mxu0 0.0
    %3106 = vmatpush2.msra.mxu0 0.0
    %3107 = vmatprep.subr.mxu0 0.0
    %3108 = vmatpush2.msra.mxu0 0.0
    %3109 = vmatprep.subr.mxu0 0.0
    %3110 = vmatpush2.msra.mxu0 0.0
    %3111 = vmatprep.subr.mxu0 0.0
    %3112 = vmatpush2.msra.mxu0 0.0
    %3113 = vmatprep.subr.mxu0 0.0
    %3114 = vmatpush2.msra.mxu0 0.0
    %3115 = vmatprep.subr.mxu0 0.0
    %3116 = vmatpush2.msra.mxu0 0.0
    %3117 = vmatprep.subr.mxu0 0.0
    %3118 = vmatpush2.msra.mxu0 0.0
    %3119 = vmatprep.subr.mxu0 0.0
    %3120 = vmatpush2.msra.mxu0 0.0
    %3121 = vmatprep.subr.mxu0 0.0
    %3122 = vmatpush2.msra.mxu0 0.0
    %3123 = vmatprep.subr.mxu0 0.0
    %3124 = vmatpush2.msra.mxu0 0.0
    %3125 = vmatprep.mubr.f32.mxu0 0.0
    %3126 = vmatmul.mubr.f32.gmra.mxu0 %v2843
    %v3127 = vpop.f32.mrf.mxu0
    %v3128 = vadd.f32 0.0, %v3127
    %v3129 = vpop.f32.mrf.mxu0
    %3130 = vdwg.mxu0
    %v3131 = vsel %vm294, %v3043, 0
    %3133 = vmatprep.subr.mxu0 0.0
    %3134 = vmatpush1.msra.mxu0 0.0
    %3135 = vmatprep.subr.mxu0 0.0
    %3136 = vmatpush1.msra.mxu0 0.0
    %3137 = vmatprep.subr.mxu0 0.0
    %3138 = vmatpush1.msra.mxu0 0.0
    %3139 = vmatprep.subr.mxu0 0.0
    %3140 = vmatpush1.msra.mxu0 0.0
    %3141 = vmatprep.subr.mxu0 0.0
    %3142 = vmatpush1.msra.mxu0 0.0
    %3143 = vmatprep.subr.mxu0 0.0
    %3144 = vmatpush1.msra.mxu0 0.0
    %3145 = vmatprep.subr.mxu0 0.0
    %3146 = vmatpush1.msra.mxu0 0.0
    %3147 = vmatprep.subr.mxu0 0.0
    %3148 = vmatpush1.msra.mxu0 0.0
    %3149 = vmatprep.subr.mxu0 0.0
    %3150 = vmatpush1.msra.mxu0 0.0
    %3151 = vmatprep.subr.mxu0 0.0
    %3152 = vmatpush1.msra.mxu0 0.0
    %3153 = vmatprep.subr.mxu0 0.0
    %3154 = vmatpush1.msra.mxu0 0.0
    %3155 = vmatprep.subr.mxu0 0.0
    %3156 = vmatpush1.msra.mxu0 0.0
    %3157 = vmatprep.subr.mxu0 0.0
    %3158 = vmatpush1.msra.mxu0 0.0
    %3159 = vmatprep.subr.mxu0 0.0
    %3160 = vmatpush1.msra.mxu0 0.0
    %3161 = vmatprep.subr.mxu0 0.0
    %3162 = vmatpush1.msra.mxu0 %v3056
    %3163 = vmatprep.subr.mxu0 0.0
    %3164 = vmatpush1.msra.mxu0 %v3055
    %3165 = vmatprep.subr.mxu0 0.0
    %3166 = vmatpush2.msra.mxu0 0.0
    %3167 = vmatprep.subr.mxu0 0.0
    %3168 = vmatpush2.msra.mxu0 0.0
    %3169 = vmatprep.subr.mxu0 0.0
    %3170 = vmatpush2.msra.mxu0 0.0
    %3171 = vmatprep.subr.mxu0 0.0
    %3172 = vmatpush2.msra.mxu0 0.0
    %3173 = vmatprep.subr.mxu0 0.0
    %3174 = vmatpush2.msra.mxu0 0.0
    %3175 = vmatprep.subr.mxu0 0.0
    %3176 = vmatpush2.msra.mxu0 0.0
    %3177 = vmatprep.subr.mxu0 0.0
    %3178 = vmatpush2.msra.mxu0 0.0
    %3179 = vmatprep.subr.mxu0 0.0
    %3180 = vmatpush2.msra.mxu0 0.0
    %3181 = vmatprep.subr.mxu0 0.0
    %3182 = vmatpush2.msra.mxu0 0.0
    %3183 = vmatprep.subr.mxu0 0.0
    %3184 = vmatpush2.msra.mxu0 0.0
    %3185 = vmatprep.subr.mxu0 0.0
    %3186 = vmatpush2.msra.mxu0 0.0
    %3187 = vmatprep.subr.mxu0 0.0
    %3188 = vmatpush2.msra.mxu0 0.0
    %3189 = vmatprep.subr.mxu0 0.0
    %3190 = vmatpush2.msra.mxu0 0.0
    %3191 = vmatprep.subr.mxu0 0.0
    %3192 = vmatpush2.msra.mxu0 0.0
    %3193 = vmatprep.subr.mxu0 0.0
    %3194 = vmatpush2.msra.mxu0 0.0
    %3195 = vmatprep.subr.mxu0 0.0
    %3196 = vmatpush2.msra.mxu0 0.0
    %3197 = vmatprep.mubr.f32.mxu0 0.0
    %3198 = vmatmul.mubr.f32.gmra.mxu0 %v3131
    %v3199 = vpop.f32.mrf.mxu0
    %v3200 = vadd.f32 %v3128, %v3199
    %v3201 = vpop.f32.mrf.mxu0
    %3202 = vdwg.mxu0
    %v3203 = vld [vmem:[#allocation8] sm:$0x1]
    %v3205 = vlaneseq
    %v3206 = vshrl.u32 %v3205, 7
    %v3207 = vsub.s32 0, %v3206
    %v3208 = vrot.slane %v3203, %v3207
    %v3210 = vadd.f32 %v3200, %v3208
    %v3211 = vxor.u32 %v3210, 2147483648
    %v3212 = vmul.f32 %v3211, 1.442695
    %v3213 = vpow.pop %v3212
    %v3214 = vadd.f32 %v3213, 1.0
    %v3215 = vrcp.pop %v3214
    %v3216 = vmul.f32 1.0, %v3215
    %v3217 = vtanh.pop %v3210
    %v3218 = vmul.f32 %v3216, %v2755
    %3220 = vrot.lane.b32.xlu0 %v3217, 32
    %v3221 = vpop.permute.xlu0 %3220
    %v3223 = vmul.f32 %v3216, %v3221
    %3225 = vrot.lane.b32.xlu0 %v3223, 32
    %v3226 = vpop.permute.xlu0 %3225
    %v3228 = vadd.f32 %v3218, %v3226
    %v3229 = vtanh.pop %v3228
    %3231 = vrot.lane.b32.xlu0 %v3229, 32
    %v3232 = vpop.permute.xlu0 %3231
    %v3234 = vmul.f32 %v3216, %v3232
    %v3235 = vld [vmem:[#allocation10] sm:$0xff]
    %v3236 = vld [vmem:[#allocation10 + $0x8] sm:$0xff]
    %v3237 = vld [vmem:[#allocation10 + $0x10] sm:$0xff]
    %v3238 = vld [vmem:[#allocation10 + $0x18] sm:$0xff]
    %v3239 = vld [vmem:[#allocation11] sm:$0xff]
    %v3240 = vld [vmem:[#allocation11 + $0x8] sm:$0xff]
    %v3241 = vld [vmem:[#allocation11 + $0x10] sm:$0xff]
    %v3242 = vld [vmem:[#allocation11 + $0x18] sm:$0xff]
    %3243 = vmatprep.subr.mxu0 0.0
    %3244 = vmatpush1.msra.mxu0 0.0
    %3245 = vmatprep.subr.mxu0 0.0
    %3246 = vmatpush1.msra.mxu0 0.0
    %3247 = vmatprep.subr.mxu0 0.0
    %3248 = vmatpush1.msra.mxu0 0.0
    %3249 = vmatprep.subr.mxu0 0.0
    %3250 = vmatpush1.msra.mxu0 0.0
    %3251 = vmatprep.subr.mxu0 0.0
    %3252 = vmatpush1.msra.mxu0 0.0
    %3253 = vmatprep.subr.mxu0 0.0
    %3254 = vmatpush1.msra.mxu0 0.0
    %3255 = vmatprep.subr.mxu0 0.0
    %3256 = vmatpush1.msra.mxu0 0.0
    %3257 = vmatprep.subr.mxu0 0.0
    %3258 = vmatpush1.msra.mxu0 0.0
    %3259 = vmatprep.subr.mxu0 0.0
    %3260 = vmatpush1.msra.mxu0 0.0
    %3261 = vmatprep.subr.mxu0 0.0
    %3262 = vmatpush1.msra.mxu0 0.0
    %3263 = vmatprep.subr.mxu0 0.0
    %3264 = vmatpush1.msra.mxu0 0.0
    %3265 = vmatprep.subr.mxu0 0.0
    %3266 = vmatpush1.msra.mxu0 0.0
    %3267 = vmatprep.subr.mxu0 0.0
    %3268 = vmatpush1.msra.mxu0 %v3242
    %3269 = vmatprep.subr.mxu0 0.0
    %3270 = vmatpush1.msra.mxu0 %v3241
    %3271 = vmatprep.subr.mxu0 0.0
    %3272 = vmatpush1.msra.mxu0 %v3240
    %3273 = vmatprep.subr.mxu0 0.0
    %3274 = vmatpush1.msra.mxu0 %v3239
    %3275 = vmatprep.subr.mxu0 0.0
    %3276 = vmatpush2.msra.mxu0 0.0
    %3277 = vmatprep.subr.mxu0 0.0
    %3278 = vmatpush2.msra.mxu0 0.0
    %3279 = vmatprep.subr.mxu0 0.0
    %3280 = vmatpush2.msra.mxu0 0.0
    %3281 = vmatprep.subr.mxu0 0.0
    %3282 = vmatpush2.msra.mxu0 0.0
    %3283 = vmatprep.subr.mxu0 0.0
    %3284 = vmatpush2.msra.mxu0 0.0
    %3285 = vmatprep.subr.mxu0 0.0
    %3286 = vmatpush2.msra.mxu0 0.0
    %3287 = vmatprep.subr.mxu0 0.0
    %3288 = vmatpush2.msra.mxu0 0.0
    %3289 = vmatprep.subr.mxu0 0.0
    %3290 = vmatpush2.msra.mxu0 0.0
    %3291 = vmatprep.subr.mxu0 0.0
    %3292 = vmatpush2.msra.mxu0 0.0
    %3293 = vmatprep.subr.mxu0 0.0
    %3294 = vmatpush2.msra.mxu0 0.0
    %3295 = vmatprep.subr.mxu0 0.0
    %3296 = vmatpush2.msra.mxu0 0.0
    %3297 = vmatprep.subr.mxu0 0.0
    %3298 = vmatpush2.msra.mxu0 0.0
    %3299 = vmatprep.subr.mxu0 0.0
    %3300 = vmatpush2.msra.mxu0 0.0
    %3301 = vmatprep.subr.mxu0 0.0
    %3302 = vmatpush2.msra.mxu0 0.0
    %3303 = vmatprep.subr.mxu0 0.0
    %3304 = vmatpush2.msra.mxu0 0.0
    %3305 = vmatprep.subr.mxu0 0.0
    %3306 = vmatpush2.msra.mxu0 0.0
    %3307 = vmatprep.mubr.f32.mxu0 0.0
    %3308 = vmatmul.mubr.f32.gmra.mxu0 %v2961
    %v3309 = vpop.f32.mrf.mxu0
    %v3310 = vadd.f32 0.0, %v3309
    %v3311 = vpop.f32.mrf.mxu0
    %3312 = vdwg.mxu0
    %3314 = vrot.lane.b32.xlu0 %v3234, 64
    %v3315 = vpop.permute.xlu0 %3314
    %v3316 = vsel %vm220, %v3315, 0
    %3318 = vmatprep.subr.mxu0 0.0
    %3319 = vmatpush1.msra.mxu0 0.0
    %3320 = vmatprep.subr.mxu0 0.0
    %3321 = vmatpush1.msra.mxu0 0.0
    %3322 = vmatprep.subr.mxu0 0.0
    %3323 = vmatpush1.msra.mxu0 0.0
    %3324 = vmatprep.subr.mxu0 0.0
    %3325 = vmatpush1.msra.mxu0 0.0
    %3326 = vmatprep.subr.mxu0 0.0
    %3327 = vmatpush1.msra.mxu0 0.0
    %3328 = vmatprep.subr.mxu0 0.0
    %3329 = vmatpush1.msra.mxu0 0.0
    %3330 = vmatprep.subr.mxu0 0.0
    %3331 = vmatpush1.msra.mxu0 0.0
    %3332 = vmatprep.subr.mxu0 0.0
    %3333 = vmatpush1.msra.mxu0 0.0
    %3334 = vmatprep.subr.mxu0 0.0
    %3335 = vmatpush1.msra.mxu0 0.0
    %3336 = vmatprep.subr.mxu0 0.0
    %3337 = vmatpush1.msra.mxu0 0.0
    %3338 = vmatprep.subr.mxu0 0.0
    %3339 = vmatpush1.msra.mxu0 0.0
    %3340 = vmatprep.subr.mxu0 0.0
    %3341 = vmatpush1.msra.mxu0 0.0
    %3342 = vmatprep.subr.mxu0 0.0
    %3343 = vmatpush1.msra.mxu0 %v3238
    %3344 = vmatprep.subr.mxu0 0.0
    %3345 = vmatpush1.msra.mxu0 %v3237
    %3346 = vmatprep.subr.mxu0 0.0
    %3347 = vmatpush1.msra.mxu0 %v3236
    %3348 = vmatprep.subr.mxu0 0.0
    %3349 = vmatpush1.msra.mxu0 %v3235
    %3350 = vmatprep.subr.mxu0 0.0
    %3351 = vmatpush2.msra.mxu0 0.0
    %3352 = vmatprep.subr.mxu0 0.0
    %3353 = vmatpush2.msra.mxu0 0.0
    %3354 = vmatprep.subr.mxu0 0.0
    %3355 = vmatpush2.msra.mxu0 0.0
    %3356 = vmatprep.subr.mxu0 0.0
    %3357 = vmatpush2.msra.mxu0 0.0
    %3358 = vmatprep.subr.mxu0 0.0
    %3359 = vmatpush2.msra.mxu0 0.0
    %3360 = vmatprep.subr.mxu0 0.0
    %3361 = vmatpush2.msra.mxu0 0.0
    %3362 = vmatprep.subr.mxu0 0.0
    %3363 = vmatpush2.msra.mxu0 0.0
    %3364 = vmatprep.subr.mxu0 0.0
    %3365 = vmatpush2.msra.mxu0 0.0
    %3366 = vmatprep.subr.mxu0 0.0
    %3367 = vmatpush2.msra.mxu0 0.0
    %3368 = vmatprep.subr.mxu0 0.0
    %3369 = vmatpush2.msra.mxu0 0.0
    %3370 = vmatprep.subr.mxu0 0.0
    %3371 = vmatpush2.msra.mxu0 0.0
    %3372 = vmatprep.subr.mxu0 0.0
    %3373 = vmatpush2.msra.mxu0 0.0
    %3374 = vmatprep.subr.mxu0 0.0
    %3375 = vmatpush2.msra.mxu0 0.0
    %3376 = vmatprep.subr.mxu0 0.0
    %3377 = vmatpush2.msra.mxu0 0.0
    %3378 = vmatprep.subr.mxu0 0.0
    %3379 = vmatpush2.msra.mxu0 0.0
    %3380 = vmatprep.subr.mxu0 0.0
    %3381 = vmatpush2.msra.mxu0 0.0
    %3382 = vmatprep.mubr.f32.mxu0 0.0
    %3383 = vmatmul.mubr.f32.gmra.mxu0 %v3316
    %v3384 = vpop.f32.mrf.mxu0
    %v3385 = vadd.f32 %v3310, %v3384
    %v3386 = vpop.f32.mrf.mxu0
    %3387 = vdwg.mxu0
    %v3388 = vld [vmem:[#allocation13] sm:$0x1]
    %v3390 = vlaneseq
    %v3391 = vshrl.u32 %v3390, 7
    %v3392 = vsub.s32 0, %v3391
    %v3393 = vrot.slane %v3388, %v3392
    %v3395 = vadd.f32 %v3385, %v3393
    %v3396 = vxor.u32 %v3395, 2147483648
    %v3397 = vmul.f32 %v3396, 1.442695
    %v3398 = vpow.pop %v3397
    %v3399 = vadd.f32 %v3398, 1.0
    %v3400 = vrcp.pop %v3399
    %v3401 = vmul.f32 1.0, %v3400
    %v3402 = vtanh.pop %v3395
    %v3403 = vmul.f32 %v3401, %v2940
    %3405 = vrot.lane.b32.xlu0 %v3402, 32
    %v3406 = vpop.permute.xlu0 %3405
    %v3408 = vmul.f32 %v3401, %v3406
    %3410 = vrot.lane.b32.xlu0 %v3408, 32
    %v3411 = vpop.permute.xlu0 %3410
    %v3413 = vadd.f32 %v3403, %v3411
    %v3414 = vtanh.pop %v3413
    %3416 = vrot.lane.b32.xlu0 %v3414, 32
    %v3417 = vpop.permute.xlu0 %3416
    %v3419 = vmul.f32 %v3401, %v3417
    %v3420 = vld [vmem:[%s9] sm:$0xff]
    %v3421 = vld [vmem:[%s9 + $0x8] sm:$0xff]
    %v3422 = vld [vmem:[%s9 + $0x10] sm:$0xff]
    %v3423 = vld [vmem:[%s9 + $0x18] sm:$0xff]
    %v3424 = vld [vmem:[%s10] sm:$0x1]
    %v3426 = vlaneseq
    %v3427 = vshrl.u32 %v3426, 7
    %v3428 = vsub.s32 0, %v3427
    %v3429 = vrot.slane %v3424, %v3428
    %3432 = vrot.lane.b32.xlu0 %v3419, 64
    %v3433 = vpop.permute.xlu0 %3432
    %v3434 = vsel %vm220, %v3433, 0
    %3436 = vmatprep.subr.mxu0 0.0
    %3437 = vmatpush1.msra.mxu0 0.0
    %3438 = vmatprep.subr.mxu0 0.0
    %3439 = vmatpush1.msra.mxu0 0.0
    %3440 = vmatprep.subr.mxu0 0.0
    %3441 = vmatpush1.msra.mxu0 0.0
    %3442 = vmatprep.subr.mxu0 0.0
    %3443 = vmatpush1.msra.mxu0 0.0
    %3444 = vmatprep.subr.mxu0 0.0
    %3445 = vmatpush1.msra.mxu0 0.0
    %3446 = vmatprep.subr.mxu0 0.0
    %3447 = vmatpush1.msra.mxu0 0.0
    %3448 = vmatprep.subr.mxu0 0.0
    %3449 = vmatpush1.msra.mxu0 0.0
    %3450 = vmatprep.subr.mxu0 0.0
    %3451 = vmatpush1.msra.mxu0 0.0
    %3452 = vmatprep.subr.mxu0 0.0
    %3453 = vmatpush1.msra.mxu0 0.0
    %3454 = vmatprep.subr.mxu0 0.0
    %3455 = vmatpush1.msra.mxu0 0.0
    %3456 = vmatprep.subr.mxu0 0.0
    %3457 = vmatpush1.msra.mxu0 0.0
    %3458 = vmatprep.subr.mxu0 0.0
    %3459 = vmatpush1.msra.mxu0 0.0
    %3460 = vmatprep.subr.mxu0 0.0
    %3461 = vmatpush1.msra.mxu0 %v3423
    %3462 = vmatprep.subr.mxu0 0.0
    %3463 = vmatpush1.msra.mxu0 %v3422
    %3464 = vmatprep.subr.mxu0 0.0
    %3465 = vmatpush1.msra.mxu0 %v3421
    %3466 = vmatprep.subr.mxu0 0.0
    %3467 = vmatpush1.msra.mxu0 %v3420
    %3468 = vmatprep.subr.mxu0 0.0
    %3469 = vmatpush2.msra.mxu0 0.0
    %3470 = vmatprep.subr.mxu0 0.0
    %3471 = vmatpush2.msra.mxu0 0.0
    %3472 = vmatprep.subr.mxu0 0.0
    %3473 = vmatpush2.msra.mxu0 0.0
    %3474 = vmatprep.subr.mxu0 0.0
    %3475 = vmatpush2.msra.mxu0 0.0
    %3476 = vmatprep.subr.mxu0 0.0
    %3477 = vmatpush2.msra.mxu0 0.0
    %3478 = vmatprep.subr.mxu0 0.0
    %3479 = vmatpush2.msra.mxu0 0.0
    %3480 = vmatprep.subr.mxu0 0.0
    %3481 = vmatpush2.msra.mxu0 0.0
    %3482 = vmatprep.subr.mxu0 0.0
    %3483 = vmatpush2.msra.mxu0 0.0
    %3484 = vmatprep.subr.mxu0 0.0
    %3485 = vmatpush2.msra.mxu0 0.0
    %3486 = vmatprep.subr.mxu0 0.0
    %3487 = vmatpush2.msra.mxu0 0.0
    %3488 = vmatprep.subr.mxu0 0.0
    %3489 = vmatpush2.msra.mxu0 0.0
    %3490 = vmatprep.subr.mxu0 0.0
    %3491 = vmatpush2.msra.mxu0 0.0
    %3492 = vmatprep.subr.mxu0 0.0
    %3493 = vmatpush2.msra.mxu0 0.0
    %3494 = vmatprep.subr.mxu0 0.0
    %3495 = vmatpush2.msra.mxu0 0.0
    %3496 = vmatprep.subr.mxu0 0.0
    %3497 = vmatpush2.msra.mxu0 0.0
    %3498 = vmatprep.subr.mxu0 0.0
    %3499 = vmatpush2.msra.mxu0 0.0
    %3500 = vmatprep.mubr.f32.mxu0 0.0
    %3501 = vmatmul.mubr.f32.gmra.mxu0 %v3434
    %v3502 = vpop.f32.mrf.mxu0
    %v3503 = vadd.f32 %v3429, %v3502
    %v3504 = vpop.f32.mrf.mxu0
    %3505 = vdwg.mxu0
    %v3506 = vsel %vm294, %v3503, -inf
    %3507 = vmax.xlane.f32.xlu0 %v3506
    %v3508 = vpop.xlane.xlu0 %3507
    %v3509 = vsub.f32 %v3503, %v3508
    %v3510 = vmul.f32 %v3509, 1.442695
    %v3511 = vpow.pop %v3510
    %v3512 = vsel %vm294, %v3511, 0.0
    %3513 = vadd.xlane.f32.xlu0 %v3512
    %v3514 = vpop.xlane.xlu0 %3513
    %v3515 = vrcp.pop %v3514
    %v3516 = vmul.f32 %v3511, %v3515
    %3518 = vrot.lane.b32.xlu0 %v3503, 96
    %v3519 = vpop.permute.xlu0 %3518
    %vm3521 = vcmask 917248
    %3522 = vst.msk [vmem:[#allocation15] sm:$0xff] %vm3521, %v3519
    %3524 = vrot.lane.b32.xlu0 %v3516, 96
    %v3525 = vpop.permute.xlu0 %3524
    %3527 = vst.msk [vmem:[#allocation14] sm:$0xff] %vm3521, %v3525
    %v3528 = vld [vmem:[%s3] sm:$0xff]
    %v3529 = vld [vmem:[%s3 + $0x8] sm:$0xff]
    %v3530 = vld [vmem:[%s4] sm:$0xff]
    %v3531 = vld [vmem:[%s4 + $0x8] sm:$0xff]
    %v3532 = vld [vmem:[%s4 + $0x10] sm:$0xff]
    %v3533 = vld [vmem:[%s4 + $0x18] sm:$0xff]
    %3534 = vmatprep.subr.mxu0 0.0
    %3535 = vmatpush1.msra.mxu0 0.0
    %3536 = vmatprep.subr.mxu0 0.0
    %3537 = vmatpush1.msra.mxu0 0.0
    %3538 = vmatprep.subr.mxu0 0.0
    %3539 = vmatpush1.msra.mxu0 0.0
    %3540 = vmatprep.subr.mxu0 0.0
    %3541 = vmatpush1.msra.mxu0 0.0
    %3542 = vmatprep.subr.mxu0 0.0
    %3543 = vmatpush1.msra.mxu0 0.0
    %3544 = vmatprep.subr.mxu0 0.0
    %3545 = vmatpush1.msra.mxu0 0.0
    %3546 = vmatprep.subr.mxu0 0.0
    %3547 = vmatpush1.msra.mxu0 0.0
    %3548 = vmatprep.subr.mxu0 0.0
    %3549 = vmatpush1.msra.mxu0 0.0
    %3550 = vmatprep.subr.mxu0 0.0
    %3551 = vmatpush1.msra.mxu0 0.0
    %3552 = vmatprep.subr.mxu0 0.0
    %3553 = vmatpush1.msra.mxu0 0.0
    %3554 = vmatprep.subr.mxu0 0.0
    %3555 = vmatpush1.msra.mxu0 0.0
    %3556 = vmatprep.subr.mxu0 0.0
    %3557 = vmatpush1.msra.mxu0 0.0
    %3558 = vmatprep.subr.mxu0 0.0
    %3559 = vmatpush1.msra.mxu0 %v3533
    %3560 = vmatprep.subr.mxu0 0.0
    %3561 = vmatpush1.msra.mxu0 %v3532
    %3562 = vmatprep.subr.mxu0 0.0
    %3563 = vmatpush1.msra.mxu0 %v3531
    %3564 = vmatprep.subr.mxu0 0.0
    %3565 = vmatpush1.msra.mxu0 %v3530
    %3566 = vmatprep.subr.mxu0 0.0
    %3567 = vmatpush2.msra.mxu0 0.0
    %3568 = vmatprep.subr.mxu0 0.0
    %3569 = vmatpush2.msra.mxu0 0.0
    %3570 = vmatprep.subr.mxu0 0.0
    %3571 = vmatpush2.msra.mxu0 0.0
    %3572 = vmatprep.subr.mxu0 0.0
    %3573 = vmatpush2.msra.mxu0 0.0
    %3574 = vmatprep.subr.mxu0 0.0
    %3575 = vmatpush2.msra.mxu0 0.0
    %3576 = vmatprep.subr.mxu0 0.0
    %3577 = vmatpush2.msra.mxu0 0.0
    %3578 = vmatprep.subr.mxu0 0.0
    %3579 = vmatpush2.msra.mxu0 0.0
    %3580 = vmatprep.subr.mxu0 0.0
    %3581 = vmatpush2.msra.mxu0 0.0
    %3582 = vmatprep.subr.mxu0 0.0
    %3583 = vmatpush2.msra.mxu0 0.0
    %3584 = vmatprep.subr.mxu0 0.0
    %3585 = vmatpush2.msra.mxu0 0.0
    %3586 = vmatprep.subr.mxu0 0.0
    %3587 = vmatpush2.msra.mxu0 0.0
    %3588 = vmatprep.subr.mxu0 0.0
    %3589 = vmatpush2.msra.mxu0 0.0
    %3590 = vmatprep.subr.mxu0 0.0
    %3591 = vmatpush2.msra.mxu0 0.0
    %3592 = vmatprep.subr.mxu0 0.0
    %3593 = vmatpush2.msra.mxu0 0.0
    %3594 = vmatprep.subr.mxu0 0.0
    %3595 = vmatpush2.msra.mxu0 0.0
    %3596 = vmatprep.subr.mxu0 0.0
    %3597 = vmatpush2.msra.mxu0 0.0
    %3598 = vmatprep.mubr.f32.mxu0 0.0
    %3599 = vmatmul.mubr.f32.gmra.mxu0 %v3316
    %v3600 = vpop.f32.mrf.mxu0
    %v3601 = vadd.f32 0.0, %v3600
    %v3602 = vpop.f32.mrf.mxu0
    %3603 = vdwg.mxu0
    %v3604 = vsel %vm294, %v3516, 0
    %3606 = vmatprep.subr.mxu0 0.0
    %3607 = vmatpush1.msra.mxu0 0.0
    %3608 = vmatprep.subr.mxu0 0.0
    %3609 = vmatpush1.msra.mxu0 0.0
    %3610 = vmatprep.subr.mxu0 0.0
    %3611 = vmatpush1.msra.mxu0 0.0
    %3612 = vmatprep.subr.mxu0 0.0
    %3613 = vmatpush1.msra.mxu0 0.0
    %3614 = vmatprep.subr.mxu0 0.0
    %3615 = vmatpush1.msra.mxu0 0.0
    %3616 = vmatprep.subr.mxu0 0.0
    %3617 = vmatpush1.msra.mxu0 0.0
    %3618 = vmatprep.subr.mxu0 0.0
    %3619 = vmatpush1.msra.mxu0 0.0
    %3620 = vmatprep.subr.mxu0 0.0
    %3621 = vmatpush1.msra.mxu0 0.0
    %3622 = vmatprep.subr.mxu0 0.0
    %3623 = vmatpush1.msra.mxu0 0.0
    %3624 = vmatprep.subr.mxu0 0.0
    %3625 = vmatpush1.msra.mxu0 0.0
    %3626 = vmatprep.subr.mxu0 0.0
    %3627 = vmatpush1.msra.mxu0 0.0
    %3628 = vmatprep.subr.mxu0 0.0
    %3629 = vmatpush1.msra.mxu0 0.0
    %3630 = vmatprep.subr.mxu0 0.0
    %3631 = vmatpush1.msra.mxu0 0.0
    %3632 = vmatprep.subr.mxu0 0.0
    %3633 = vmatpush1.msra.mxu0 0.0
    %3634 = vmatprep.subr.mxu0 0.0
    %3635 = vmatpush1.msra.mxu0 %v3529
    %3636 = vmatprep.subr.mxu0 0.0
    %3637 = vmatpush1.msra.mxu0 %v3528
    %3638 = vmatprep.subr.mxu0 0.0
    %3639 = vmatpush2.msra.mxu0 0.0
    %3640 = vmatprep.subr.mxu0 0.0
    %3641 = vmatpush2.msra.mxu0 0.0
    %3642 = vmatprep.subr.mxu0 0.0
    %3643 = vmatpush2.msra.mxu0 0.0
    %3644 = vmatprep.subr.mxu0 0.0
    %3645 = vmatpush2.msra.mxu0 0.0
    %3646 = vmatprep.subr.mxu0 0.0
    %3647 = vmatpush2.msra.mxu0 0.0
    %3648 = vmatprep.subr.mxu0 0.0
    %3649 = vmatpush2.msra.mxu0 0.0
    %3650 = vmatprep.subr.mxu0 0.0
    %3651 = vmatpush2.msra.mxu0 0.0
    %3652 = vmatprep.subr.mxu0 0.0
    %3653 = vmatpush2.msra.mxu0 0.0
    %3654 = vmatprep.subr.mxu0 0.0
    %3655 = vmatpush2.msra.mxu0 0.0
    %3656 = vmatprep.subr.mxu0 0.0
    %3657 = vmatpush2.msra.mxu0 0.0
    %3658 = vmatprep.subr.mxu0 0.0
    %3659 = vmatpush2.msra.mxu0 0.0
    %3660 = vmatprep.subr.mxu0 0.0
    %3661 = vmatpush2.msra.mxu0 0.0
    %3662 = vmatprep.subr.mxu0 0.0
    %3663 = vmatpush2.msra.mxu0 0.0
    %3664 = vmatprep.subr.mxu0 0.0
    %3665 = vmatpush2.msra.mxu0 0.0
    %3666 = vmatprep.subr.mxu0 0.0
    %3667 = vmatpush2.msra.mxu0 0.0
    %3668 = vmatprep.subr.mxu0 0.0
    %3669 = vmatpush2.msra.mxu0 0.0
    %3670 = vmatprep.mubr.f32.mxu0 0.0
    %3671 = vmatmul.mubr.f32.gmra.mxu0 %v3604
    %v3672 = vpop.f32.mrf.mxu0
    %v3673 = vadd.f32 %v3601, %v3672
    %v3674 = vpop.f32.mrf.mxu0
    %3675 = vdwg.mxu0
    %v3676 = vld [vmem:[#allocation8] sm:$0x1]
    %v3678 = vlaneseq
    %v3679 = vshrl.u32 %v3678, 7
    %v3680 = vsub.s32 0, %v3679
    %v3681 = vrot.slane %v3676, %v3680
    %v3683 = vadd.f32 %v3673, %v3681
    %v3684 = vxor.u32 %v3683, 2147483648
    %v3685 = vmul.f32 %v3684, 1.442695
    %v3686 = vpow.pop %v3685
    %v3687 = vadd.f32 %v3686, 1.0
    %v3688 = vrcp.pop %v3687
    %v3689 = vmul.f32 1.0, %v3688
    %v3690 = vtanh.pop %v3683
    %v3691 = vmul.f32 %v3689, %v3228
    %3693 = vrot.lane.b32.xlu0 %v3690, 32
    %v3694 = vpop.permute.xlu0 %3693
    %v3696 = vmul.f32 %v3689, %v3694
    %3698 = vrot.lane.b32.xlu0 %v3696, 32
    %v3699 = vpop.permute.xlu0 %3698
    %v3701 = vadd.f32 %v3691, %v3699
    %v3702 = vtanh.pop %v3701
    %3704 = vrot.lane.b32.xlu0 %v3702, 32
    %v3705 = vpop.permute.xlu0 %3704
    %v3707 = vmul.f32 %v3689, %v3705
    %v3708 = vld [vmem:[#allocation10] sm:$0xff]
    %v3709 = vld [vmem:[#allocation10 + $0x8] sm:$0xff]
    %v3710 = vld [vmem:[#allocation10 + $0x10] sm:$0xff]
    %v3711 = vld [vmem:[#allocation10 + $0x18] sm:$0xff]
    %v3712 = vld [vmem:[#allocation11] sm:$0xff]
    %v3713 = vld [vmem:[#allocation11 + $0x8] sm:$0xff]
    %v3714 = vld [vmem:[#allocation11 + $0x10] sm:$0xff]
    %v3715 = vld [vmem:[#allocation11 + $0x18] sm:$0xff]
    %3716 = vmatprep.subr.mxu0 0.0
    %3717 = vmatpush1.msra.mxu0 0.0
    %3718 = vmatprep.subr.mxu0 0.0
    %3719 = vmatpush1.msra.mxu0 0.0
    %3720 = vmatprep.subr.mxu0 0.0
    %3721 = vmatpush1.msra.mxu0 0.0
    %3722 = vmatprep.subr.mxu0 0.0
    %3723 = vmatpush1.msra.mxu0 0.0
    %3724 = vmatprep.subr.mxu0 0.0
    %3725 = vmatpush1.msra.mxu0 0.0
    %3726 = vmatprep.subr.mxu0 0.0
    %3727 = vmatpush1.msra.mxu0 0.0
    %3728 = vmatprep.subr.mxu0 0.0
    %3729 = vmatpush1.msra.mxu0 0.0
    %3730 = vmatprep.subr.mxu0 0.0
    %3731 = vmatpush1.msra.mxu0 0.0
    %3732 = vmatprep.subr.mxu0 0.0
    %3733 = vmatpush1.msra.mxu0 0.0
    %3734 = vmatprep.subr.mxu0 0.0
    %3735 = vmatpush1.msra.mxu0 0.0
    %3736 = vmatprep.subr.mxu0 0.0
    %3737 = vmatpush1.msra.mxu0 0.0
    %3738 = vmatprep.subr.mxu0 0.0
    %3739 = vmatpush1.msra.mxu0 0.0
    %3740 = vmatprep.subr.mxu0 0.0
    %3741 = vmatpush1.msra.mxu0 %v3715
    %3742 = vmatprep.subr.mxu0 0.0
    %3743 = vmatpush1.msra.mxu0 %v3714
    %3744 = vmatprep.subr.mxu0 0.0
    %3745 = vmatpush1.msra.mxu0 %v3713
    %3746 = vmatprep.subr.mxu0 0.0
    %3747 = vmatpush1.msra.mxu0 %v3712
    %3748 = vmatprep.subr.mxu0 0.0
    %3749 = vmatpush2.msra.mxu0 0.0
    %3750 = vmatprep.subr.mxu0 0.0
    %3751 = vmatpush2.msra.mxu0 0.0
    %3752 = vmatprep.subr.mxu0 0.0
    %3753 = vmatpush2.msra.mxu0 0.0
    %3754 = vmatprep.subr.mxu0 0.0
    %3755 = vmatpush2.msra.mxu0 0.0
    %3756 = vmatprep.subr.mxu0 0.0
    %3757 = vmatpush2.msra.mxu0 0.0
    %3758 = vmatprep.subr.mxu0 0.0
    %3759 = vmatpush2.msra.mxu0 0.0
    %3760 = vmatprep.subr.mxu0 0.0
    %3761 = vmatpush2.msra.mxu0 0.0
    %3762 = vmatprep.subr.mxu0 0.0
    %3763 = vmatpush2.msra.mxu0 0.0
    %3764 = vmatprep.subr.mxu0 0.0
    %3765 = vmatpush2.msra.mxu0 0.0
    %3766 = vmatprep.subr.mxu0 0.0
    %3767 = vmatpush2.msra.mxu0 0.0
    %3768 = vmatprep.subr.mxu0 0.0
    %3769 = vmatpush2.msra.mxu0 0.0
    %3770 = vmatprep.subr.mxu0 0.0
    %3771 = vmatpush2.msra.mxu0 0.0
    %3772 = vmatprep.subr.mxu0 0.0
    %3773 = vmatpush2.msra.mxu0 0.0
    %3774 = vmatprep.subr.mxu0 0.0
    %3775 = vmatpush2.msra.mxu0 0.0
    %3776 = vmatprep.subr.mxu0 0.0
    %3777 = vmatpush2.msra.mxu0 0.0
    %3778 = vmatprep.subr.mxu0 0.0
    %3779 = vmatpush2.msra.mxu0 0.0
    %3780 = vmatprep.mubr.f32.mxu0 0.0
    %3781 = vmatmul.mubr.f32.gmra.mxu0 %v3434
    %v3782 = vpop.f32.mrf.mxu0
    %v3783 = vadd.f32 0.0, %v3782
    %v3784 = vpop.f32.mrf.mxu0
    %3785 = vdwg.mxu0
    %3787 = vrot.lane.b32.xlu0 %v3707, 64
    %v3788 = vpop.permute.xlu0 %3787
    %v3789 = vsel %vm220, %v3788, 0
    %3791 = vmatprep.subr.mxu0 0.0
    %3792 = vmatpush1.msra.mxu0 0.0
    %3793 = vmatprep.subr.mxu0 0.0
    %3794 = vmatpush1.msra.mxu0 0.0
    %3795 = vmatprep.subr.mxu0 0.0
    %3796 = vmatpush1.msra.mxu0 0.0
    %3797 = vmatprep.subr.mxu0 0.0
    %3798 = vmatpush1.msra.mxu0 0.0
    %3799 = vmatprep.subr.mxu0 0.0
    %3800 = vmatpush1.msra.mxu0 0.0
    %3801 = vmatprep.subr.mxu0 0.0
    %3802 = vmatpush1.msra.mxu0 0.0
    %3803 = vmatprep.subr.mxu0 0.0
    %3804 = vmatpush1.msra.mxu0 0.0
    %3805 = vmatprep.subr.mxu0 0.0
    %3806 = vmatpush1.msra.mxu0 0.0
    %3807 = vmatprep.subr.mxu0 0.0
    %3808 = vmatpush1.msra.mxu0 0.0
    %3809 = vmatprep.subr.mxu0 0.0
    %3810 = vmatpush1.msra.mxu0 0.0
    %3811 = vmatprep.subr.mxu0 0.0
    %3812 = vmatpush1.msra.mxu0 0.0
    %3813 = vmatprep.subr.mxu0 0.0
    %3814 = vmatpush1.msra.mxu0 0.0
    %3815 = vmatprep.subr.mxu0 0.0
    %3816 = vmatpush1.msra.mxu0 %v3711
    %3817 = vmatprep.subr.mxu0 0.0
    %3818 = vmatpush1.msra.mxu0 %v3710
    %3819 = vmatprep.subr.mxu0 0.0
    %3820 = vmatpush1.msra.mxu0 %v3709
    %3821 = vmatprep.subr.mxu0 0.0
    %3822 = vmatpush1.msra.mxu0 %v3708
    %3823 = vmatprep.subr.mxu0 0.0
    %3824 = vmatpush2.msra.mxu0 0.0
    %3825 = vmatprep.subr.mxu0 0.0
    %3826 = vmatpush2.msra.mxu0 0.0
    %3827 = vmatprep.subr.mxu0 0.0
    %3828 = vmatpush2.msra.mxu0 0.0
    %3829 = vmatprep.subr.mxu0 0.0
    %3830 = vmatpush2.msra.mxu0 0.0
    %3831 = vmatprep.subr.mxu0 0.0
    %3832 = vmatpush2.msra.mxu0 0.0
    %3833 = vmatprep.subr.mxu0 0.0
    %3834 = vmatpush2.msra.mxu0 0.0
    %3835 = vmatprep.subr.mxu0 0.0
    %3836 = vmatpush2.msra.mxu0 0.0
    %3837 = vmatprep.subr.mxu0 0.0
    %3838 = vmatpush2.msra.mxu0 0.0
    %3839 = vmatprep.subr.mxu0 0.0
    %3840 = vmatpush2.msra.mxu0 0.0
    %3841 = vmatprep.subr.mxu0 0.0
    %3842 = vmatpush2.msra.mxu0 0.0
    %3843 = vmatprep.subr.mxu0 0.0
    %3844 = vmatpush2.msra.mxu0 0.0
    %3845 = vmatprep.subr.mxu0 0.0
    %3846 = vmatpush2.msra.mxu0 0.0
    %3847 = vmatprep.subr.mxu0 0.0
    %3848 = vmatpush2.msra.mxu0 0.0
    %3849 = vmatprep.subr.mxu0 0.0
    %3850 = vmatpush2.msra.mxu0 0.0
    %3851 = vmatprep.subr.mxu0 0.0
    %3852 = vmatpush2.msra.mxu0 0.0
    %3853 = vmatprep.subr.mxu0 0.0
    %3854 = vmatpush2.msra.mxu0 0.0
    %3855 = vmatprep.mubr.f32.mxu0 0.0
    %3856 = vmatmul.mubr.f32.gmra.mxu0 %v3789
    %v3857 = vpop.f32.mrf.mxu0
    %v3858 = vadd.f32 %v3783, %v3857
    %v3859 = vpop.f32.mrf.mxu0
    %3860 = vdwg.mxu0
    %v3861 = vld [vmem:[#allocation13] sm:$0x1]
    %v3863 = vlaneseq
    %v3864 = vshrl.u32 %v3863, 7
    %v3865 = vsub.s32 0, %v3864
    %v3866 = vrot.slane %v3861, %v3865
    %v3868 = vadd.f32 %v3858, %v3866
    %v3869 = vxor.u32 %v3868, 2147483648
    %v3870 = vmul.f32 %v3869, 1.442695
    %v3871 = vpow.pop %v3870
    %v3872 = vadd.f32 %v3871, 1.0
    %v3873 = vrcp.pop %v3872
    %v3874 = vmul.f32 1.0, %v3873
    %v3875 = vtanh.pop %v3868
    %v3876 = vmul.f32 %v3874, %v3413
    %3878 = vrot.lane.b32.xlu0 %v3875, 32
    %v3879 = vpop.permute.xlu0 %3878
    %v3881 = vmul.f32 %v3874, %v3879
    %3883 = vrot.lane.b32.xlu0 %v3881, 32
    %v3884 = vpop.permute.xlu0 %3883
    %v3886 = vadd.f32 %v3876, %v3884
    %v3887 = vtanh.pop %v3886
    %3889 = vrot.lane.b32.xlu0 %v3887, 32
    %v3890 = vpop.permute.xlu0 %3889
    %v3892 = vmul.f32 %v3874, %v3890
    %v3893 = vld [vmem:[%s9] sm:$0xff]
    %v3894 = vld [vmem:[%s9 + $0x8] sm:$0xff]
    %v3895 = vld [vmem:[%s9 + $0x10] sm:$0xff]
    %v3896 = vld [vmem:[%s9 + $0x18] sm:$0xff]
    %v3897 = vld [vmem:[%s10] sm:$0x1]
    %v3899 = vlaneseq
    %v3900 = vshrl.u32 %v3899, 7
    %v3901 = vsub.s32 0, %v3900
    %v3902 = vrot.slane %v3897, %v3901
    %3905 = vrot.lane.b32.xlu0 %v3892, 64
    %v3906 = vpop.permute.xlu0 %3905
    %v3907 = vsel %vm220, %v3906, 0
    %3909 = vmatprep.subr.mxu0 0.0
    %3910 = vmatpush1.msra.mxu0 0.0
    %3911 = vmatprep.subr.mxu0 0.0
    %3912 = vmatpush1.msra.mxu0 0.0
    %3913 = vmatprep.subr.mxu0 0.0
    %3914 = vmatpush1.msra.mxu0 0.0
    %3915 = vmatprep.subr.mxu0 0.0
    %3916 = vmatpush1.msra.mxu0 0.0
    %3917 = vmatprep.subr.mxu0 0.0
    %3918 = vmatpush1.msra.mxu0 0.0
    %3919 = vmatprep.subr.mxu0 0.0
    %3920 = vmatpush1.msra.mxu0 0.0
    %3921 = vmatprep.subr.mxu0 0.0
    %3922 = vmatpush1.msra.mxu0 0.0
    %3923 = vmatprep.subr.mxu0 0.0
    %3924 = vmatpush1.msra.mxu0 0.0
    %3925 = vmatprep.subr.mxu0 0.0
    %3926 = vmatpush1.msra.mxu0 0.0
    %3927 = vmatprep.subr.mxu0 0.0
    %3928 = vmatpush1.msra.mxu0 0.0
    %3929 = vmatprep.subr.mxu0 0.0
    %3930 = vmatpush1.msra.mxu0 0.0
    %3931 = vmatprep.subr.mxu0 0.0
    %3932 = vmatpush1.msra.mxu0 0.0
    %3933 = vmatprep.subr.mxu0 0.0
    %3934 = vmatpush1.msra.mxu0 %v3896
    %3935 = vmatprep.subr.mxu0 0.0
    %3936 = vmatpush1.msra.mxu0 %v3895
    %3937 = vmatprep.subr.mxu0 0.0
    %3938 = vmatpush1.msra.mxu0 %v3894
    %3939 = vmatprep.subr.mxu0 0.0
    %3940 = vmatpush1.msra.mxu0 %v3893
    %3941 = vmatprep.subr.mxu0 0.0
    %3942 = vmatpush2.msra.mxu0 0.0
    %3943 = vmatprep.subr.mxu0 0.0
    %3944 = vmatpush2.msra.mxu0 0.0
    %3945 = vmatprep.subr.mxu0 0.0
    %3946 = vmatpush2.msra.mxu0 0.0
    %3947 = vmatprep.subr.mxu0 0.0
    %3948 = vmatpush2.msra.mxu0 0.0
    %3949 = vmatprep.subr.mxu0 0.0
    %3950 = vmatpush2.msra.mxu0 0.0
    %3951 = vmatprep.subr.mxu0 0.0
    %3952 = vmatpush2.msra.mxu0 0.0
    %3953 = vmatprep.subr.mxu0 0.0
    %3954 = vmatpush2.msra.mxu0 0.0
    %3955 = vmatprep.subr.mxu0 0.0
    %3956 = vmatpush2.msra.mxu0 0.0
    %3957 = vmatprep.subr.mxu0 0.0
    %3958 = vmatpush2.msra.mxu0 0.0
    %3959 = vmatprep.subr.mxu0 0.0
    %3960 = vmatpush2.msra.mxu0 0.0
    %3961 = vmatprep.subr.mxu0 0.0
    %3962 = vmatpush2.msra.mxu0 0.0
    %3963 = vmatprep.subr.mxu0 0.0
    %3964 = vmatpush2.msra.mxu0 0.0
    %3965 = vmatprep.subr.mxu0 0.0
    %3966 = vmatpush2.msra.mxu0 0.0
    %3967 = vmatprep.subr.mxu0 0.0
    %3968 = vmatpush2.msra.mxu0 0.0
    %3969 = vmatprep.subr.mxu0 0.0
    %3970 = vmatpush2.msra.mxu0 0.0
    %3971 = vmatprep.subr.mxu0 0.0
    %3972 = vmatpush2.msra.mxu0 0.0
    %3973 = vmatprep.mubr.f32.mxu0 0.0
    %3974 = vmatmul.mubr.f32.gmra.mxu0 %v3907
    %v3975 = vpop.f32.mrf.mxu0
    %v3976 = vadd.f32 %v3902, %v3975
    %v3977 = vpop.f32.mrf.mxu0
    %3978 = vdwg.mxu0
    %v3979 = vsel %vm294, %v3976, -inf
    %3980 = vmax.xlane.f32.xlu0 %v3979
    %v3981 = vpop.xlane.xlu0 %3980
    %v3982 = vsub.f32 %v3976, %v3981
    %v3983 = vmul.f32 %v3982, 1.442695
    %v3984 = vpow.pop %v3983
    %v3985 = vsel %vm294, %v3984, 0.0
    %3986 = vadd.xlane.f32.xlu0 %v3985
    %v3987 = vpop.xlane.xlu0 %3986
    %v3988 = vrcp.pop %v3987
    %v3989 = vmul.f32 %v3984, %v3988
    %3991 = vrot.lane.b32.xlu0 %v3976, 112
    %v3992 = vpop.permute.xlu0 %3991
    %vm3994 = vcmask 1048448
    %3995 = vst.msk [vmem:[#allocation15] sm:$0xff] %vm3994, %v3992
    %3997 = vrot.lane.b32.xlu0 %v3989, 112
    %v3998 = vpop.permute.xlu0 %3997
    %4000 = vst.msk [vmem:[#allocation14] sm:$0xff] %vm3994, %v3998
    // Predicated region
    $region74: #{tpu_custom_call.1} parent=1 // pred_check
      _
    $region75: #{tpu_custom_call.1} parent=1 // pred_check_branch
      %4002 = sbr.rel (0) target = $region77
    $region76: #{tpu_custom_call.1} parent=1 // pred_region
      %s4004 = ssub.s32 128, 128
      %4005 = vsyncadd [#allocation4], %s4004
      %s4007 = sshll.u32 [#allocation14], 4
      %s4008 = int_to_ptr.vmem [resolvable:$true] %s4007
      %4010 = dma.vmem_to_hbm [thread:$0]  %s4008, 128, %s11, [#allocation4]
    $region77: #{tpu_custom_call.1} parent=1 // pred_fallthru
      _
    // Predicated region
    $region78: #{tpu_custom_call.1} parent=1 // pred_check
      _
    $region79: #{tpu_custom_call.1} parent=1 // pred_check_branch
      %4012 = sbr.rel (0) target = $region81
    $region80: #{tpu_custom_call.1} parent=1 // pred_region
      %s4014 = ssub.s32 128, 128
      %4015 = vsyncadd [#allocation16], %s4014
      %s4017 = sshll.u32 [#allocation15], 4
      %s4018 = int_to_ptr.vmem [resolvable:$true] %s4017
      %4020 = dma.vmem_to_hbm [thread:$0]  %s4018, 128, %s12, [#allocation16]
    $region81: #{tpu_custom_call.1} parent=1 // pred_fallthru
      _
    // Predicated region
    $region82: #{tpu_custom_call.1} parent=1 // pred_check
      _
    $region83: #{tpu_custom_call.1} parent=1 // pred_check_branch
      %4022 = sbr.rel (0) target = $region85
    $region84: #{tpu_custom_call.1} parent=1 // pred_region
      %4023 = dma.done [#allocation4], 128
    $region85: #{tpu_custom_call.1} parent=1 // pred_fallthru
      _
    // Predicated region
    $region86: #{tpu_custom_call.1} parent=1 // pred_check
      _
    $region87: #{tpu_custom_call.1} parent=1 // pred_check_branch
      %4025 = sbr.rel (0) target = $region89
    $region88: #{tpu_custom_call.1} parent=1 // pred_region
      %4026 = dma.done [#allocation16], 128
    $region89: #{tpu_custom_call.1} parent=1 // pred_fallthru
      _
    %4027 = vsyncpa [#allocation3], 1
    %4028 = vsyncpa [#allocation6], 1
    %4029 = vsyncpa [#allocation9], 1
    %4030 = vsyncpa [#allocation12], 1
    %4031 = vsyncpa [#allocation4], 1
    %4032 = vsyncpa [#allocation16], 1

</llo_original>
